<compile_context>
chip_gen: v5e
topology: v5e:2x2
jax: 0.10.0
libtpu: 0.0.40
codegen_flags: <defaults>
</compile_context>

<pallas_src>
import numpy as np
import jax
import jax.numpy as jnp
from jax import lax
from jax.experimental import pallas as pl
from jax.experimental.pallas import tpu as pltpu


# ----------------------------------------------------------------------------
# Compile-time constants (masks / pooling matrix) for the (C, P) layout
# ----------------------------------------------------------------------------

def _conv3x3_masks(H, W):
    """(9, H*W) {0,1} masks: mask[t, y*W+x] == 1 iff tap t=(ky,kx) reads in-bounds."""
    P = H * W
    m = np.zeros((9, P), np.float32)
    for t in range(9):
        ky, kx = t // 3, t % 3
        for y in range(H):
            if not (0 <= y + ky - 1 < H):
                continue
            for x in range(W):
                if 0 <= x + kx - 1 < W:
                    m[t, y * W + x] = 1.0
    return jnp.asarray(m)


def _avgpool2x2_matrix(H, W):
    """(H*W, (H//2)*(W//2)) matrix so that x(C, P) @ M is the 2x2/stride-2 avg pool."""
    P, Ho, Wo = H * W, H // 2, W // 2
    pm = np.zeros((P, Ho * Wo), np.float32)
    for yo in range(Ho):
        for xo in range(Wo):
            o = yo * Wo + xo
            for dy in range(2):
                for dx in range(2):
                    pm[(2 * yo + dy) * W + (2 * xo + dx), o] = 0.25
    return jnp.asarray(pm)


# ----------------------------------------------------------------------------
# Fused forward pass (one pallas_call for the whole network)
# ----------------------------------------------------------------------------

def densenet_forward_pallas(x_nchw, params, cfg):
    N, C0, H, W = map(int, x_nchw.shape)
    P0 = H * W
    f0 = int(params['conv0_w'].shape[-1])
    K = int(params['cls_w'].shape[1])
    n_blocks = len(cfg)

    # ---- static shape bookkeeping -------------------------------------------
    widths = []                      # (H, W) at which each dense block runs
    hh, ww = H, W
    for bi in range(n_blocks):
        widths.append((hh, ww))
        if bi != n_blocks - 1:
            hh //= 2
            ww //= 2

    block_out_ch = []                # channel width at the end of each block
    nf = f0
    for bi, block in enumerate(cfg):
        nf += sum(block)
        block_out_ch.append(nf)
        if bi != n_blocks - 1:
            nf //= 2

    # ---- pack parameters / constants into the (C, P) kernel layout ----------
    def w3x3_T(w):                   # (3,3,Cin,Cout) -> (Cout, 9*Cin), tap-major
        kh, kw, ci, co = w.shape
        return jnp.transpose(w.reshape(kh * kw, ci, co), (2, 0, 1)).reshape(co, kh * kw * ci)

    def colv(v):                     # (C,) -> (C, 1), broadcasts over (C, P)
        return jnp.asarray(v, jnp.float32).reshape(-1, 1)

    arrays = []
    add = lambda a: arrays.append(jnp.asarray(a, jnp.float32))

    add(w3x3_T(params['conv0_w']))
    add(colv(params['norm0'][0])); add(colv(params['norm0'][1]))
    add(_conv3x3_masks(H, W))                          # also reused by block 0
    for bi, block in enumerate(cfg):
        Hb, Wb = widths[bi]
        if bi > 0:
            add(_conv3x3_masks(Hb, Wb))
        for li in range(len(block)):
            lp = params['blocks'][bi][li]
            add(colv(lp['n1'][0])); add(colv(lp['n1'][1]))
            add(jnp.transpose(lp['conv1_w']))          # (inter, Cin)
            add(colv(lp['n2'][0])); add(colv(lp['n2'][1]))
            add(w3x3_T(lp['conv2_w']))                 # (gr, 9*inter)
        if bi != n_blocks - 1:
            tp = params['transitions'][bi]
            add(colv(tp['n'][0])); add(colv(tp['n'][1]))
            add(jnp.transpose(tp['conv_w']))           # (Cout, Cin)
            add(_avgpool2x2_matrix(Hb, Wb))            # (P, P/4)
    add(colv(params['norm5'][0])); add(colv(params['norm5'][1]))
    add(jnp.transpose(params['cls_w']))                # (K, C_final)
    add(colv(params['cls_b']))                         # (K, 1)
    n_params = len(arrays)

    x = x_nchw.reshape(N, C0, P0).astype(jnp.float32)  # NCHW -> (N, C, H*W)

    # ---- the fused kernel -----------------------------------------------------
    def kernel(*refs):
        x_ref = refs[0]
        it = iter(refs[1:1 + n_params])
        o_ref = refs[1 + n_params]
        scr = refs[2 + n_params:]                      # one feat buffer per block
        nxt = lambda: next(it)

        def bn_relu(v, s_ref, b_ref):                  # folded BN + ReLU, VPU only
            return jnp.maximum(v * s_ref[...] + b_ref[...], 0.0)

        def conv3x3(v, w_ref, mask_ref, W_img):
            """Single im2col matmul. v: (Cin, P); w_ref: (Cout, 9*Cin)."""
            Pv = v.shape[1]
            v2 = jnp.concatenate([v, v], axis=1)       # circular lane buffer
            pieces = []
            for t in range(9):
                ky, kx = t // 3, t % 3
                d = (ky - 1) * W_img + (kx - 1)        # static flat-spatial offset
                if d == 0:
                    pieces.append(v)                   # centre tap: no shift/mask
                else:
                    dd = d % Pv
                    pieces.append(v2[:, dd:dd + Pv] * mask_ref[t:t + 1, :])
            patch = jnp.concatenate(pieces, axis=0)    # (9*Cin, P), register/VMEM local
            return jnp.dot(w_ref[...], patch, preferred_element_type=jnp.float32)

        # conv0 -> norm0 -> relu0
        w0 = nxt(); n0s = nxt(); n0b = nxt(); mask = nxt()
        feat0 = conv3x3(x_ref[0].astype(jnp.float32), w0, mask, W)
        scr[0][0:f0, :] = bn_relu(feat0, n0s, n0b)

        nf_cur = f0
        for bi, block in enumerate(cfg):
            Wb = widths[bi][1]
            if bi > 0:
                mask = nxt()                           # new spatial size after transition
            fb = scr[bi]
            for gr in block:
                n1s = nxt(); n1b = nxt(); w1 = nxt()
                n2s = nxt(); n2b = nxt(); w2 = nxt()
                h = bn_relu(fb[0:nf_cur, :], n1s, n1b)                       # BN1+ReLU
                h = jnp.dot(w1[...], h, preferred_element_type=jnp.float32)  # 1x1 conv
                h = bn_relu(h, n2s, n2b)                                     # BN2+ReLU
                new = conv3x3(h, w2, mask, Wb)                               # 3x3 conv
                # TODO(synk): F.dropout skipped (drop_rate=0 / eval mode).
                fb[nf_cur:nf_cur + gr, :] = new     # dense "concat" = channel-slice write
                nf_cur += gr
            if bi != n_blocks - 1:
                tns = nxt(); tnb = nxt(); tw = nxt(); pm = nxt()
                t = bn_relu(fb[0:nf_cur, :], tns, tnb)
                t = jnp.dot(tw[...], t, preferred_element_type=jnp.float32)  # 1x1 conv
                t = jnp.dot(t, pm[...], preferred_element_type=jnp.float32)  # 2x2 avgpool
                nf_cur //= 2
                scr[bi + 1][0:nf_cur, :] = t

        # norm5 -> relu -> global avgpool -> linear (pool and linear commute)
        n5s = nxt(); n5b = nxt(); wc = nxt(); bc = nxt()
        r = bn_relu(scr[n_blocks - 1][0:nf_cur, :], n5s, n5b)
        lg = jnp.dot(wc[...], r, preferred_element_type=jnp.float32)         # (K, P_last)
        o_ref[0] = (jnp.mean(lg, axis=1, keepdims=True) + bc[...]).astype(o_ref.dtype)

    in_specs = [pl.BlockSpec((1, C0, P0), lambda n: (n, 0, 0))]
    in_specs += [pl.BlockSpec(a.shape, lambda n: (0, 0)) for a in arrays]
    scratch_shapes = [
        pltpu.VMEM((block_out_ch[bi], widths[bi][0] * widths[bi][1]), jnp.float32)
        for bi in range(n_blocks)
    ]

    out = pl.pallas_call(
        kernel,
        out_shape=jax.ShapeDtypeStruct((N, K, 1), jnp.float32),
        grid=(N,),
        in_specs=in_specs,
        out_specs=pl.BlockSpec((1, K, 1), lambda n: (n, 0, 0)),
        scratch_shapes=scratch_shapes,
        compiler_params=pltpu.CompilerParams(dimension_semantics=("parallel",)),
    )(x, *arrays)
    return out[:, :, 0]


# ----------------------------------------------------------------------------
# Deterministic parameter init (synthetic; BN folded to eval-mode scale/shift)
# ----------------------------------------------------------------------------

def fold_bn(gamma, beta, mean, var, eps=1e-5):
    scale = gamma / jnp.sqrt(var + eps)
    shift = beta - mean * scale
    return scale.astype(jnp.float32), shift.astype(jnp.float32)


def bn_init(key, c):
    k1, k2, k3, k4 = jax.random.split(key, 4)
    gamma = 1.0 + 0.1 * jax.random.normal(k1, (c,))
    beta = 0.1 * jax.random.normal(k2, (c,))
    mean = 0.1 * jax.random.normal(k3, (c,))
    var = 1.0 + 0.1 * jax.random.uniform(k4, (c,))
    return fold_bn(gamma, beta, mean, var)


def conv_init(key, shape, fan_in):
    return (jax.random.normal(key, shape) * np.sqrt(2.0 / fan_in)).astype(jnp.float32)


def init_params(key, in_ch, f0, cfg, bn_size, num_classes):
    keys = iter(jax.random.split(key, 256))
    p = {}
    p['conv0_w'] = conv_init(next(keys), (3, 3, in_ch, f0), 9 * in_ch)
    p['norm0'] = bn_init(next(keys), f0)
    nf = f0
    p['blocks'] = []
    p['transitions'] = []
    for bi, block in enumerate(cfg):
        layers = []
        for gr in block:
            inter = bn_size * gr
            lp = {
                'n1': bn_init(next(keys), nf),
                'conv1_w': conv_init(next(keys), (nf, inter), nf),
                'n2': bn_init(next(keys), inter),
                'conv2_w': conv_init(next(keys), (3, 3, inter, gr), 9 * inter),
            }
            layers.append(lp)
            nf += gr
        p['blocks'].append(layers)
        if bi != len(cfg) - 1:
            tp = {
                'n': bn_init(next(keys), nf),
                'conv_w': conv_init(next(keys), (nf, nf // 2), nf),
            }
            p['transitions'].append(tp)
            nf //= 2
    p['norm5'] = bn_init(next(keys), nf)
    p['cls_w'] = (0.1 * jax.random.normal(next(keys), (nf, num_classes))).astype(jnp.float32)
    p['cls_b'] = (0.1 * jax.random.normal(next(keys), (num_classes,))).astype(jnp.float32)
    return p


# ----------------------------------------------------------------------------
# Plain-JAX reference (for numerical verification of the Pallas path)
# ----------------------------------------------------------------------------

def ref_forward(x_nchw, params, cfg):
    x = jnp.transpose(x_nchw, (0, 2, 3, 1))  # NHWC

    def conv(a, w, pad):
        return lax.conv_general_dilated(
            a, w, (1, 1), [(pad, pad), (pad, pad)],
            dimension_numbers=('NHWC', 'HWIO', 'NHWC'),
            precision=lax.Precision.HIGHEST)

    def bnrelu(a, s, b):
        return jnp.maximum(a * s + b, 0.0)

    feat = conv(x, params['conv0_w'], 1)
    feat = bnrelu(feat, *params['norm0'])
    for bi, block in enumerate(cfg):
        for li, _gr in enumerate(block):
            lp = params['blocks'][bi][li]
            h = bnrelu(feat, *lp['n1'])
            h = conv(h, lp['conv1_w'][None, None], 0)
            h = bnrelu(h, *lp['n2'])
            new = conv(h, lp['conv2_w'], 1)
            feat = jnp.concatenate([feat, new], axis=-1)
        if bi != len(cfg) - 1:
            tp = params['transitions'][bi]
            t = bnrelu(feat, *tp['n'])
            t = conv(t, tp['conv_w'][None, None], 0)
            Nn, Hh, Ww, Cc = t.shape
            feat = t.reshape(Nn, Hh // 2, 2, Ww // 2, 2, Cc).mean(axis=(2, 4))
    feat = jnp.maximum(feat * params['norm5'][0] + params['norm5'][1], 0.0)
    pooled = feat.mean(axis=(1, 2))
    return jnp.dot(pooled, params['cls_w'],
                   precision=lax.Precision.HIGHEST) + params['cls_b']


# ----------------------------------------------------------------------------

if __name__ == "__main__":
    key = jax.random.PRNGKey(0)
    growth_rate_config = [[4, 4], [4]]   # 2 dense blocks, dynamic growth rates
    bn_size = 2
    num_init_features = 8
    num_classes = 10
    image_shape = (1, 16, 16)            # (C, H, W), like the module default (1, 28, 28)
    batch = 2

    kx, kp = jax.random.split(key)
    x = jax.random.normal(kx, (batch,) + image_shape, jnp.float32)  # NCHW, PyTorch convention
    params = init_params(kp, image_shape[0], num_init_features,
                         growth_rate_config, bn_size, num_classes)

    out = densenet_forward_pallas(x, params, growth_rate_config)
    out = jax.block_until_ready(out)

    ref = jax.block_until_ready(ref_forward(x, params, growth_rate_config))
    assert out.shape == (batch, num_classes)
    np.testing.assert_allclose(np.asarray(out), np.asarray(ref), rtol=2e-3, atol=2e-3)

    print("KERNEL_OK")
</pallas_src>

<mosaic_0001>
module attributes {stable_mosaic.version = 11 : i64} {
  func.func @kernel(%arg0: i32, %arg1: memref<1x1x256xf32, #tpu.memory_space<vmem>>, %arg2: memref<8x9xf32, #tpu.memory_space<vmem>>, %arg3: memref<8x1xf32, #tpu.memory_space<vmem>>, %arg4: memref<8x1xf32, #tpu.memory_space<vmem>>, %arg5: memref<9x256xf32, #tpu.memory_space<vmem>>, %arg6: memref<8x1xf32, #tpu.memory_space<vmem>>, %arg7: memref<8x1xf32, #tpu.memory_space<vmem>>, %arg8: memref<8x8xf32, #tpu.memory_space<vmem>>, %arg9: memref<8x1xf32, #tpu.memory_space<vmem>>, %arg10: memref<8x1xf32, #tpu.memory_space<vmem>>, %arg11: memref<4x72xf32, #tpu.memory_space<vmem>>, %arg12: memref<12x1xf32, #tpu.memory_space<vmem>>, %arg13: memref<12x1xf32, #tpu.memory_space<vmem>>, %arg14: memref<8x12xf32, #tpu.memory_space<vmem>>, %arg15: memref<8x1xf32, #tpu.memory_space<vmem>>, %arg16: memref<8x1xf32, #tpu.memory_space<vmem>>, %arg17: memref<4x72xf32, #tpu.memory_space<vmem>>, %arg18: memref<16x1xf32, #tpu.memory_space<vmem>>, %arg19: memref<16x1xf32, #tpu.memory_space<vmem>>, %arg20: memref<8x16xf32, #tpu.memory_space<vmem>>, %arg21: memref<256x64xf32, #tpu.memory_space<vmem>>, %arg22: memref<9x64xf32, #tpu.memory_space<vmem>>, %arg23: memref<8x1xf32, #tpu.memory_space<vmem>>, %arg24: memref<8x1xf32, #tpu.memory_space<vmem>>, %arg25: memref<8x8xf32, #tpu.memory_space<vmem>>, %arg26: memref<8x1xf32, #tpu.memory_space<vmem>>, %arg27: memref<8x1xf32, #tpu.memory_space<vmem>>, %arg28: memref<4x72xf32, #tpu.memory_space<vmem>>, %arg29: memref<12x1xf32, #tpu.memory_space<vmem>>, %arg30: memref<12x1xf32, #tpu.memory_space<vmem>>, %arg31: memref<10x12xf32, #tpu.memory_space<vmem>>, %arg32: memref<10x1xf32, #tpu.memory_space<vmem>>, %arg33: memref<1x10x1xf32, #tpu.memory_space<vmem>>, %arg34: memref<16x256xf32, #tpu.memory_space<vmem>>, %arg35: memref<12x64xf32, #tpu.memory_space<vmem>>) attributes {dimension_semantics = [#tpu.dimension_semantics<parallel>], iteration_bounds = array<i64: 2>, scalar_prefetch = 0 : i64, scratch_operands = 2 : i64, tpu.core_type = #tpu.core_type<tc>, window_params = [{transform_indices = @transform_0, window_bounds = array<i64: 1, 1, 256>}, {pipeline_mode = #tpu.pipeline_mode<synchronous>, transform_indices = @transform_1, window_bounds = array<i64: 8, 9>}, {pipeline_mode = #tpu.pipeline_mode<synchronous>, transform_indices = @transform_2, window_bounds = array<i64: 8, 1>}, {pipeline_mode = #tpu.pipeline_mode<synchronous>, transform_indices = @transform_3, window_bounds = array<i64: 8, 1>}, {pipeline_mode = #tpu.pipeline_mode<synchronous>, transform_indices = @transform_4, window_bounds = array<i64: 9, 256>}, {pipeline_mode = #tpu.pipeline_mode<synchronous>, transform_indices = @transform_5, window_bounds = array<i64: 8, 1>}, {pipeline_mode = #tpu.pipeline_mode<synchronous>, transform_indices = @transform_6, window_bounds = array<i64: 8, 1>}, {pipeline_mode = #tpu.pipeline_mode<synchronous>, transform_indices = @transform_7, window_bounds = array<i64: 8, 8>}, {pipeline_mode = #tpu.pipeline_mode<synchronous>, transform_indices = @transform_8, window_bounds = array<i64: 8, 1>}, {pipeline_mode = #tpu.pipeline_mode<synchronous>, transform_indices = @transform_9, window_bounds = array<i64: 8, 1>}, {pipeline_mode = #tpu.pipeline_mode<synchronous>, transform_indices = @transform_10, window_bounds = array<i64: 4, 72>}, {pipeline_mode = #tpu.pipeline_mode<synchronous>, transform_indices = @transform_11, window_bounds = array<i64: 12, 1>}, {pipeline_mode = #tpu.pipeline_mode<synchronous>, transform_indices = @transform_12, window_bounds = array<i64: 12, 1>}, {pipeline_mode = #tpu.pipeline_mode<synchronous>, transform_indices = @transform_13, window_bounds = array<i64: 8, 12>}, {pipeline_mode = #tpu.pipeline_mode<synchronous>, transform_indices = @transform_14, window_bounds = array<i64: 8, 1>}, {pipeline_mode = #tpu.pipeline_mode<synchronous>, transform_indices = @transform_15, window_bounds = array<i64: 8, 1>}, {pipeline_mode = #tpu.pipeline_mode<synchronous>, transform_indices = @transform_16, window_bounds = array<i64: 4, 72>}, {pipeline_mode = #tpu.pipeline_mode<synchronous>, transform_indices = @transform_17, window_bounds = array<i64: 16, 1>}, {pipeline_mode = #tpu.pipeline_mode<synchronous>, transform_indices = @transform_18, window_bounds = array<i64: 16, 1>}, {pipeline_mode = #tpu.pipeline_mode<synchronous>, transform_indices = @transform_19, window_bounds = array<i64: 8, 16>}, {pipeline_mode = #tpu.pipeline_mode<synchronous>, transform_indices = @transform_20, window_bounds = array<i64: 256, 64>}, {pipeline_mode = #tpu.pipeline_mode<synchronous>, transform_indices = @transform_21, window_bounds = array<i64: 9, 64>}, {pipeline_mode = #tpu.pipeline_mode<synchronous>, transform_indices = @transform_22, window_bounds = array<i64: 8, 1>}, {pipeline_mode = #tpu.pipeline_mode<synchronous>, transform_indices = @transform_23, window_bounds = array<i64: 8, 1>}, {pipeline_mode = #tpu.pipeline_mode<synchronous>, transform_indices = @transform_24, window_bounds = array<i64: 8, 8>}, {pipeline_mode = #tpu.pipeline_mode<synchronous>, transform_indices = @transform_25, window_bounds = array<i64: 8, 1>}, {pipeline_mode = #tpu.pipeline_mode<synchronous>, transform_indices = @transform_26, window_bounds = array<i64: 8, 1>}, {pipeline_mode = #tpu.pipeline_mode<synchronous>, transform_indices = @transform_27, window_bounds = array<i64: 4, 72>}, {pipeline_mode = #tpu.pipeline_mode<synchronous>, transform_indices = @transform_28, window_bounds = array<i64: 12, 1>}, {pipeline_mode = #tpu.pipeline_mode<synchronous>, transform_indices = @transform_29, window_bounds = array<i64: 12, 1>}, {pipeline_mode = #tpu.pipeline_mode<synchronous>, transform_indices = @transform_30, window_bounds = array<i64: 10, 12>}, {pipeline_mode = #tpu.pipeline_mode<synchronous>, transform_indices = @transform_31, window_bounds = array<i64: 10, 1>}, {transform_indices = @transform_32, window_bounds = array<i64: 1, 10, 1>}]} {
    %c0 = arith.constant 0 : index
    %c0_0 = arith.constant 0 : index
    %c0_1 = arith.constant 0 : index
    %0 = vector.load %arg1[%c0, %c0_0, %c0_1] : memref<1x1x256xf32, #tpu.memory_space<vmem>>, vector<1x1x256xf32>
    %1 = vector.shape_cast %0 : vector<1x1x256xf32> to vector<1x256xf32>
    %2 = tpu.concatenate %1, %1 in 1 : vector<1x256xf32>, vector<1x256xf32> -> vector<1x512xf32>
    %3 = vector.extract_strided_slice %2 {offsets = [0, 239], sizes = [1, 256], strides = [1, 1]} : vector<1x512xf32> to vector<1x256xf32>
    %c0_2 = arith.constant 0 : index
    %c0_3 = arith.constant 0 : index
    %4 = vector.load %arg5[%c0_2, %c0_3] : memref<9x256xf32, #tpu.memory_space<vmem>>, vector<1x256xf32>
    %5 = arith.mulf %3, %4 : vector<1x256xf32>
    %6 = vector.extract_strided_slice %2 {offsets = [0, 240], sizes = [1, 256], strides = [1, 1]} : vector<1x512xf32> to vector<1x256xf32>
    %c1 = arith.constant 1 : index
    %c0_4 = arith.constant 0 : index
    %7 = vector.load %arg5[%c1, %c0_4] : memref<9x256xf32, #tpu.memory_space<vmem>>, vector<1x256xf32>
    %8 = arith.mulf %6, %7 : vector<1x256xf32>
    %9 = vector.extract_strided_slice %2 {offsets = [0, 241], sizes = [1, 256], strides = [1, 1]} : vector<1x512xf32> to vector<1x256xf32>
    %c2 = arith.constant 2 : index
    %c0_5 = arith.constant 0 : index
    %10 = vector.load %arg5[%c2, %c0_5] : memref<9x256xf32, #tpu.memory_space<vmem>>, vector<1x256xf32>
    %11 = arith.mulf %9, %10 : vector<1x256xf32>
    %12 = vector.extract_strided_slice %2 {offsets = [0, 255], sizes = [1, 256], strides = [1, 1]} : vector<1x512xf32> to vector<1x256xf32>
    %c3 = arith.constant 3 : index
    %c0_6 = arith.constant 0 : index
    %13 = vector.load %arg5[%c3, %c0_6] : memref<9x256xf32, #tpu.memory_space<vmem>>, vector<1x256xf32>
    %14 = arith.mulf %12, %13 : vector<1x256xf32>
    %15 = vector.extract_strided_slice %2 {offsets = [0, 1], sizes = [1, 256], strides = [1, 1]} : vector<1x512xf32> to vector<1x256xf32>
    %c5 = arith.constant 5 : index
    %c0_7 = arith.constant 0 : index
    %16 = vector.load %arg5[%c5, %c0_7] : memref<9x256xf32, #tpu.memory_space<vmem>>, vector<1x256xf32>
    %17 = arith.mulf %15, %16 : vector<1x256xf32>
    %18 = vector.extract_strided_slice %2 {offsets = [0, 15], sizes = [1, 256], strides = [1, 1]} : vector<1x512xf32> to vector<1x256xf32>
    %c6 = arith.constant 6 : index
    %c0_8 = arith.constant 0 : index
    %19 = vector.load %arg5[%c6, %c0_8] : memref<9x256xf32, #tpu.memory_space<vmem>>, vector<1x256xf32>
    %20 = arith.mulf %18, %19 : vector<1x256xf32>
    %21 = vector.extract_strided_slice %2 {offsets = [0, 16], sizes = [1, 256], strides = [1, 1]} : vector<1x512xf32> to vector<1x256xf32>
    %c7 = arith.constant 7 : index
    %c0_9 = arith.constant 0 : index
    %22 = vector.load %arg5[%c7, %c0_9] : memref<9x256xf32, #tpu.memory_space<vmem>>, vector<1x256xf32>
    %23 = arith.mulf %21, %22 : vector<1x256xf32>
    %24 = vector.extract_strided_slice %2 {offsets = [0, 17], sizes = [1, 256], strides = [1, 1]} : vector<1x512xf32> to vector<1x256xf32>
    %c8 = arith.constant 8 : index
    %c0_10 = arith.constant 0 : index
    %25 = vector.load %arg5[%c8, %c0_10] : memref<9x256xf32, #tpu.memory_space<vmem>>, vector<1x256xf32>
    %26 = arith.mulf %24, %25 : vector<1x256xf32>
    %27 = tpu.concatenate %5, %8, %11, %14, %1, %17, %20, %23, %26 in 0 : vector<1x256xf32>, vector<1x256xf32>, vector<1x256xf32>, vector<1x256xf32>, vector<1x256xf32>, vector<1x256xf32>, vector<1x256xf32>, vector<1x256xf32>, vector<1x256xf32> -> vector<9x256xf32>
    %c0_11 = arith.constant 0 : index
    %c0_12 = arith.constant 0 : index
    %28 = vector.load %arg2[%c0_11, %c0_12] : memref<8x9xf32, #tpu.memory_space<vmem>>, vector<8x9xf32>
    %cst = arith.constant dense<0.000000e+00> : vector<8x256xf32>
    %29 = tpu.matmul %28, %27, %cst {dimension_numbers = #tpu.dot_dimension_numbers<[1], [0], [0], [1], [0, 0, 1, 1], [], []>} : vector<8x9xf32>, vector<9x256xf32>, vector<8x256xf32> -> vector<8x256xf32>
    %c0_13 = arith.constant 0 : index
    %c0_14 = arith.constant 0 : index
    %30 = vector.load %arg3[%c0_13, %c0_14] : memref<8x1xf32, #tpu.memory_space<vmem>>, vector<8x1xf32>
    %31 = vector.broadcast %30 : vector<8x1xf32> to vector<8x256xf32>
    %32 = arith.mulf %29, %31 : vector<8x256xf32>
    %c0_15 = arith.constant 0 : index
    %c0_16 = arith.constant 0 : index
    %33 = vector.load %arg4[%c0_15, %c0_16] : memref<8x1xf32, #tpu.memory_space<vmem>>, vector<8x1xf32>
    %34 = vector.broadcast %33 : vector<8x1xf32> to vector<8x256xf32>
    %35 = arith.addf %32, %34 : vector<8x256xf32>
    %cst_17 = arith.constant 0.000000e+00 : f32
    %36 = vector.broadcast %cst_17 : f32 to vector<8x256xf32>
    %37 = arith.maximumf %35, %36 : vector<8x256xf32>
    %c0_18 = arith.constant 0 : index
    %c0_19 = arith.constant 0 : index
    %38 = vector.load %arg34[%c0_18, %c0_19] : memref<16x256xf32, #tpu.memory_space<vmem>>, vector<8x256xf32>
    tpu.vector_store %arg34[%c0_18, %c0_19], %37 {strides = array<i32>} : memref<16x256xf32, #tpu.memory_space<vmem>>, vector<8x256xf32>,
    %c0_20 = arith.constant 0 : index
    %c0_21 = arith.constant 0 : index
    %39 = vector.load %arg34[%c0_20, %c0_21] : memref<16x256xf32, #tpu.memory_space<vmem>>, vector<8x256xf32>
    %c0_22 = arith.constant 0 : index
    %c0_23 = arith.constant 0 : index
    %40 = vector.load %arg6[%c0_22, %c0_23] : memref<8x1xf32, #tpu.memory_space<vmem>>, vector<8x1xf32>
    %41 = vector.broadcast %40 : vector<8x1xf32> to vector<8x256xf32>
    %42 = arith.mulf %39, %41 : vector<8x256xf32>
    %c0_24 = arith.constant 0 : index
    %c0_25 = arith.constant 0 : index
    %43 = vector.load %arg7[%c0_24, %c0_25] : memref<8x1xf32, #tpu.memory_space<vmem>>, vector<8x1xf32>
    %44 = vector.broadcast %43 : vector<8x1xf32> to vector<8x256xf32>
    %45 = arith.addf %42, %44 : vector<8x256xf32>
    %cst_26 = arith.constant 0.000000e+00 : f32
    %46 = vector.broadcast %cst_26 : f32 to vector<8x256xf32>
    %47 = arith.maximumf %45, %46 : vector<8x256xf32>
    %c0_27 = arith.constant 0 : index
    %c0_28 = arith.constant 0 : index
    %48 = vector.load %arg8[%c0_27, %c0_28] : memref<8x8xf32, #tpu.memory_space<vmem>>, vector<8x8xf32>
    %cst_29 = arith.constant dense<0.000000e+00> : vector<8x256xf32>
    %49 = tpu.matmul %48, %47, %cst_29 {dimension_numbers = #tpu.dot_dimension_numbers<[1], [0], [0], [1], [0, 0, 1, 1], [], []>} : vector<8x8xf32>, vector<8x256xf32>, vector<8x256xf32> -> vector<8x256xf32>
    %c0_30 = arith.constant 0 : index
    %c0_31 = arith.constant 0 : index
    %50 = vector.load %arg9[%c0_30, %c0_31] : memref<8x1xf32, #tpu.memory_space<vmem>>, vector<8x1xf32>
    %51 = vector.broadcast %50 : vector<8x1xf32> to vector<8x256xf32>
    %52 = arith.mulf %49, %51 : vector<8x256xf32>
    %c0_32 = arith.constant 0 : index
    %c0_33 = arith.constant 0 : index
    %53 = vector.load %arg10[%c0_32, %c0_33] : memref<8x1xf32, #tpu.memory_space<vmem>>, vector<8x1xf32>
    %54 = vector.broadcast %53 : vector<8x1xf32> to vector<8x256xf32>
    %55 = arith.addf %52, %54 : vector<8x256xf32>
    %cst_34 = arith.constant 0.000000e+00 : f32
    %56 = vector.broadcast %cst_34 : f32 to vector<8x256xf32>
    %57 = arith.maximumf %55, %56 : vector<8x256xf32>
    %58 = tpu.concatenate %57, %57 in 1 : vector<8x256xf32>, vector<8x256xf32> -> vector<8x512xf32>
    %59 = vector.extract_strided_slice %58 {offsets = [0, 239], sizes = [8, 256], strides = [1, 1]} : vector<8x512xf32> to vector<8x256xf32>
    %c0_35 = arith.constant 0 : index
    %c0_36 = arith.constant 0 : index
    %60 = vector.load %arg5[%c0_35, %c0_36] : memref<9x256xf32, #tpu.memory_space<vmem>>, vector<1x256xf32>
    %61 = vector.broadcast %60 : vector<1x256xf32> to vector<8x256xf32>
    %62 = arith.mulf %59, %61 : vector<8x256xf32>
    %63 = vector.extract_strided_slice %58 {offsets = [0, 240], sizes = [8, 256], strides = [1, 1]} : vector<8x512xf32> to vector<8x256xf32>
    %c1_37 = arith.constant 1 : index
    %c0_38 = arith.constant 0 : index
    %64 = vector.load %arg5[%c1_37, %c0_38] : memref<9x256xf32, #tpu.memory_space<vmem>>, vector<1x256xf32>
    %65 = vector.broadcast %64 : vector<1x256xf32> to vector<8x256xf32>
    %66 = arith.mulf %63, %65 : vector<8x256xf32>
    %67 = vector.extract_strided_slice %58 {offsets = [0, 241], sizes = [8, 256], strides = [1, 1]} : vector<8x512xf32> to vector<8x256xf32>
    %c2_39 = arith.constant 2 : index
    %c0_40 = arith.constant 0 : index
    %68 = vector.load %arg5[%c2_39, %c0_40] : memref<9x256xf32, #tpu.memory_space<vmem>>, vector<1x256xf32>
    %69 = vector.broadcast %68 : vector<1x256xf32> to vector<8x256xf32>
    %70 = arith.mulf %67, %69 : vector<8x256xf32>
    %71 = vector.extract_strided_slice %58 {offsets = [0, 255], sizes = [8, 256], strides = [1, 1]} : vector<8x512xf32> to vector<8x256xf32>
    %c3_41 = arith.constant 3 : index
    %c0_42 = arith.constant 0 : index
    %72 = vector.load %arg5[%c3_41, %c0_42] : memref<9x256xf32, #tpu.memory_space<vmem>>, vector<1x256xf32>
    %73 = vector.broadcast %72 : vector<1x256xf32> to vector<8x256xf32>
    %74 = arith.mulf %71, %73 : vector<8x256xf32>
    %75 = vector.extract_strided_slice %58 {offsets = [0, 1], sizes = [8, 256], strides = [1, 1]} : vector<8x512xf32> to vector<8x256xf32>
    %c5_43 = arith.constant 5 : index
    %c0_44 = arith.constant 0 : index
    %76 = vector.load %arg5[%c5_43, %c0_44] : memref<9x256xf32, #tpu.memory_space<vmem>>, vector<1x256xf32>
    %77 = vector.broadcast %76 : vector<1x256xf32> to vector<8x256xf32>
    %78 = arith.mulf %75, %77 : vector<8x256xf32>
    %79 = vector.extract_strided_slice %58 {offsets = [0, 15], sizes = [8, 256], strides = [1, 1]} : vector<8x512xf32> to vector<8x256xf32>
    %c6_45 = arith.constant 6 : index
    %c0_46 = arith.constant 0 : index
    %80 = vector.load %arg5[%c6_45, %c0_46] : memref<9x256xf32, #tpu.memory_space<vmem>>, vector<1x256xf32>
    %81 = vector.broadcast %80 : vector<1x256xf32> to vector<8x256xf32>
    %82 = arith.mulf %79, %81 : vector<8x256xf32>
    %83 = vector.extract_strided_slice %58 {offsets = [0, 16], sizes = [8, 256], strides = [1, 1]} : vector<8x512xf32> to vector<8x256xf32>
    %c7_47 = arith.constant 7 : index
    %c0_48 = arith.constant 0 : index
    %84 = vector.load %arg5[%c7_47, %c0_48] : memref<9x256xf32, #tpu.memory_space<vmem>>, vector<1x256xf32>
    %85 = vector.broadcast %84 : vector<1x256xf32> to vector<8x256xf32>
    %86 = arith.mulf %83, %85 : vector<8x256xf32>
    %87 = vector.extract_strided_slice %58 {offsets = [0, 17], sizes = [8, 256], strides = [1, 1]} : vector<8x512xf32> to vector<8x256xf32>
    %c8_49 = arith.constant 8 : index
    %c0_50 = arith.constant 0 : index
    %88 = vector.load %arg5[%c8_49, %c0_50] : memref<9x256xf32, #tpu.memory_space<vmem>>, vector<1x256xf32>
    %89 = vector.broadcast %88 : vector<1x256xf32> to vector<8x256xf32>
    %90 = arith.mulf %87, %89 : vector<8x256xf32>
    %91 = tpu.concatenate %62, %66, %70, %74, %57, %78, %82, %86, %90 in 0 : vector<8x256xf32>, vector<8x256xf32>, vector<8x256xf32>, vector<8x256xf32>, vector<8x256xf32>, vector<8x256xf32>, vector<8x256xf32>, vector<8x256xf32>, vector<8x256xf32> -> vector<72x256xf32>
    %c0_51 = arith.constant 0 : index
    %c0_52 = arith.constant 0 : index
    %92 = vector.load %arg11[%c0_51, %c0_52] : memref<4x72xf32, #tpu.memory_space<vmem>>, vector<4x72xf32>
    %cst_53 = arith.constant dense<0.000000e+00> : vector<4x256xf32>
    %93 = tpu.matmul %92, %91, %cst_53 {dimension_numbers = #tpu.dot_dimension_numbers<[1], [0], [0], [1], [0, 0, 1, 1], [], []>} : vector<4x72xf32>, vector<72x256xf32>, vector<4x256xf32> -> vector<4x256xf32>
    %c8_54 = arith.constant 8 : index
    %c0_55 = arith.constant 0 : index
    %94 = vector.load %arg34[%c8_54, %c0_55] : memref<16x256xf32, #tpu.memory_space<vmem>>, vector<4x256xf32>
    tpu.vector_store %arg34[%c8_54, %c0_55], %93 {strides = array<i32>} : memref<16x256xf32, #tpu.memory_space<vmem>>, vector<4x256xf32>,
    %c0_56 = arith.constant 0 : index
    %c0_57 = arith.constant 0 : index
    %95 = vector.load %arg34[%c0_56, %c0_57] : memref<16x256xf32, #tpu.memory_space<vmem>>, vector<12x256xf32>
    %c0_58 = arith.constant 0 : index
    %c0_59 = arith.constant 0 : index
    %96 = vector.load %arg12[%c0_58, %c0_59] : memref<12x1xf32, #tpu.memory_space<vmem>>, vector<12x1xf32>
    %97 = vector.broadcast %96 : vector<12x1xf32> to vector<12x256xf32>
    %98 = arith.mulf %95, %97 : vector<12x256xf32>
    %c0_60 = arith.constant 0 : index
    %c0_61 = arith.constant 0 : index
    %99 = vector.load %arg13[%c0_60, %c0_61] : memref<12x1xf32, #tpu.memory_space<vmem>>, vector<12x1xf32>
    %100 = vector.broadcast %99 : vector<12x1xf32> to vector<12x256xf32>
    %101 = arith.addf %98, %100 : vector<12x256xf32>
    %cst_62 = arith.constant 0.000000e+00 : f32
    %102 = vector.broadcast %cst_62 : f32 to vector<12x256xf32>
    %103 = arith.maximumf %101, %102 : vector<12x256xf32>
    %c0_63 = arith.constant 0 : index
    %c0_64 = arith.constant 0 : index
    %104 = vector.load %arg14[%c0_63, %c0_64] : memref<8x12xf32, #tpu.memory_space<vmem>>, vector<8x12xf32>
    %cst_65 = arith.constant dense<0.000000e+00> : vector<8x256xf32>
    %105 = tpu.matmul %104, %103, %cst_65 {dimension_numbers = #tpu.dot_dimension_numbers<[1], [0], [0], [1], [0, 0, 1, 1], [], []>} : vector<8x12xf32>, vector<12x256xf32>, vector<8x256xf32> -> vector<8x256xf32>
    %c0_66 = arith.constant 0 : index
    %c0_67 = arith.constant 0 : index
    %106 = vector.load %arg15[%c0_66, %c0_67] : memref<8x1xf32, #tpu.memory_space<vmem>>, vector<8x1xf32>
    %107 = vector.broadcast %106 : vector<8x1xf32> to vector<8x256xf32>
    %108 = arith.mulf %105, %107 : vector<8x256xf32>
    %c0_68 = arith.constant 0 : index
    %c0_69 = arith.constant 0 : index
    %109 = vector.load %arg16[%c0_68, %c0_69] : memref<8x1xf32, #tpu.memory_space<vmem>>, vector<8x1xf32>
    %110 = vector.broadcast %109 : vector<8x1xf32> to vector<8x256xf32>
    %111 = arith.addf %108, %110 : vector<8x256xf32>
    %cst_70 = arith.constant 0.000000e+00 : f32
    %112 = vector.broadcast %cst_70 : f32 to vector<8x256xf32>
    %113 = arith.maximumf %111, %112 : vector<8x256xf32>
    %114 = tpu.concatenate %113, %113 in 1 : vector<8x256xf32>, vector<8x256xf32> -> vector<8x512xf32>
    %115 = vector.extract_strided_slice %114 {offsets = [0, 239], sizes = [8, 256], strides = [1, 1]} : vector<8x512xf32> to vector<8x256xf32>
    %c0_71 = arith.constant 0 : index
    %c0_72 = arith.constant 0 : index
    %116 = vector.load %arg5[%c0_71, %c0_72] : memref<9x256xf32, #tpu.memory_space<vmem>>, vector<1x256xf32>
    %117 = vector.broadcast %116 : vector<1x256xf32> to vector<8x256xf32>
    %118 = arith.mulf %115, %117 : vector<8x256xf32>
    %119 = vector.extract_strided_slice %114 {offsets = [0, 240], sizes = [8, 256], strides = [1, 1]} : vector<8x512xf32> to vector<8x256xf32>
    %c1_73 = arith.constant 1 : index
    %c0_74 = arith.constant 0 : index
    %120 = vector.load %arg5[%c1_73, %c0_74] : memref<9x256xf32, #tpu.memory_space<vmem>>, vector<1x256xf32>
    %121 = vector.broadcast %120 : vector<1x256xf32> to vector<8x256xf32>
    %122 = arith.mulf %119, %121 : vector<8x256xf32>
    %123 = vector.extract_strided_slice %114 {offsets = [0, 241], sizes = [8, 256], strides = [1, 1]} : vector<8x512xf32> to vector<8x256xf32>
    %c2_75 = arith.constant 2 : index
    %c0_76 = arith.constant 0 : index
    %124 = vector.load %arg5[%c2_75, %c0_76] : memref<9x256xf32, #tpu.memory_space<vmem>>, vector<1x256xf32>
    %125 = vector.broadcast %124 : vector<1x256xf32> to vector<8x256xf32>
    %126 = arith.mulf %123, %125 : vector<8x256xf32>
    %127 = vector.extract_strided_slice %114 {offsets = [0, 255], sizes = [8, 256], strides = [1, 1]} : vector<8x512xf32> to vector<8x256xf32>
    %c3_77 = arith.constant 3 : index
    %c0_78 = arith.constant 0 : index
    %128 = vector.load %arg5[%c3_77, %c0_78] : memref<9x256xf32, #tpu.memory_space<vmem>>, vector<1x256xf32>
    %129 = vector.broadcast %128 : vector<1x256xf32> to vector<8x256xf32>
    %130 = arith.mulf %127, %129 : vector<8x256xf32>
    %131 = vector.extract_strided_slice %114 {offsets = [0, 1], sizes = [8, 256], strides = [1, 1]} : vector<8x512xf32> to vector<8x256xf32>
    %c5_79 = arith.constant 5 : index
    %c0_80 = arith.constant 0 : index
    %132 = vector.load %arg5[%c5_79, %c0_80] : memref<9x256xf32, #tpu.memory_space<vmem>>, vector<1x256xf32>
    %133 = vector.broadcast %132 : vector<1x256xf32> to vector<8x256xf32>
    %134 = arith.mulf %131, %133 : vector<8x256xf32>
    %135 = vector.extract_strided_slice %114 {offsets = [0, 15], sizes = [8, 256], strides = [1, 1]} : vector<8x512xf32> to vector<8x256xf32>
    %c6_81 = arith.constant 6 : index
    %c0_82 = arith.constant 0 : index
    %136 = vector.load %arg5[%c6_81, %c0_82] : memref<9x256xf32, #tpu.memory_space<vmem>>, vector<1x256xf32>
    %137 = vector.broadcast %136 : vector<1x256xf32> to vector<8x256xf32>
    %138 = arith.mulf %135, %137 : vector<8x256xf32>
    %139 = vector.extract_strided_slice %114 {offsets = [0, 16], sizes = [8, 256], strides = [1, 1]} : vector<8x512xf32> to vector<8x256xf32>
    %c7_83 = arith.constant 7 : index
    %c0_84 = arith.constant 0 : index
    %140 = vector.load %arg5[%c7_83, %c0_84] : memref<9x256xf32, #tpu.memory_space<vmem>>, vector<1x256xf32>
    %141 = vector.broadcast %140 : vector<1x256xf32> to vector<8x256xf32>
    %142 = arith.mulf %139, %141 : vector<8x256xf32>
    %143 = vector.extract_strided_slice %114 {offsets = [0, 17], sizes = [8, 256], strides = [1, 1]} : vector<8x512xf32> to vector<8x256xf32>
    %c8_85 = arith.constant 8 : index
    %c0_86 = arith.constant 0 : index
    %144 = vector.load %arg5[%c8_85, %c0_86] : memref<9x256xf32, #tpu.memory_space<vmem>>, vector<1x256xf32>
    %145 = vector.broadcast %144 : vector<1x256xf32> to vector<8x256xf32>
    %146 = arith.mulf %143, %145 : vector<8x256xf32>
    %147 = tpu.concatenate %118, %122, %126, %130, %113, %134, %138, %142, %146 in 0 : vector<8x256xf32>, vector<8x256xf32>, vector<8x256xf32>, vector<8x256xf32>, vector<8x256xf32>, vector<8x256xf32>, vector<8x256xf32>, vector<8x256xf32>, vector<8x256xf32> -> vector<72x256xf32>
    %c0_87 = arith.constant 0 : index
    %c0_88 = arith.constant 0 : index
    %148 = vector.load %arg17[%c0_87, %c0_88] : memref<4x72xf32, #tpu.memory_space<vmem>>, vector<4x72xf32>
    %cst_89 = arith.constant dense<0.000000e+00> : vector<4x256xf32>
    %149 = tpu.matmul %148, %147, %cst_89 {dimension_numbers = #tpu.dot_dimension_numbers<[1], [0], [0], [1], [0, 0, 1, 1], [], []>} : vector<4x72xf32>, vector<72x256xf32>, vector<4x256xf32> -> vector<4x256xf32>
    %c12 = arith.constant 12 : index
    %c0_90 = arith.constant 0 : index
    %150 = vector.load %arg34[%c12, %c0_90] : memref<16x256xf32, #tpu.memory_space<vmem>>, vector<4x256xf32>
    tpu.vector_store %arg34[%c12, %c0_90], %149 {strides = array<i32>} : memref<16x256xf32, #tpu.memory_space<vmem>>, vector<4x256xf32>,
    %c0_91 = arith.constant 0 : index
    %c0_92 = arith.constant 0 : index
    %151 = vector.load %arg34[%c0_91, %c0_92] : memref<16x256xf32, #tpu.memory_space<vmem>>, vector<16x256xf32>
    %c0_93 = arith.constant 0 : index
    %c0_94 = arith.constant 0 : index
    %152 = vector.load %arg18[%c0_93, %c0_94] : memref<16x1xf32, #tpu.memory_space<vmem>>, vector<16x1xf32>
    %153 = vector.broadcast %152 : vector<16x1xf32> to vector<16x256xf32>
    %154 = arith.mulf %151, %153 : vector<16x256xf32>
    %c0_95 = arith.constant 0 : index
    %c0_96 = arith.constant 0 : index
    %155 = vector.load %arg19[%c0_95, %c0_96] : memref<16x1xf32, #tpu.memory_space<vmem>>, vector<16x1xf32>
    %156 = vector.broadcast %155 : vector<16x1xf32> to vector<16x256xf32>
    %157 = arith.addf %154, %156 : vector<16x256xf32>
    %cst_97 = arith.constant 0.000000e+00 : f32
    %158 = vector.broadcast %cst_97 : f32 to vector<16x256xf32>
    %159 = arith.maximumf %157, %158 : vector<16x256xf32>
    %c0_98 = arith.constant 0 : index
    %c0_99 = arith.constant 0 : index
    %160 = vector.load %arg20[%c0_98, %c0_99] : memref<8x16xf32, #tpu.memory_space<vmem>>, vector<8x16xf32>
    %cst_100 = arith.constant dense<0.000000e+00> : vector<8x256xf32>
    %161 = tpu.matmul %160, %159, %cst_100 {dimension_numbers = #tpu.dot_dimension_numbers<[1], [0], [0], [1], [0, 0, 1, 1], [], []>} : vector<8x16xf32>, vector<16x256xf32>, vector<8x256xf32> -> vector<8x256xf32>
    %c0_101 = arith.constant 0 : index
    %c0_102 = arith.constant 0 : index
    %162 = vector.load %arg21[%c0_101, %c0_102] : memref<256x64xf32, #tpu.memory_space<vmem>>, vector<256x64xf32>
    %cst_103 = arith.constant dense<0.000000e+00> : vector<8x64xf32>
    %163 = tpu.matmul %161, %162, %cst_103 {dimension_numbers = #tpu.dot_dimension_numbers<[1], [0], [0], [1], [0, 0, 1, 1], [], []>} : vector<8x256xf32>, vector<256x64xf32>, vector<8x64xf32> -> vector<8x64xf32>
    %c0_104 = arith.constant 0 : index
    %c0_105 = arith.constant 0 : index
    %164 = vector.load %arg35[%c0_104, %c0_105] : memref<12x64xf32, #tpu.memory_space<vmem>>, vector<8x64xf32>
    tpu.vector_store %arg35[%c0_104, %c0_105], %163 {strides = array<i32>} : memref<12x64xf32, #tpu.memory_space<vmem>>, vector<8x64xf32>,
    %c0_106 = arith.constant 0 : index
    %c0_107 = arith.constant 0 : index
    %165 = vector.load %arg35[%c0_106, %c0_107] : memref<12x64xf32, #tpu.memory_space<vmem>>, vector<8x64xf32>
    %c0_108 = arith.constant 0 : index
    %c0_109 = arith.constant 0 : index
    %166 = vector.load %arg23[%c0_108, %c0_109] : memref<8x1xf32, #tpu.memory_space<vmem>>, vector<8x1xf32>
    %167 = vector.broadcast %166 : vector<8x1xf32> to vector<8x64xf32>
    %168 = arith.mulf %165, %167 : vector<8x64xf32>
    %c0_110 = arith.constant 0 : index
    %c0_111 = arith.constant 0 : index
    %169 = vector.load %arg24[%c0_110, %c0_111] : memref<8x1xf32, #tpu.memory_space<vmem>>, vector<8x1xf32>
    %170 = vector.broadcast %169 : vector<8x1xf32> to vector<8x64xf32>
    %171 = arith.addf %168, %170 : vector<8x64xf32>
    %cst_112 = arith.constant 0.000000e+00 : f32
    %172 = vector.broadcast %cst_112 : f32 to vector<8x64xf32>
    %173 = arith.maximumf %171, %172 : vector<8x64xf32>
    %c0_113 = arith.constant 0 : index
    %c0_114 = arith.constant 0 : index
    %174 = vector.load %arg25[%c0_113, %c0_114] : memref<8x8xf32, #tpu.memory_space<vmem>>, vector<8x8xf32>
    %cst_115 = arith.constant dense<0.000000e+00> : vector<8x64xf32>
    %175 = tpu.matmul %174, %173, %cst_115 {dimension_numbers = #tpu.dot_dimension_numbers<[1], [0], [0], [1], [0, 0, 1, 1], [], []>} : vector<8x8xf32>, vector<8x64xf32>, vector<8x64xf32> -> vector<8x64xf32>
    %c0_116 = arith.constant 0 : index
    %c0_117 = arith.constant 0 : index
    %176 = vector.load %arg26[%c0_116, %c0_117] : memref<8x1xf32, #tpu.memory_space<vmem>>, vector<8x1xf32>
    %177 = vector.broadcast %176 : vector<8x1xf32> to vector<8x64xf32>
    %178 = arith.mulf %175, %177 : vector<8x64xf32>
    %c0_118 = arith.constant 0 : index
    %c0_119 = arith.constant 0 : index
    %179 = vector.load %arg27[%c0_118, %c0_119] : memref<8x1xf32, #tpu.memory_space<vmem>>, vector<8x1xf32>
    %180 = vector.broadcast %179 : vector<8x1xf32> to vector<8x64xf32>
    %181 = arith.addf %178, %180 : vector<8x64xf32>
    %cst_120 = arith.constant 0.000000e+00 : f32
    %182 = vector.broadcast %cst_120 : f32 to vector<8x64xf32>
    %183 = arith.maximumf %181, %182 : vector<8x64xf32>
    %184 = tpu.concatenate %183, %183 in 1 : vector<8x64xf32>, vector<8x64xf32> -> vector<8x128xf32>
    %185 = vector.extract_strided_slice %184 {offsets = [0, 55], sizes = [8, 64], strides = [1, 1]} : vector<8x128xf32> to vector<8x64xf32>
    %c0_121 = arith.constant 0 : index
    %c0_122 = arith.constant 0 : index
    %186 = vector.load %arg22[%c0_121, %c0_122] : memref<9x64xf32, #tpu.memory_space<vmem>>, vector<1x64xf32>
    %187 = vector.broadcast %186 : vector<1x64xf32> to vector<8x64xf32>
    %188 = arith.mulf %185, %187 : vector<8x64xf32>
    %189 = vector.extract_strided_slice %184 {offsets = [0, 56], sizes = [8, 64], strides = [1, 1]} : vector<8x128xf32> to vector<8x64xf32>
    %c1_123 = arith.constant 1 : index
    %c0_124 = arith.constant 0 : index
    %190 = vector.load %arg22[%c1_123, %c0_124] : memref<9x64xf32, #tpu.memory_space<vmem>>, vector<1x64xf32>
    %191 = vector.broadcast %190 : vector<1x64xf32> to vector<8x64xf32>
    %192 = arith.mulf %189, %191 : vector<8x64xf32>
    %193 = vector.extract_strided_slice %184 {offsets = [0, 57], sizes = [8, 64], strides = [1, 1]} : vector<8x128xf32> to vector<8x64xf32>
    %c2_125 = arith.constant 2 : index
    %c0_126 = arith.constant 0 : index
    %194 = vector.load %arg22[%c2_125, %c0_126] : memref<9x64xf32, #tpu.memory_space<vmem>>, vector<1x64xf32>
    %195 = vector.broadcast %194 : vector<1x64xf32> to vector<8x64xf32>
    %196 = arith.mulf %193, %195 : vector<8x64xf32>
    %197 = vector.extract_strided_slice %184 {offsets = [0, 63], sizes = [8, 64], strides = [1, 1]} : vector<8x128xf32> to vector<8x64xf32>
    %c3_127 = arith.constant 3 : index
    %c0_128 = arith.constant 0 : index
    %198 = vector.load %arg22[%c3_127, %c0_128] : memref<9x64xf32, #tpu.memory_space<vmem>>, vector<1x64xf32>
    %199 = vector.broadcast %198 : vector<1x64xf32> to vector<8x64xf32>
    %200 = arith.mulf %197, %199 : vector<8x64xf32>
    %201 = vector.extract_strided_slice %184 {offsets = [0, 1], sizes = [8, 64], strides = [1, 1]} : vector<8x128xf32> to vector<8x64xf32>
    %c5_129 = arith.constant 5 : index
    %c0_130 = arith.constant 0 : index
    %202 = vector.load %arg22[%c5_129, %c0_130] : memref<9x64xf32, #tpu.memory_space<vmem>>, vector<1x64xf32>
    %203 = vector.broadcast %202 : vector<1x64xf32> to vector<8x64xf32>
    %204 = arith.mulf %201, %203 : vector<8x64xf32>
    %205 = vector.extract_strided_slice %184 {offsets = [0, 7], sizes = [8, 64], strides = [1, 1]} : vector<8x128xf32> to vector<8x64xf32>
    %c6_131 = arith.constant 6 : index
    %c0_132 = arith.constant 0 : index
    %206 = vector.load %arg22[%c6_131, %c0_132] : memref<9x64xf32, #tpu.memory_space<vmem>>, vector<1x64xf32>
    %207 = vector.broadcast %206 : vector<1x64xf32> to vector<8x64xf32>
    %208 = arith.mulf %205, %207 : vector<8x64xf32>
    %209 = vector.extract_strided_slice %184 {offsets = [0, 8], sizes = [8, 64], strides = [1, 1]} : vector<8x128xf32> to vector<8x64xf32>
    %c7_133 = arith.constant 7 : index
    %c0_134 = arith.constant 0 : index
    %210 = vector.load %arg22[%c7_133, %c0_134] : memref<9x64xf32, #tpu.memory_space<vmem>>, vector<1x64xf32>
    %211 = vector.broadcast %210 : vector<1x64xf32> to vector<8x64xf32>
    %212 = arith.mulf %209, %211 : vector<8x64xf32>
    %213 = vector.extract_strided_slice %184 {offsets = [0, 9], sizes = [8, 64], strides = [1, 1]} : vector<8x128xf32> to vector<8x64xf32>
    %c8_135 = arith.constant 8 : index
    %c0_136 = arith.constant 0 : index
    %214 = vector.load %arg22[%c8_135, %c0_136] : memref<9x64xf32, #tpu.memory_space<vmem>>, vector<1x64xf32>
    %215 = vector.broadcast %214 : vector<1x64xf32> to vector<8x64xf32>
    %216 = arith.mulf %213, %215 : vector<8x64xf32>
    %217 = tpu.concatenate %188, %192, %196, %200, %183, %204, %208, %212, %216 in 0 : vector<8x64xf32>, vector<8x64xf32>, vector<8x64xf32>, vector<8x64xf32>, vector<8x64xf32>, vector<8x64xf32>, vector<8x64xf32>, vector<8x64xf32>, vector<8x64xf32> -> vector<72x64xf32>
    %c0_137 = arith.constant 0 : index
    %c0_138 = arith.constant 0 : index
    %218 = vector.load %arg28[%c0_137, %c0_138] : memref<4x72xf32, #tpu.memory_space<vmem>>, vector<4x72xf32>
    %cst_139 = arith.constant dense<0.000000e+00> : vector<4x64xf32>
    %219 = tpu.matmul %218, %217, %cst_139 {dimension_numbers = #tpu.dot_dimension_numbers<[1], [0], [0], [1], [0, 0, 1, 1], [], []>} : vector<4x72xf32>, vector<72x64xf32>, vector<4x64xf32> -> vector<4x64xf32>
    %c8_140 = arith.constant 8 : index
    %c0_141 = arith.constant 0 : index
    %220 = vector.load %arg35[%c8_140, %c0_141] : memref<12x64xf32, #tpu.memory_space<vmem>>, vector<4x64xf32>
    tpu.vector_store %arg35[%c8_140, %c0_141], %219 {strides = array<i32>} : memref<12x64xf32, #tpu.memory_space<vmem>>, vector<4x64xf32>,
    %c0_142 = arith.constant 0 : index
    %c0_143 = arith.constant 0 : index
    %221 = vector.load %arg35[%c0_142, %c0_143] : memref<12x64xf32, #tpu.memory_space<vmem>>, vector<12x64xf32>
    %c0_144 = arith.constant 0 : index
    %c0_145 = arith.constant 0 : index
    %222 = vector.load %arg29[%c0_144, %c0_145] : memref<12x1xf32, #tpu.memory_space<vmem>>, vector<12x1xf32>
    %223 = vector.broadcast %222 : vector<12x1xf32> to vector<12x64xf32>
    %224 = arith.mulf %221, %223 : vector<12x64xf32>
    %c0_146 = arith.constant 0 : index
    %c0_147 = arith.constant 0 : index
    %225 = vector.load %arg30[%c0_146, %c0_147] : memref<12x1xf32, #tpu.memory_space<vmem>>, vector<12x1xf32>
    %226 = vector.broadcast %225 : vector<12x1xf32> to vector<12x64xf32>
    %227 = arith.addf %224, %226 : vector<12x64xf32>
    %cst_148 = arith.constant 0.000000e+00 : f32
    %228 = vector.broadcast %cst_148 : f32 to vector<12x64xf32>
    %229 = arith.maximumf %227, %228 : vector<12x64xf32>
    %c0_149 = arith.constant 0 : index
    %c0_150 = arith.constant 0 : index
    %230 = vector.load %arg31[%c0_149, %c0_150] : memref<10x12xf32, #tpu.memory_space<vmem>>, vector<10x12xf32>
    %cst_151 = arith.constant dense<0.000000e+00> : vector<10x64xf32>
    %231 = tpu.matmul %230, %229, %cst_151 {dimension_numbers = #tpu.dot_dimension_numbers<[1], [0], [0], [1], [0, 0, 1, 1], [], []>} : vector<10x12xf32>, vector<12x64xf32>, vector<10x64xf32> -> vector<10x64xf32>
    %cst_152 = arith.constant dense<0.000000e+00> : vector<10xf32>
    %232 = vector.multi_reduction <add>, %231, %cst_152 [1] : vector<10x64xf32> to vector<10xf32>
    %233 = vector.shape_cast %232 : vector<10xf32> to vector<10x1xf32>
    %cst_153 = arith.constant 6.400000e+01 : f32
    %234 = vector.broadcast %cst_153 : f32 to vector<10x1xf32>
    %235 = arith.divf %233, %234 : vector<10x1xf32>
    %c0_154 = arith.constant 0 : index
    %c0_155 = arith.constant 0 : index
    %236 = vector.load %arg32[%c0_154, %c0_155] : memref<10x1xf32, #tpu.memory_space<vmem>>, vector<10x1xf32>
    %237 = arith.addf %235, %236 : vector<10x1xf32>
    %c0_156 = arith.constant 0 : index
    %c0_157 = arith.constant 0 : index
    %c0_158 = arith.constant 0 : index
    %238 = vector.load %arg33[%c0_156, %c0_157, %c0_158] : memref<1x10x1xf32, #tpu.memory_space<vmem>>, vector<1x10x1xf32>
    %239 = vector.shape_cast %238 : vector<1x10x1xf32> to vector<10x1xf32>
    %240 = vector.shape_cast %237 : vector<10x1xf32> to vector<1x10x1xf32>
    tpu.vector_store %arg33[%c0_156, %c0_157, %c0_158], %240 {strides = array<i32>} : memref<1x10x1xf32, #tpu.memory_space<vmem>>, vector<1x10x1xf32>,
    return
  }
  func.func @transform_0(%arg0: i32) -> (i32, i32, i32) {
    %c0_i32 = arith.constant 0 : i32
    %c0_i32_0 = arith.constant 0 : i32
    %c0_i32_1 = arith.constant 0 : i32
    return %arg0, %c0_i32, %c0_i32_0 : i32, i32, i32
  }
  func.func @transform_1(%arg0: i32) -> (i32, i32) {
    %c0_i32 = arith.constant 0 : i32
    %c0_i32_0 = arith.constant 0 : i32
    %c0_i32_1 = arith.constant 0 : i32
    return %c0_i32, %c0_i32_0 : i32, i32
  }
  func.func @transform_2(%arg0: i32) -> (i32, i32) {
    %c0_i32 = arith.constant 0 : i32
    %c0_i32_0 = arith.constant 0 : i32
    %c0_i32_1 = arith.constant 0 : i32
    return %c0_i32, %c0_i32_0 : i32, i32
  }
  func.func @transform_3(%arg0: i32) -> (i32, i32) {
    %c0_i32 = arith.constant 0 : i32
    %c0_i32_0 = arith.constant 0 : i32
    %c0_i32_1 = arith.constant 0 : i32
    return %c0_i32, %c0_i32_0 : i32, i32
  }
  func.func @transform_4(%arg0: i32) -> (i32, i32) {
    %c0_i32 = arith.constant 0 : i32
    %c0_i32_0 = arith.constant 0 : i32
    %c0_i32_1 = arith.constant 0 : i32
    return %c0_i32, %c0_i32_0 : i32, i32
  }
  func.func @transform_5(%arg0: i32) -> (i32, i32) {
    %c0_i32 = arith.constant 0 : i32
    %c0_i32_0 = arith.constant 0 : i32
    %c0_i32_1 = arith.constant 0 : i32
    return %c0_i32, %c0_i32_0 : i32, i32
  }
  func.func @transform_6(%arg0: i32) -> (i32, i32) {
    %c0_i32 = arith.constant 0 : i32
    %c0_i32_0 = arith.constant 0 : i32
    %c0_i32_1 = arith.constant 0 : i32
    return %c0_i32, %c0_i32_0 : i32, i32
  }
  func.func @transform_7(%arg0: i32) -> (i32, i32) {
    %c0_i32 = arith.constant 0 : i32
    %c0_i32_0 = arith.constant 0 : i32
    %c0_i32_1 = arith.constant 0 : i32
    return %c0_i32, %c0_i32_0 : i32, i32
  }
  func.func @transform_8(%arg0: i32) -> (i32, i32) {
    %c0_i32 = arith.constant 0 : i32
    %c0_i32_0 = arith.constant 0 : i32
    %c0_i32_1 = arith.constant 0 : i32
    return %c0_i32, %c0_i32_0 : i32, i32
  }
  func.func @transform_9(%arg0: i32) -> (i32, i32) {
    %c0_i32 = arith.constant 0 : i32
    %c0_i32_0 = arith.constant 0 : i32
    %c0_i32_1 = arith.constant 0 : i32
    return %c0_i32, %c0_i32_0 : i32, i32
  }
  func.func @transform_10(%arg0: i32) -> (i32, i32) {
    %c0_i32 = arith.constant 0 : i32
    %c0_i32_0 = arith.constant 0 : i32
    %c0_i32_1 = arith.constant 0 : i32
    return %c0_i32, %c0_i32_0 : i32, i32
  }
  func.func @transform_11(%arg0: i32) -> (i32, i32) {
    %c0_i32 = arith.constant 0 : i32
    %c0_i32_0 = arith.constant 0 : i32
    %c0_i32_1 = arith.constant 0 : i32
    return %c0_i32, %c0_i32_0 : i32, i32
  }
  func.func @transform_12(%arg0: i32) -> (i32, i32) {
    %c0_i32 = arith.constant 0 : i32
    %c0_i32_0 = arith.constant 0 : i32
    %c0_i32_1 = arith.constant 0 : i32
    return %c0_i32, %c0_i32_0 : i32, i32
  }
  func.func @transform_13(%arg0: i32) -> (i32, i32) {
    %c0_i32 = arith.constant 0 : i32
    %c0_i32_0 = arith.constant 0 : i32
    %c0_i32_1 = arith.constant 0 : i32
    return %c0_i32, %c0_i32_0 : i32, i32
  }
  func.func @transform_14(%arg0: i32) -> (i32, i32) {
    %c0_i32 = arith.constant 0 : i32
    %c0_i32_0 = arith.constant 0 : i32
    %c0_i32_1 = arith.constant 0 : i32
    return %c0_i32, %c0_i32_0 : i32, i32
  }
  func.func @transform_15(%arg0: i32) -> (i32, i32) {
    %c0_i32 = arith.constant 0 : i32
    %c0_i32_0 = arith.constant 0 : i32
    %c0_i32_1 = arith.constant 0 : i32
    return %c0_i32, %c0_i32_0 : i32, i32
  }
  func.func @transform_16(%arg0: i32) -> (i32, i32) {
    %c0_i32 = arith.constant 0 : i32
    %c0_i32_0 = arith.constant 0 : i32
    %c0_i32_1 = arith.constant 0 : i32
    return %c0_i32, %c0_i32_0 : i32, i32
  }
  func.func @transform_17(%arg0: i32) -> (i32, i32) {
    %c0_i32 = arith.constant 0 : i32
    %c0_i32_0 = arith.constant 0 : i32
    %c0_i32_1 = arith.constant 0 : i32
    return %c0_i32, %c0_i32_0 : i32, i32
  }
  func.func @transform_18(%arg0: i32) -> (i32, i32) {
    %c0_i32 = arith.constant 0 : i32
    %c0_i32_0 = arith.constant 0 : i32
    %c0_i32_1 = arith.constant 0 : i32
    return %c0_i32, %c0_i32_0 : i32, i32
  }
  func.func @transform_19(%arg0: i32) -> (i32, i32) {
    %c0_i32 = arith.constant 0 : i32
    %c0_i32_0 = arith.constant 0 : i32
    %c0_i32_1 = arith.constant 0 : i32
    return %c0_i32, %c0_i32_0 : i32, i32
  }
  func.func @transform_20(%arg0: i32) -> (i32, i32) {
    %c0_i32 = arith.constant 0 : i32
    %c0_i32_0 = arith.constant 0 : i32
    %c0_i32_1 = arith.constant 0 : i32
    return %c0_i32, %c0_i32_0 : i32, i32
  }
  func.func @transform_21(%arg0: i32) -> (i32, i32) {
    %c0_i32 = arith.constant 0 : i32
    %c0_i32_0 = arith.constant 0 : i32
    %c0_i32_1 = arith.constant 0 : i32
    return %c0_i32, %c0_i32_0 : i32, i32
  }
  func.func @transform_22(%arg0: i32) -> (i32, i32) {
    %c0_i32 = arith.constant 0 : i32
    %c0_i32_0 = arith.constant 0 : i32
    %c0_i32_1 = arith.constant 0 : i32
    return %c0_i32, %c0_i32_0 : i32, i32
  }
  func.func @transform_23(%arg0: i32) -> (i32, i32) {
    %c0_i32 = arith.constant 0 : i32
    %c0_i32_0 = arith.constant 0 : i32
    %c0_i32_1 = arith.constant 0 : i32
    return %c0_i32, %c0_i32_0 : i32, i32
  }
  func.func @transform_24(%arg0: i32) -> (i32, i32) {
    %c0_i32 = arith.constant 0 : i32
    %c0_i32_0 = arith.constant 0 : i32
    %c0_i32_1 = arith.constant 0 : i32
    return %c0_i32, %c0_i32_0 : i32, i32
  }
  func.func @transform_25(%arg0: i32) -> (i32, i32) {
    %c0_i32 = arith.constant 0 : i32
    %c0_i32_0 = arith.constant 0 : i32
    %c0_i32_1 = arith.constant 0 : i32
    return %c0_i32, %c0_i32_0 : i32, i32
  }
  func.func @transform_26(%arg0: i32) -> (i32, i32) {
    %c0_i32 = arith.constant 0 : i32
    %c0_i32_0 = arith.constant 0 : i32
    %c0_i32_1 = arith.constant 0 : i32
    return %c0_i32, %c0_i32_0 : i32, i32
  }
  func.func @transform_27(%arg0: i32) -> (i32, i32) {
    %c0_i32 = arith.constant 0 : i32
    %c0_i32_0 = arith.constant 0 : i32
    %c0_i32_1 = arith.constant 0 : i32
    return %c0_i32, %c0_i32_0 : i32, i32
  }
  func.func @transform_28(%arg0: i32) -> (i32, i32) {
    %c0_i32 = arith.constant 0 : i32
    %c0_i32_0 = arith.constant 0 : i32
    %c0_i32_1 = arith.constant 0 : i32
    return %c0_i32, %c0_i32_0 : i32, i32
  }
  func.func @transform_29(%arg0: i32) -> (i32, i32) {
    %c0_i32 = arith.constant 0 : i32
    %c0_i32_0 = arith.constant 0 : i32
    %c0_i32_1 = arith.constant 0 : i32
    return %c0_i32, %c0_i32_0 : i32, i32
  }
  func.func @transform_30(%arg0: i32) -> (i32, i32) {
    %c0_i32 = arith.constant 0 : i32
    %c0_i32_0 = arith.constant 0 : i32
    %c0_i32_1 = arith.constant 0 : i32
    return %c0_i32, %c0_i32_0 : i32, i32
  }
  func.func @transform_31(%arg0: i32) -> (i32, i32) {
    %c0_i32 = arith.constant 0 : i32
    %c0_i32_0 = arith.constant 0 : i32
    %c0_i32_1 = arith.constant 0 : i32
    return %c0_i32, %c0_i32_0 : i32, i32
  }
  func.func @transform_32(%arg0: i32) -> (i32, i32, i32) {
    %c0_i32 = arith.constant 0 : i32
    %c0_i32_0 = arith.constant 0 : i32
    %c0_i32_1 = arith.constant 0 : i32
    return %arg0, %c0_i32, %c0_i32_0 : i32, i32, i32
  }
}

</mosaic_0001>

<llo_original>
// kernel: tpu_custom_call.1
$region0: #{tpu_custom_call.1}
  #allocation0 [shape = 'u32[]', space=smem, size = 0x4, offset = 0x4, fixed_abs, tag = 'smem constant byte address 0x4 - core index']
  #allocation1 [shape = 'u32[72,128]{1,0:T(1,128)}', space=vmem, size = 0x9000, scoped, tag = 'internal scratch']
  #allocation2 [shape = 'f32[16,256]{1,0:T(8,128)}', space=vmem, size = 0x4000, scoped, tag = 'scratch operand']
  #allocation3 [shape = 'f32[12,64]{1,0:T(8,128)}', space=vmem, size = 0x2000, scoped, tag = 'scratch operand']
  %s0 = inlined_call_operand.smem [shape: u32[33], index: -1, kind: input, shape index: {}]
  %s1 = sld [smem:[%s0]]
  %s2 = scalar_lea.smem %s0, 1
  %s3 = sld [smem:[%s2]]
  %s4 = scalar_lea.smem %s0, 2
  %s5 = sld [smem:[%s4]]
  %s6 = scalar_lea.smem %s0, 3
  %s7 = sld [smem:[%s6]]
  %s8 = scalar_lea.smem %s0, 4
  %s9 = sld [smem:[%s8]]
  %s10 = scalar_lea.smem %s0, 5
  %s11 = sld [smem:[%s10]]
  %s12 = scalar_lea.smem %s0, 6
  %s13 = sld [smem:[%s12]]
  %s14 = scalar_lea.smem %s0, 7
  %s15 = sld [smem:[%s14]]
  %s16 = scalar_lea.smem %s0, 8
  %s17 = sld [smem:[%s16]]
  %s18 = scalar_lea.smem %s0, 9
  %s19 = sld [smem:[%s18]]
  %s20 = scalar_lea.smem %s0, 10
  %s21 = sld [smem:[%s20]]
  %s22 = scalar_lea.smem %s0, 11
  %s23 = sld [smem:[%s22]]
  %s24 = scalar_lea.smem %s0, 12
  %s25 = sld [smem:[%s24]]
  %s26 = scalar_lea.smem %s0, 13
  %s27 = sld [smem:[%s26]]
  %s28 = scalar_lea.smem %s0, 14
  %s29 = sld [smem:[%s28]]
  %s30 = scalar_lea.smem %s0, 15
  %s31 = sld [smem:[%s30]]
  %s32 = scalar_lea.smem %s0, 16
  %s33 = sld [smem:[%s32]]
  %s34 = scalar_lea.smem %s0, 17
  %s35 = sld [smem:[%s34]]
  %s36 = scalar_lea.smem %s0, 18
  %s37 = sld [smem:[%s36]]
  %s38 = scalar_lea.smem %s0, 19
  %s39 = sld [smem:[%s38]]
  %s40 = scalar_lea.smem %s0, 20
  %s41 = sld [smem:[%s40]]
  %s42 = scalar_lea.smem %s0, 21
  %s43 = sld [smem:[%s42]]
  %s44 = scalar_lea.smem %s0, 22
  %s45 = sld [smem:[%s44]]
  %s46 = scalar_lea.smem %s0, 23
  %s47 = sld [smem:[%s46]]
  %s48 = scalar_lea.smem %s0, 24
  %s49 = sld [smem:[%s48]]
  %s50 = scalar_lea.smem %s0, 25
  %s51 = sld [smem:[%s50]]
  %s52 = scalar_lea.smem %s0, 26
  %s53 = sld [smem:[%s52]]
  %s54 = scalar_lea.smem %s0, 27
  %s55 = sld [smem:[%s54]]
  %s56 = scalar_lea.smem %s0, 28
  %s57 = sld [smem:[%s56]]
  %s58 = scalar_lea.smem %s0, 29
  %s59 = sld [smem:[%s58]]
  %s60 = scalar_lea.smem %s0, 30
  %s61 = sld [smem:[%s60]]
  %s62 = scalar_lea.smem %s0, 31
  %s63 = sld [smem:[%s62]]
  %s64 = scalar_lea.smem %s0, 32
  %s65 = sld [smem:[%s64]]
  %s66 = sld [smem:[#allocation0]]
  $region161: #{tpu_custom_call.1} parent=0
    _
  %s68 = ssub.s32 1, %s66
  %s69 = scalar_select 0, %s68, %s66
  loop: start=0, step=1, limit=4
  $region2: #{tpu_custom_call.1} parent=0 // loop_pre_header
    _
  $region3: #{tpu_custom_call.1} parent=0 // loop_header
    %s71 = sphi 0, %s75
    %p72 = scmp.ge.s32.totalorder %s71, 4
    %s81 = sphi 0, %s83
    %s84 = sphi 0, %s81
    %s85 = sphi 0, %s84
    %s101 = sphi 0, %s85
    %s105 = sphi 0, %s105
    %s107 = sphi 0, %s105
    %s108 = sphi 0, %s107
    %s122 = sphi 0, %s108
    %s126 = sphi 0, %s126
    %s128 = sphi 0, %s126
    %s129 = sphi 0, %s128
    %s143 = sphi 0, %s129
    %s147 = sphi 0, %s147
    %s149 = sphi 0, %s147
    %s150 = sphi 0, %s149
    %s164 = sphi 0, %s150
    %s168 = sphi 0, %s168
    %s170 = sphi 0, %s168
    %s171 = sphi 0, %s170
    %s185 = sphi 0, %s171
    %s189 = sphi 0, %s189
    %s191 = sphi 0, %s189
    %s192 = sphi 0, %s191
    %s206 = sphi 0, %s192
    %s210 = sphi 0, %s210
    %s212 = sphi 0, %s210
    %s213 = sphi 0, %s212
    %s227 = sphi 0, %s213
    %s231 = sphi 0, %s231
    %s233 = sphi 0, %s231
    %s234 = sphi 0, %s233
    %s248 = sphi 0, %s234
    %s252 = sphi 0, %s252
    %s254 = sphi 0, %s252
    %s255 = sphi 0, %s254
    %s269 = sphi 0, %s255
    %s273 = sphi 0, %s273
    %s275 = sphi 0, %s273
    %s276 = sphi 0, %s275
    %s290 = sphi 0, %s276
    %s294 = sphi 0, %s294
    %s296 = sphi 0, %s294
    %s297 = sphi 0, %s296
    %s311 = sphi 0, %s297
    %s315 = sphi 0, %s315
    %s317 = sphi 0, %s315
    %s318 = sphi 0, %s317
    %s332 = sphi 0, %s318
    %s336 = sphi 0, %s336
    %s338 = sphi 0, %s336
    %s339 = sphi 0, %s338
    %s353 = sphi 0, %s339
    %s357 = sphi 0, %s357
    %s359 = sphi 0, %s357
    %s360 = sphi 0, %s359
    %s374 = sphi 0, %s360
    %s378 = sphi 0, %s378
    %s380 = sphi 0, %s378
    %s381 = sphi 0, %s380
    %s395 = sphi 0, %s381
    %s399 = sphi 0, %s399
    %s401 = sphi 0, %s399
    %s402 = sphi 0, %s401
    %s416 = sphi 0, %s402
    %s420 = sphi 0, %s420
    %s422 = sphi 0, %s420
    %s423 = sphi 0, %s422
    %s437 = sphi 0, %s423
    %s441 = sphi 0, %s441
    %s443 = sphi 0, %s441
    %s444 = sphi 0, %s443
    %s458 = sphi 0, %s444
    %s462 = sphi 0, %s462
    %s464 = sphi 0, %s462
    %s465 = sphi 0, %s464
    %s479 = sphi 0, %s465
    %s483 = sphi 0, %s483
    %s485 = sphi 0, %s483
    %s486 = sphi 0, %s485
    %s500 = sphi 0, %s486
    %s504 = sphi 0, %s504
    %s506 = sphi 0, %s504
    %s507 = sphi 0, %s506
    %s521 = sphi 0, %s507
    %s525 = sphi 0, %s525
    %s527 = sphi 0, %s525
    %s528 = sphi 0, %s527
    %s542 = sphi 0, %s528
    %s546 = sphi 0, %s546
    %s548 = sphi 0, %s546
    %s549 = sphi 0, %s548
    %s563 = sphi 0, %s549
    %s567 = sphi 0, %s567
    %s569 = sphi 0, %s567
    %s570 = sphi 0, %s569
    %s584 = sphi 0, %s570
    %s588 = sphi 0, %s588
    %s590 = sphi 0, %s588
    %s591 = sphi 0, %s590
    %s605 = sphi 0, %s591
    %s609 = sphi 0, %s609
    %s611 = sphi 0, %s609
    %s612 = sphi 0, %s611
    %s626 = sphi 0, %s612
    %s630 = sphi 0, %s630
    %s632 = sphi 0, %s630
    %s633 = sphi 0, %s632
    %s647 = sphi 0, %s633
    %s651 = sphi 0, %s651
    %s653 = sphi 0, %s651
    %s654 = sphi 0, %s653
    %s668 = sphi 0, %s654
    %s672 = sphi 0, %s672
    %s674 = sphi 0, %s672
    %s675 = sphi 0, %s674
    %s689 = sphi 0, %s675
    %s693 = sphi 0, %s693
    %s695 = sphi 0, %s693
    %s696 = sphi 0, %s695
    %s710 = sphi 0, %s696
    %s714 = sphi 0, %s714
    %s716 = sphi 0, %s714
    %s717 = sphi 0, %s716
    %s731 = sphi 0, %s717
    %s735 = sphi 0, %s735
    %s737 = sphi 0, %s735
    %s738 = sphi 0, %s737
    %s752 = sphi 0, %s738
    %s758 = sphi 0, %s760
    %s761 = sphi 0, %s758
    %s762 = sphi 0, %s761
    %s778 = sphi 0, %s762
  $region4: #{tpu_custom_call.1} parent=0 // loop_header_branch
    %74 = sbr.rel (%p72) target = $region8
  $region5: #{tpu_custom_call.1} parent=0 // loop_body
    %s76 = ssub.s32 %s71, 1
    %s77 = ssub.s32 %s71, 2
    %s78 = sadd.s32 %s71, 1
    %s79 = ssub.s32 %s71, %s78
    %p80 = scmp.eq.s32.totalorder %s79, 0
    %s82 = sadd.s32 %s81, 1
    %s83 = scalar_select %p80, %s81, %s82
    %p86 = pneg %p80
    %p87 = scmp.eq.s32.totalorder %s71, 1
    %p88 = por %p86, %p87
    %p89 = scmp.ne.s32.totalorder %s81, %s84
    %p90 = scmp.eq.s32.totalorder %s71, 0
    %p91 = por %p89, %p90
    %p92 = scmp.ne.s32.totalorder %s81, %s84
    %p93 = scmp.eq.s32.totalorder %s76, 1
    %p94 = por %p92, %p93
    %p95 = scmp.ne.s32.totalorder %s84, %s85
    %p96 = scmp.eq.s32.totalorder %s76, 0
    %p97 = por %p95, %p96
    %p98 = scmp.ne.s32.totalorder %s84, %s85
    %p99 = scmp.eq.s32.totalorder %s77, 1
    %p100 = por %p98, %p99
    %p102 = scmp.ne.s32.totalorder %s85, %s101
    %p103 = scmp.eq.s32.totalorder %s77, 0
    %p104 = por %p102, %p103
    %s106 = sadd.s32 %s105, 1
    %p109 = scmp.eq.s32.totalorder %s71, 1
    %p110 = scmp.ne.s32.totalorder %s105, %s107
    %p111 = scmp.eq.s32.totalorder %s71, 0
    %p112 = por %p110, %p111
    %p113 = scmp.ne.s32.totalorder %s105, %s107
    %p114 = scmp.eq.s32.totalorder %s76, 1
    %p115 = por %p113, %p114
    %p116 = scmp.ne.s32.totalorder %s107, %s108
    %p117 = scmp.eq.s32.totalorder %s76, 0
    %p118 = por %p116, %p117
    %p119 = scmp.ne.s32.totalorder %s107, %s108
    %p120 = scmp.eq.s32.totalorder %s77, 1
    %p121 = por %p119, %p120
    %p123 = scmp.ne.s32.totalorder %s108, %s122
    %p124 = scmp.eq.s32.totalorder %s77, 0
    %p125 = por %p123, %p124
    %s127 = sadd.s32 %s126, 1
    %p130 = scmp.eq.s32.totalorder %s71, 1
    %p131 = scmp.ne.s32.totalorder %s126, %s128
    %p132 = scmp.eq.s32.totalorder %s71, 0
    %p133 = por %p131, %p132
    %p134 = scmp.ne.s32.totalorder %s126, %s128
    %p135 = scmp.eq.s32.totalorder %s76, 1
    %p136 = por %p134, %p135
    %p137 = scmp.ne.s32.totalorder %s128, %s129
    %p138 = scmp.eq.s32.totalorder %s76, 0
    %p139 = por %p137, %p138
    %p140 = scmp.ne.s32.totalorder %s128, %s129
    %p141 = scmp.eq.s32.totalorder %s77, 1
    %p142 = por %p140, %p141
    %p144 = scmp.ne.s32.totalorder %s129, %s143
    %p145 = scmp.eq.s32.totalorder %s77, 0
    %p146 = por %p144, %p145
    %s148 = sadd.s32 %s147, 1
    %p151 = scmp.eq.s32.totalorder %s71, 1
    %p152 = scmp.ne.s32.totalorder %s147, %s149
    %p153 = scmp.eq.s32.totalorder %s71, 0
    %p154 = por %p152, %p153
    %p155 = scmp.ne.s32.totalorder %s147, %s149
    %p156 = scmp.eq.s32.totalorder %s76, 1
    %p157 = por %p155, %p156
    %p158 = scmp.ne.s32.totalorder %s149, %s150
    %p159 = scmp.eq.s32.totalorder %s76, 0
    %p160 = por %p158, %p159
    %p161 = scmp.ne.s32.totalorder %s149, %s150
    %p162 = scmp.eq.s32.totalorder %s77, 1
    %p163 = por %p161, %p162
    %p165 = scmp.ne.s32.totalorder %s150, %s164
    %p166 = scmp.eq.s32.totalorder %s77, 0
    %p167 = por %p165, %p166
    %s169 = sadd.s32 %s168, 1
    %p172 = scmp.eq.s32.totalorder %s71, 1
    %p173 = scmp.ne.s32.totalorder %s168, %s170
    %p174 = scmp.eq.s32.totalorder %s71, 0
    %p175 = por %p173, %p174
    %p176 = scmp.ne.s32.totalorder %s168, %s170
    %p177 = scmp.eq.s32.totalorder %s76, 1
    %p178 = por %p176, %p177
    %p179 = scmp.ne.s32.totalorder %s170, %s171
    %p180 = scmp.eq.s32.totalorder %s76, 0
    %p181 = por %p179, %p180
    %p182 = scmp.ne.s32.totalorder %s170, %s171
    %p183 = scmp.eq.s32.totalorder %s77, 1
    %p184 = por %p182, %p183
    %p186 = scmp.ne.s32.totalorder %s171, %s185
    %p187 = scmp.eq.s32.totalorder %s77, 0
    %p188 = por %p186, %p187
    %s190 = sadd.s32 %s189, 1
    %p193 = scmp.eq.s32.totalorder %s71, 1
    %p194 = scmp.ne.s32.totalorder %s189, %s191
    %p195 = scmp.eq.s32.totalorder %s71, 0
    %p196 = por %p194, %p195
    %p197 = scmp.ne.s32.totalorder %s189, %s191
    %p198 = scmp.eq.s32.totalorder %s76, 1
    %p199 = por %p197, %p198
    %p200 = scmp.ne.s32.totalorder %s191, %s192
    %p201 = scmp.eq.s32.totalorder %s76, 0
    %p202 = por %p200, %p201
    %p203 = scmp.ne.s32.totalorder %s191, %s192
    %p204 = scmp.eq.s32.totalorder %s77, 1
    %p205 = por %p203, %p204
    %p207 = scmp.ne.s32.totalorder %s192, %s206
    %p208 = scmp.eq.s32.totalorder %s77, 0
    %p209 = por %p207, %p208
    %s211 = sadd.s32 %s210, 1
    %p214 = scmp.eq.s32.totalorder %s71, 1
    %p215 = scmp.ne.s32.totalorder %s210, %s212
    %p216 = scmp.eq.s32.totalorder %s71, 0
    %p217 = por %p215, %p216
    %p218 = scmp.ne.s32.totalorder %s210, %s212
    %p219 = scmp.eq.s32.totalorder %s76, 1
    %p220 = por %p218, %p219
    %p221 = scmp.ne.s32.totalorder %s212, %s213
    %p222 = scmp.eq.s32.totalorder %s76, 0
    %p223 = por %p221, %p222
    %p224 = scmp.ne.s32.totalorder %s212, %s213
    %p225 = scmp.eq.s32.totalorder %s77, 1
    %p226 = por %p224, %p225
    %p228 = scmp.ne.s32.totalorder %s213, %s227
    %p229 = scmp.eq.s32.totalorder %s77, 0
    %p230 = por %p228, %p229
    %s232 = sadd.s32 %s231, 1
    %p235 = scmp.eq.s32.totalorder %s71, 1
    %p236 = scmp.ne.s32.totalorder %s231, %s233
    %p237 = scmp.eq.s32.totalorder %s71, 0
    %p238 = por %p236, %p237
    %p239 = scmp.ne.s32.totalorder %s231, %s233
    %p240 = scmp.eq.s32.totalorder %s76, 1
    %p241 = por %p239, %p240
    %p242 = scmp.ne.s32.totalorder %s233, %s234
    %p243 = scmp.eq.s32.totalorder %s76, 0
    %p244 = por %p242, %p243
    %p245 = scmp.ne.s32.totalorder %s233, %s234
    %p246 = scmp.eq.s32.totalorder %s77, 1
    %p247 = por %p245, %p246
    %p249 = scmp.ne.s32.totalorder %s234, %s248
    %p250 = scmp.eq.s32.totalorder %s77, 0
    %p251 = por %p249, %p250
    %s253 = sadd.s32 %s252, 1
    %p256 = scmp.eq.s32.totalorder %s71, 1
    %p257 = scmp.ne.s32.totalorder %s252, %s254
    %p258 = scmp.eq.s32.totalorder %s71, 0
    %p259 = por %p257, %p258
    %p260 = scmp.ne.s32.totalorder %s252, %s254
    %p261 = scmp.eq.s32.totalorder %s76, 1
    %p262 = por %p260, %p261
    %p263 = scmp.ne.s32.totalorder %s254, %s255
    %p264 = scmp.eq.s32.totalorder %s76, 0
    %p265 = por %p263, %p264
    %p266 = scmp.ne.s32.totalorder %s254, %s255
    %p267 = scmp.eq.s32.totalorder %s77, 1
    %p268 = por %p266, %p267
    %p270 = scmp.ne.s32.totalorder %s255, %s269
    %p271 = scmp.eq.s32.totalorder %s77, 0
    %p272 = por %p270, %p271
    %s274 = sadd.s32 %s273, 1
    %p277 = scmp.eq.s32.totalorder %s71, 1
    %p278 = scmp.ne.s32.totalorder %s273, %s275
    %p279 = scmp.eq.s32.totalorder %s71, 0
    %p280 = por %p278, %p279
    %p281 = scmp.ne.s32.totalorder %s273, %s275
    %p282 = scmp.eq.s32.totalorder %s76, 1
    %p283 = por %p281, %p282
    %p284 = scmp.ne.s32.totalorder %s275, %s276
    %p285 = scmp.eq.s32.totalorder %s76, 0
    %p286 = por %p284, %p285
    %p287 = scmp.ne.s32.totalorder %s275, %s276
    %p288 = scmp.eq.s32.totalorder %s77, 1
    %p289 = por %p287, %p288
    %p291 = scmp.ne.s32.totalorder %s276, %s290
    %p292 = scmp.eq.s32.totalorder %s77, 0
    %p293 = por %p291, %p292
    %s295 = sadd.s32 %s294, 1
    %p298 = scmp.eq.s32.totalorder %s71, 1
    %p299 = scmp.ne.s32.totalorder %s294, %s296
    %p300 = scmp.eq.s32.totalorder %s71, 0
    %p301 = por %p299, %p300
    %p302 = scmp.ne.s32.totalorder %s294, %s296
    %p303 = scmp.eq.s32.totalorder %s76, 1
    %p304 = por %p302, %p303
    %p305 = scmp.ne.s32.totalorder %s296, %s297
    %p306 = scmp.eq.s32.totalorder %s76, 0
    %p307 = por %p305, %p306
    %p308 = scmp.ne.s32.totalorder %s296, %s297
    %p309 = scmp.eq.s32.totalorder %s77, 1
    %p310 = por %p308, %p309
    %p312 = scmp.ne.s32.totalorder %s297, %s311
    %p313 = scmp.eq.s32.totalorder %s77, 0
    %p314 = por %p312, %p313
    %s316 = sadd.s32 %s315, 1
    %p319 = scmp.eq.s32.totalorder %s71, 1
    %p320 = scmp.ne.s32.totalorder %s315, %s317
    %p321 = scmp.eq.s32.totalorder %s71, 0
    %p322 = por %p320, %p321
    %p323 = scmp.ne.s32.totalorder %s315, %s317
    %p324 = scmp.eq.s32.totalorder %s76, 1
    %p325 = por %p323, %p324
    %p326 = scmp.ne.s32.totalorder %s317, %s318
    %p327 = scmp.eq.s32.totalorder %s76, 0
    %p328 = por %p326, %p327
    %p329 = scmp.ne.s32.totalorder %s317, %s318
    %p330 = scmp.eq.s32.totalorder %s77, 1
    %p331 = por %p329, %p330
    %p333 = scmp.ne.s32.totalorder %s318, %s332
    %p334 = scmp.eq.s32.totalorder %s77, 0
    %p335 = por %p333, %p334
    %s337 = sadd.s32 %s336, 1
    %p340 = scmp.eq.s32.totalorder %s71, 1
    %p341 = scmp.ne.s32.totalorder %s336, %s338
    %p342 = scmp.eq.s32.totalorder %s71, 0
    %p343 = por %p341, %p342
    %p344 = scmp.ne.s32.totalorder %s336, %s338
    %p345 = scmp.eq.s32.totalorder %s76, 1
    %p346 = por %p344, %p345
    %p347 = scmp.ne.s32.totalorder %s338, %s339
    %p348 = scmp.eq.s32.totalorder %s76, 0
    %p349 = por %p347, %p348
    %p350 = scmp.ne.s32.totalorder %s338, %s339
    %p351 = scmp.eq.s32.totalorder %s77, 1
    %p352 = por %p350, %p351
    %p354 = scmp.ne.s32.totalorder %s339, %s353
    %p355 = scmp.eq.s32.totalorder %s77, 0
    %p356 = por %p354, %p355
    %s358 = sadd.s32 %s357, 1
    %p361 = scmp.eq.s32.totalorder %s71, 1
    %p362 = scmp.ne.s32.totalorder %s357, %s359
    %p363 = scmp.eq.s32.totalorder %s71, 0
    %p364 = por %p362, %p363
    %p365 = scmp.ne.s32.totalorder %s357, %s359
    %p366 = scmp.eq.s32.totalorder %s76, 1
    %p367 = por %p365, %p366
    %p368 = scmp.ne.s32.totalorder %s359, %s360
    %p369 = scmp.eq.s32.totalorder %s76, 0
    %p370 = por %p368, %p369
    %p371 = scmp.ne.s32.totalorder %s359, %s360
    %p372 = scmp.eq.s32.totalorder %s77, 1
    %p373 = por %p371, %p372
    %p375 = scmp.ne.s32.totalorder %s360, %s374
    %p376 = scmp.eq.s32.totalorder %s77, 0
    %p377 = por %p375, %p376
    %s379 = sadd.s32 %s378, 1
    %p382 = scmp.eq.s32.totalorder %s71, 1
    %p383 = scmp.ne.s32.totalorder %s378, %s380
    %p384 = scmp.eq.s32.totalorder %s71, 0
    %p385 = por %p383, %p384
    %p386 = scmp.ne.s32.totalorder %s378, %s380
    %p387 = scmp.eq.s32.totalorder %s76, 1
    %p388 = por %p386, %p387
    %p389 = scmp.ne.s32.totalorder %s380, %s381
    %p390 = scmp.eq.s32.totalorder %s76, 0
    %p391 = por %p389, %p390
    %p392 = scmp.ne.s32.totalorder %s380, %s381
    %p393 = scmp.eq.s32.totalorder %s77, 1
    %p394 = por %p392, %p393
    %p396 = scmp.ne.s32.totalorder %s381, %s395
    %p397 = scmp.eq.s32.totalorder %s77, 0
    %p398 = por %p396, %p397
    %s400 = sadd.s32 %s399, 1
    %p403 = scmp.eq.s32.totalorder %s71, 1
    %p404 = scmp.ne.s32.totalorder %s399, %s401
    %p405 = scmp.eq.s32.totalorder %s71, 0
    %p406 = por %p404, %p405
    %p407 = scmp.ne.s32.totalorder %s399, %s401
    %p408 = scmp.eq.s32.totalorder %s76, 1
    %p409 = por %p407, %p408
    %p410 = scmp.ne.s32.totalorder %s401, %s402
    %p411 = scmp.eq.s32.totalorder %s76, 0
    %p412 = por %p410, %p411
    %p413 = scmp.ne.s32.totalorder %s401, %s402
    %p414 = scmp.eq.s32.totalorder %s77, 1
    %p415 = por %p413, %p414
    %p417 = scmp.ne.s32.totalorder %s402, %s416
    %p418 = scmp.eq.s32.totalorder %s77, 0
    %p419 = por %p417, %p418
    %s421 = sadd.s32 %s420, 1
    %p424 = scmp.eq.s32.totalorder %s71, 1
    %p425 = scmp.ne.s32.totalorder %s420, %s422
    %p426 = scmp.eq.s32.totalorder %s71, 0
    %p427 = por %p425, %p426
    %p428 = scmp.ne.s32.totalorder %s420, %s422
    %p429 = scmp.eq.s32.totalorder %s76, 1
    %p430 = por %p428, %p429
    %p431 = scmp.ne.s32.totalorder %s422, %s423
    %p432 = scmp.eq.s32.totalorder %s76, 0
    %p433 = por %p431, %p432
    %p434 = scmp.ne.s32.totalorder %s422, %s423
    %p435 = scmp.eq.s32.totalorder %s77, 1
    %p436 = por %p434, %p435
    %p438 = scmp.ne.s32.totalorder %s423, %s437
    %p439 = scmp.eq.s32.totalorder %s77, 0
    %p440 = por %p438, %p439
    %s442 = sadd.s32 %s441, 1
    %p445 = scmp.eq.s32.totalorder %s71, 1
    %p446 = scmp.ne.s32.totalorder %s441, %s443
    %p447 = scmp.eq.s32.totalorder %s71, 0
    %p448 = por %p446, %p447
    %p449 = scmp.ne.s32.totalorder %s441, %s443
    %p450 = scmp.eq.s32.totalorder %s76, 1
    %p451 = por %p449, %p450
    %p452 = scmp.ne.s32.totalorder %s443, %s444
    %p453 = scmp.eq.s32.totalorder %s76, 0
    %p454 = por %p452, %p453
    %p455 = scmp.ne.s32.totalorder %s443, %s444
    %p456 = scmp.eq.s32.totalorder %s77, 1
    %p457 = por %p455, %p456
    %p459 = scmp.ne.s32.totalorder %s444, %s458
    %p460 = scmp.eq.s32.totalorder %s77, 0
    %p461 = por %p459, %p460
    %s463 = sadd.s32 %s462, 1
    %p466 = scmp.eq.s32.totalorder %s71, 1
    %p467 = scmp.ne.s32.totalorder %s462, %s464
    %p468 = scmp.eq.s32.totalorder %s71, 0
    %p469 = por %p467, %p468
    %p470 = scmp.ne.s32.totalorder %s462, %s464
    %p471 = scmp.eq.s32.totalorder %s76, 1
    %p472 = por %p470, %p471
    %p473 = scmp.ne.s32.totalorder %s464, %s465
    %p474 = scmp.eq.s32.totalorder %s76, 0
    %p475 = por %p473, %p474
    %p476 = scmp.ne.s32.totalorder %s464, %s465
    %p477 = scmp.eq.s32.totalorder %s77, 1
    %p478 = por %p476, %p477
    %p480 = scmp.ne.s32.totalorder %s465, %s479
    %p481 = scmp.eq.s32.totalorder %s77, 0
    %p482 = por %p480, %p481
    %s484 = sadd.s32 %s483, 1
    %p487 = scmp.eq.s32.totalorder %s71, 1
    %p488 = scmp.ne.s32.totalorder %s483, %s485
    %p489 = scmp.eq.s32.totalorder %s71, 0
    %p490 = por %p488, %p489
    %p491 = scmp.ne.s32.totalorder %s483, %s485
    %p492 = scmp.eq.s32.totalorder %s76, 1
    %p493 = por %p491, %p492
    %p494 = scmp.ne.s32.totalorder %s485, %s486
    %p495 = scmp.eq.s32.totalorder %s76, 0
    %p496 = por %p494, %p495
    %p497 = scmp.ne.s32.totalorder %s485, %s486
    %p498 = scmp.eq.s32.totalorder %s77, 1
    %p499 = por %p497, %p498
    %p501 = scmp.ne.s32.totalorder %s486, %s500
    %p502 = scmp.eq.s32.totalorder %s77, 0
    %p503 = por %p501, %p502
    %s505 = sadd.s32 %s504, 1
    %p508 = scmp.eq.s32.totalorder %s71, 1
    %p509 = scmp.ne.s32.totalorder %s504, %s506
    %p510 = scmp.eq.s32.totalorder %s71, 0
    %p511 = por %p509, %p510
    %p512 = scmp.ne.s32.totalorder %s504, %s506
    %p513 = scmp.eq.s32.totalorder %s76, 1
    %p514 = por %p512, %p513
    %p515 = scmp.ne.s32.totalorder %s506, %s507
    %p516 = scmp.eq.s32.totalorder %s76, 0
    %p517 = por %p515, %p516
    %p518 = scmp.ne.s32.totalorder %s506, %s507
    %p519 = scmp.eq.s32.totalorder %s77, 1
    %p520 = por %p518, %p519
    %p522 = scmp.ne.s32.totalorder %s507, %s521
    %p523 = scmp.eq.s32.totalorder %s77, 0
    %p524 = por %p522, %p523
    %s526 = sadd.s32 %s525, 1
    %p529 = scmp.eq.s32.totalorder %s71, 1
    %p530 = scmp.ne.s32.totalorder %s525, %s527
    %p531 = scmp.eq.s32.totalorder %s71, 0
    %p532 = por %p530, %p531
    %p533 = scmp.ne.s32.totalorder %s525, %s527
    %p534 = scmp.eq.s32.totalorder %s76, 1
    %p535 = por %p533, %p534
    %p536 = scmp.ne.s32.totalorder %s527, %s528
    %p537 = scmp.eq.s32.totalorder %s76, 0
    %p538 = por %p536, %p537
    %p539 = scmp.ne.s32.totalorder %s527, %s528
    %p540 = scmp.eq.s32.totalorder %s77, 1
    %p541 = por %p539, %p540
    %p543 = scmp.ne.s32.totalorder %s528, %s542
    %p544 = scmp.eq.s32.totalorder %s77, 0
    %p545 = por %p543, %p544
    %s547 = sadd.s32 %s546, 1
    %p550 = scmp.eq.s32.totalorder %s71, 1
    %p551 = scmp.ne.s32.totalorder %s546, %s548
    %p552 = scmp.eq.s32.totalorder %s71, 0
    %p553 = por %p551, %p552
    %p554 = scmp.ne.s32.totalorder %s546, %s548
    %p555 = scmp.eq.s32.totalorder %s76, 1
    %p556 = por %p554, %p555
    %p557 = scmp.ne.s32.totalorder %s548, %s549
    %p558 = scmp.eq.s32.totalorder %s76, 0
    %p559 = por %p557, %p558
    %p560 = scmp.ne.s32.totalorder %s548, %s549
    %p561 = scmp.eq.s32.totalorder %s77, 1
    %p562 = por %p560, %p561
    %p564 = scmp.ne.s32.totalorder %s549, %s563
    %p565 = scmp.eq.s32.totalorder %s77, 0
    %p566 = por %p564, %p565
    %s568 = sadd.s32 %s567, 1
    %p571 = scmp.eq.s32.totalorder %s71, 1
    %p572 = scmp.ne.s32.totalorder %s567, %s569
    %p573 = scmp.eq.s32.totalorder %s71, 0
    %p574 = por %p572, %p573
    %p575 = scmp.ne.s32.totalorder %s567, %s569
    %p576 = scmp.eq.s32.totalorder %s76, 1
    %p577 = por %p575, %p576
    %p578 = scmp.ne.s32.totalorder %s569, %s570
    %p579 = scmp.eq.s32.totalorder %s76, 0
    %p580 = por %p578, %p579
    %p581 = scmp.ne.s32.totalorder %s569, %s570
    %p582 = scmp.eq.s32.totalorder %s77, 1
    %p583 = por %p581, %p582
    %p585 = scmp.ne.s32.totalorder %s570, %s584
    %p586 = scmp.eq.s32.totalorder %s77, 0
    %p587 = por %p585, %p586
    %s589 = sadd.s32 %s588, 1
    %p592 = scmp.eq.s32.totalorder %s71, 1
    %p593 = scmp.ne.s32.totalorder %s588, %s590
    %p594 = scmp.eq.s32.totalorder %s71, 0
    %p595 = por %p593, %p594
    %p596 = scmp.ne.s32.totalorder %s588, %s590
    %p597 = scmp.eq.s32.totalorder %s76, 1
    %p598 = por %p596, %p597
    %p599 = scmp.ne.s32.totalorder %s590, %s591
    %p600 = scmp.eq.s32.totalorder %s76, 0
    %p601 = por %p599, %p600
    %p602 = scmp.ne.s32.totalorder %s590, %s591
    %p603 = scmp.eq.s32.totalorder %s77, 1
    %p604 = por %p602, %p603
    %p606 = scmp.ne.s32.totalorder %s591, %s605
    %p607 = scmp.eq.s32.totalorder %s77, 0
    %p608 = por %p606, %p607
    %s610 = sadd.s32 %s609, 1
    %p613 = scmp.eq.s32.totalorder %s71, 1
    %p614 = scmp.ne.s32.totalorder %s609, %s611
    %p615 = scmp.eq.s32.totalorder %s71, 0
    %p616 = por %p614, %p615
    %p617 = scmp.ne.s32.totalorder %s609, %s611
    %p618 = scmp.eq.s32.totalorder %s76, 1
    %p619 = por %p617, %p618
    %p620 = scmp.ne.s32.totalorder %s611, %s612
    %p621 = scmp.eq.s32.totalorder %s76, 0
    %p622 = por %p620, %p621
    %p623 = scmp.ne.s32.totalorder %s611, %s612
    %p624 = scmp.eq.s32.totalorder %s77, 1
    %p625 = por %p623, %p624
    %p627 = scmp.ne.s32.totalorder %s612, %s626
    %p628 = scmp.eq.s32.totalorder %s77, 0
    %p629 = por %p627, %p628
    %s631 = sadd.s32 %s630, 1
    %p634 = scmp.eq.s32.totalorder %s71, 1
    %p635 = scmp.ne.s32.totalorder %s630, %s632
    %p636 = scmp.eq.s32.totalorder %s71, 0
    %p637 = por %p635, %p636
    %p638 = scmp.ne.s32.totalorder %s630, %s632
    %p639 = scmp.eq.s32.totalorder %s76, 1
    %p640 = por %p638, %p639
    %p641 = scmp.ne.s32.totalorder %s632, %s633
    %p642 = scmp.eq.s32.totalorder %s76, 0
    %p643 = por %p641, %p642
    %p644 = scmp.ne.s32.totalorder %s632, %s633
    %p645 = scmp.eq.s32.totalorder %s77, 1
    %p646 = por %p644, %p645
    %p648 = scmp.ne.s32.totalorder %s633, %s647
    %p649 = scmp.eq.s32.totalorder %s77, 0
    %p650 = por %p648, %p649
    %s652 = sadd.s32 %s651, 1
    %p655 = scmp.eq.s32.totalorder %s71, 1
    %p656 = scmp.ne.s32.totalorder %s651, %s653
    %p657 = scmp.eq.s32.totalorder %s71, 0
    %p658 = por %p656, %p657
    %p659 = scmp.ne.s32.totalorder %s651, %s653
    %p660 = scmp.eq.s32.totalorder %s76, 1
    %p661 = por %p659, %p660
    %p662 = scmp.ne.s32.totalorder %s653, %s654
    %p663 = scmp.eq.s32.totalorder %s76, 0
    %p664 = por %p662, %p663
    %p665 = scmp.ne.s32.totalorder %s653, %s654
    %p666 = scmp.eq.s32.totalorder %s77, 1
    %p667 = por %p665, %p666
    %p669 = scmp.ne.s32.totalorder %s654, %s668
    %p670 = scmp.eq.s32.totalorder %s77, 0
    %p671 = por %p669, %p670
    %s673 = sadd.s32 %s672, 1
    %p676 = scmp.eq.s32.totalorder %s71, 1
    %p677 = scmp.ne.s32.totalorder %s672, %s674
    %p678 = scmp.eq.s32.totalorder %s71, 0
    %p679 = por %p677, %p678
    %p680 = scmp.ne.s32.totalorder %s672, %s674
    %p681 = scmp.eq.s32.totalorder %s76, 1
    %p682 = por %p680, %p681
    %p683 = scmp.ne.s32.totalorder %s674, %s675
    %p684 = scmp.eq.s32.totalorder %s76, 0
    %p685 = por %p683, %p684
    %p686 = scmp.ne.s32.totalorder %s674, %s675
    %p687 = scmp.eq.s32.totalorder %s77, 1
    %p688 = por %p686, %p687
    %p690 = scmp.ne.s32.totalorder %s675, %s689
    %p691 = scmp.eq.s32.totalorder %s77, 0
    %p692 = por %p690, %p691
    %s694 = sadd.s32 %s693, 1
    %p697 = scmp.eq.s32.totalorder %s71, 1
    %p698 = scmp.ne.s32.totalorder %s693, %s695
    %p699 = scmp.eq.s32.totalorder %s71, 0
    %p700 = por %p698, %p699
    %p701 = scmp.ne.s32.totalorder %s693, %s695
    %p702 = scmp.eq.s32.totalorder %s76, 1
    %p703 = por %p701, %p702
    %p704 = scmp.ne.s32.totalorder %s695, %s696
    %p705 = scmp.eq.s32.totalorder %s76, 0
    %p706 = por %p704, %p705
    %p707 = scmp.ne.s32.totalorder %s695, %s696
    %p708 = scmp.eq.s32.totalorder %s77, 1
    %p709 = por %p707, %p708
    %p711 = scmp.ne.s32.totalorder %s696, %s710
    %p712 = scmp.eq.s32.totalorder %s77, 0
    %p713 = por %p711, %p712
    %s715 = sadd.s32 %s714, 1
    %p718 = scmp.eq.s32.totalorder %s71, 1
    %p719 = scmp.ne.s32.totalorder %s714, %s716
    %p720 = scmp.eq.s32.totalorder %s71, 0
    %p721 = por %p719, %p720
    %p722 = scmp.ne.s32.totalorder %s714, %s716
    %p723 = scmp.eq.s32.totalorder %s76, 1
    %p724 = por %p722, %p723
    %p725 = scmp.ne.s32.totalorder %s716, %s717
    %p726 = scmp.eq.s32.totalorder %s76, 0
    %p727 = por %p725, %p726
    %p728 = scmp.ne.s32.totalorder %s716, %s717
    %p729 = scmp.eq.s32.totalorder %s77, 1
    %p730 = por %p728, %p729
    %p732 = scmp.ne.s32.totalorder %s717, %s731
    %p733 = scmp.eq.s32.totalorder %s77, 0
    %p734 = por %p732, %p733
    %s736 = sadd.s32 %s735, 1
    %p739 = scmp.eq.s32.totalorder %s71, 1
    %p740 = scmp.ne.s32.totalorder %s735, %s737
    %p741 = scmp.eq.s32.totalorder %s71, 0
    %p742 = por %p740, %p741
    %p743 = scmp.ne.s32.totalorder %s735, %s737
    %p744 = scmp.eq.s32.totalorder %s76, 1
    %p745 = por %p743, %p744
    %p746 = scmp.ne.s32.totalorder %s737, %s738
    %p747 = scmp.eq.s32.totalorder %s76, 0
    %p748 = por %p746, %p747
    %p749 = scmp.ne.s32.totalorder %s737, %s738
    %p750 = scmp.eq.s32.totalorder %s77, 1
    %p751 = por %p749, %p750
    %p753 = scmp.ne.s32.totalorder %s738, %s752
    %p754 = scmp.eq.s32.totalorder %s77, 0
    %p755 = por %p753, %p754
    %s756 = ssub.s32 %s71, %s78
    %p757 = scmp.eq.s32.totalorder %s756, 0
    %s759 = sadd.s32 %s758, 1
    %s760 = scalar_select %p757, %s758, %s759
    %p763 = pneg %p757
    %p764 = scmp.eq.s32.totalorder %s71, 1
    %p765 = por %p763, %p764
    %p766 = scmp.ne.s32.totalorder %s758, %s761
    %p767 = scmp.eq.s32.totalorder %s71, 0
    %p768 = por %p766, %p767
    %p769 = scmp.ne.s32.totalorder %s758, %s761
    %p770 = scmp.eq.s32.totalorder %s76, 1
    %p771 = por %p769, %p770
    %p772 = scmp.ne.s32.totalorder %s761, %s762
    %p773 = scmp.eq.s32.totalorder %s76, 0
    %p774 = por %p772, %p773
    %p775 = scmp.ne.s32.totalorder %s761, %s762
    %p776 = scmp.eq.s32.totalorder %s77, 1
    %p777 = por %p775, %p776
    %p779 = scmp.ne.s32.totalorder %s762, %s778
    %p780 = scmp.eq.s32.totalorder %s77, 0
    %p781 = por %p779, %p780
    %p782 = scmp.le.s32.totalorder 1, %s71
    %p783 = scmp.lt.s32.totalorder %s71, 3
    %p784 = pnand %p782, %p783
    %p785 = pneg %p784
    // Predicated region
    $region9: #{tpu_custom_call.1} parent=5 // pred_check
      _
    $region10: #{tpu_custom_call.1} parent=5 // pred_check_branch
      %787 = sbr.rel (%p784) target = $region12
    $region11: #{tpu_custom_call.1} parent=5 // pred_region
      %s788 = ssub.s32 %s71, 1
      // Predicated region
      $region13: #{tpu_custom_call.1} parent=11 // pred_check
        %p789 = pneg %p118
      $region14: #{tpu_custom_call.1} parent=11 // pred_check_branch
        %791 = sbr.rel (%p789) target = $region16
      $region15: #{tpu_custom_call.1} parent=11 // pred_region
        _
      $region16: #{tpu_custom_call.1} parent=11 // pred_fallthru
        _
      // Predicated region
      $region17: #{tpu_custom_call.1} parent=11 // pred_check
        %p792 = pneg %p139
      $region18: #{tpu_custom_call.1} parent=11 // pred_check_branch
        %794 = sbr.rel (%p792) target = $region20
      $region19: #{tpu_custom_call.1} parent=11 // pred_region
        _
      $region20: #{tpu_custom_call.1} parent=11 // pred_fallthru
        _
      // Predicated region
      $region21: #{tpu_custom_call.1} parent=11 // pred_check
        %p795 = pneg %p160
      $region22: #{tpu_custom_call.1} parent=11 // pred_check_branch
        %797 = sbr.rel (%p795) target = $region24
      $region23: #{tpu_custom_call.1} parent=11 // pred_region
        _
      $region24: #{tpu_custom_call.1} parent=11 // pred_fallthru
        _
      // Predicated region
      $region25: #{tpu_custom_call.1} parent=11 // pred_check
        %p798 = pneg %p181
      $region26: #{tpu_custom_call.1} parent=11 // pred_check_branch
        %800 = sbr.rel (%p798) target = $region28
      $region27: #{tpu_custom_call.1} parent=11 // pred_region
        _
      $region28: #{tpu_custom_call.1} parent=11 // pred_fallthru
        _
      // Predicated region
      $region29: #{tpu_custom_call.1} parent=11 // pred_check
        %p801 = pneg %p202
      $region30: #{tpu_custom_call.1} parent=11 // pred_check_branch
        %803 = sbr.rel (%p801) target = $region32
      $region31: #{tpu_custom_call.1} parent=11 // pred_region
        _
      $region32: #{tpu_custom_call.1} parent=11 // pred_fallthru
        _
      // Predicated region
      $region33: #{tpu_custom_call.1} parent=11 // pred_check
        %p804 = pneg %p223
      $region34: #{tpu_custom_call.1} parent=11 // pred_check_branch
        %806 = sbr.rel (%p804) target = $region36
      $region35: #{tpu_custom_call.1} parent=11 // pred_region
        _
      $region36: #{tpu_custom_call.1} parent=11 // pred_fallthru
        _
      // Predicated region
      $region37: #{tpu_custom_call.1} parent=11 // pred_check
        %p807 = pneg %p244
      $region38: #{tpu_custom_call.1} parent=11 // pred_check_branch
        %809 = sbr.rel (%p807) target = $region40
      $region39: #{tpu_custom_call.1} parent=11 // pred_region
        _
      $region40: #{tpu_custom_call.1} parent=11 // pred_fallthru
        _
      // Predicated region
      $region41: #{tpu_custom_call.1} parent=11 // pred_check
        %p810 = pneg %p265
      $region42: #{tpu_custom_call.1} parent=11 // pred_check_branch
        %812 = sbr.rel (%p810) target = $region44
      $region43: #{tpu_custom_call.1} parent=11 // pred_region
        _
      $region44: #{tpu_custom_call.1} parent=11 // pred_fallthru
        _
      // Predicated region
      $region45: #{tpu_custom_call.1} parent=11 // pred_check
        %p813 = pneg %p286
      $region46: #{tpu_custom_call.1} parent=11 // pred_check_branch
        %815 = sbr.rel (%p813) target = $region48
      $region47: #{tpu_custom_call.1} parent=11 // pred_region
        _
      $region48: #{tpu_custom_call.1} parent=11 // pred_fallthru
        _
      // Predicated region
      $region49: #{tpu_custom_call.1} parent=11 // pred_check
        %p816 = pneg %p307
      $region50: #{tpu_custom_call.1} parent=11 // pred_check_branch
        %818 = sbr.rel (%p816) target = $region52
      $region51: #{tpu_custom_call.1} parent=11 // pred_region
        _
      $region52: #{tpu_custom_call.1} parent=11 // pred_fallthru
        _
      // Predicated region
      $region53: #{tpu_custom_call.1} parent=11 // pred_check
        %p819 = pneg %p328
      $region54: #{tpu_custom_call.1} parent=11 // pred_check_branch
        %821 = sbr.rel (%p819) target = $region56
      $region55: #{tpu_custom_call.1} parent=11 // pred_region
        _
      $region56: #{tpu_custom_call.1} parent=11 // pred_fallthru
        _
      // Predicated region
      $region57: #{tpu_custom_call.1} parent=11 // pred_check
        %p822 = pneg %p349
      $region58: #{tpu_custom_call.1} parent=11 // pred_check_branch
        %824 = sbr.rel (%p822) target = $region60
      $region59: #{tpu_custom_call.1} parent=11 // pred_region
        _
      $region60: #{tpu_custom_call.1} parent=11 // pred_fallthru
        _
      // Predicated region
      $region61: #{tpu_custom_call.1} parent=11 // pred_check
        %p825 = pneg %p370
      $region62: #{tpu_custom_call.1} parent=11 // pred_check_branch
        %827 = sbr.rel (%p825) target = $region64
      $region63: #{tpu_custom_call.1} parent=11 // pred_region
        _
      $region64: #{tpu_custom_call.1} parent=11 // pred_fallthru
        _
      // Predicated region
      $region65: #{tpu_custom_call.1} parent=11 // pred_check
        %p828 = pneg %p391
      $region66: #{tpu_custom_call.1} parent=11 // pred_check_branch
        %830 = sbr.rel (%p828) target = $region68
      $region67: #{tpu_custom_call.1} parent=11 // pred_region
        _
      $region68: #{tpu_custom_call.1} parent=11 // pred_fallthru
        _
      // Predicated region
      $region69: #{tpu_custom_call.1} parent=11 // pred_check
        %p831 = pneg %p412
      $region70: #{tpu_custom_call.1} parent=11 // pred_check_branch
        %833 = sbr.rel (%p831) target = $region72
      $region71: #{tpu_custom_call.1} parent=11 // pred_region
        _
      $region72: #{tpu_custom_call.1} parent=11 // pred_fallthru
        _
      // Predicated region
      $region73: #{tpu_custom_call.1} parent=11 // pred_check
        %p834 = pneg %p433
      $region74: #{tpu_custom_call.1} parent=11 // pred_check_branch
        %836 = sbr.rel (%p834) target = $region76
      $region75: #{tpu_custom_call.1} parent=11 // pred_region
        _
      $region76: #{tpu_custom_call.1} parent=11 // pred_fallthru
        _
      // Predicated region
      $region77: #{tpu_custom_call.1} parent=11 // pred_check
        %p837 = pneg %p454
      $region78: #{tpu_custom_call.1} parent=11 // pred_check_branch
        %839 = sbr.rel (%p837) target = $region80
      $region79: #{tpu_custom_call.1} parent=11 // pred_region
        _
      $region80: #{tpu_custom_call.1} parent=11 // pred_fallthru
        _
      // Predicated region
      $region81: #{tpu_custom_call.1} parent=11 // pred_check
        %p840 = pneg %p475
      $region82: #{tpu_custom_call.1} parent=11 // pred_check_branch
        %842 = sbr.rel (%p840) target = $region84
      $region83: #{tpu_custom_call.1} parent=11 // pred_region
        _
      $region84: #{tpu_custom_call.1} parent=11 // pred_fallthru
        _
      // Predicated region
      $region85: #{tpu_custom_call.1} parent=11 // pred_check
        %p843 = pneg %p496
      $region86: #{tpu_custom_call.1} parent=11 // pred_check_branch
        %845 = sbr.rel (%p843) target = $region88
      $region87: #{tpu_custom_call.1} parent=11 // pred_region
        _
      $region88: #{tpu_custom_call.1} parent=11 // pred_fallthru
        _
      // Predicated region
      $region89: #{tpu_custom_call.1} parent=11 // pred_check
        %p846 = pneg %p517
      $region90: #{tpu_custom_call.1} parent=11 // pred_check_branch
        %848 = sbr.rel (%p846) target = $region92
      $region91: #{tpu_custom_call.1} parent=11 // pred_region
        _
      $region92: #{tpu_custom_call.1} parent=11 // pred_fallthru
        _
      // Predicated region
      $region93: #{tpu_custom_call.1} parent=11 // pred_check
        %p849 = pneg %p538
      $region94: #{tpu_custom_call.1} parent=11 // pred_check_branch
        %851 = sbr.rel (%p849) target = $region96
      $region95: #{tpu_custom_call.1} parent=11 // pred_region
        _
      $region96: #{tpu_custom_call.1} parent=11 // pred_fallthru
        _
      // Predicated region
      $region97: #{tpu_custom_call.1} parent=11 // pred_check
        %p852 = pneg %p559
      $region98: #{tpu_custom_call.1} parent=11 // pred_check_branch
        %854 = sbr.rel (%p852) target = $region100
      $region99: #{tpu_custom_call.1} parent=11 // pred_region
        _
      $region100: #{tpu_custom_call.1} parent=11 // pred_fallthru
        _
      // Predicated region
      $region101: #{tpu_custom_call.1} parent=11 // pred_check
        %p855 = pneg %p580
      $region102: #{tpu_custom_call.1} parent=11 // pred_check_branch
        %857 = sbr.rel (%p855) target = $region104
      $region103: #{tpu_custom_call.1} parent=11 // pred_region
        _
      $region104: #{tpu_custom_call.1} parent=11 // pred_fallthru
        _
      // Predicated region
      $region105: #{tpu_custom_call.1} parent=11 // pred_check
        %p858 = pneg %p601
      $region106: #{tpu_custom_call.1} parent=11 // pred_check_branch
        %860 = sbr.rel (%p858) target = $region108
      $region107: #{tpu_custom_call.1} parent=11 // pred_region
        _
      $region108: #{tpu_custom_call.1} parent=11 // pred_fallthru
        _
      // Predicated region
      $region109: #{tpu_custom_call.1} parent=11 // pred_check
        %p861 = pneg %p622
      $region110: #{tpu_custom_call.1} parent=11 // pred_check_branch
        %863 = sbr.rel (%p861) target = $region112
      $region111: #{tpu_custom_call.1} parent=11 // pred_region
        _
      $region112: #{tpu_custom_call.1} parent=11 // pred_fallthru
        _
      // Predicated region
      $region113: #{tpu_custom_call.1} parent=11 // pred_check
        %p864 = pneg %p643
      $region114: #{tpu_custom_call.1} parent=11 // pred_check_branch
        %866 = sbr.rel (%p864) target = $region116
      $region115: #{tpu_custom_call.1} parent=11 // pred_region
        _
      $region116: #{tpu_custom_call.1} parent=11 // pred_fallthru
        _
      // Predicated region
      $region117: #{tpu_custom_call.1} parent=11 // pred_check
        %p867 = pneg %p664
      $region118: #{tpu_custom_call.1} parent=11 // pred_check_branch
        %869 = sbr.rel (%p867) target = $region120
      $region119: #{tpu_custom_call.1} parent=11 // pred_region
        _
      $region120: #{tpu_custom_call.1} parent=11 // pred_fallthru
        _
      // Predicated region
      $region121: #{tpu_custom_call.1} parent=11 // pred_check
        %p870 = pneg %p685
      $region122: #{tpu_custom_call.1} parent=11 // pred_check_branch
        %872 = sbr.rel (%p870) target = $region124
      $region123: #{tpu_custom_call.1} parent=11 // pred_region
        _
      $region124: #{tpu_custom_call.1} parent=11 // pred_fallthru
        _
      // Predicated region
      $region125: #{tpu_custom_call.1} parent=11 // pred_check
        %p873 = pneg %p706
      $region126: #{tpu_custom_call.1} parent=11 // pred_check_branch
        %875 = sbr.rel (%p873) target = $region128
      $region127: #{tpu_custom_call.1} parent=11 // pred_region
        _
      $region128: #{tpu_custom_call.1} parent=11 // pred_fallthru
        _
      // Predicated region
      $region129: #{tpu_custom_call.1} parent=11 // pred_check
        %p876 = pneg %p727
      $region130: #{tpu_custom_call.1} parent=11 // pred_check_branch
        %878 = sbr.rel (%p876) target = $region132
      $region131: #{tpu_custom_call.1} parent=11 // pred_region
        _
      $region132: #{tpu_custom_call.1} parent=11 // pred_fallthru
        _
      // Predicated region
      $region133: #{tpu_custom_call.1} parent=11 // pred_check
        %p879 = pneg %p748
      $region134: #{tpu_custom_call.1} parent=11 // pred_check_branch
        %881 = sbr.rel (%p879) target = $region136
      $region135: #{tpu_custom_call.1} parent=11 // pred_region
        _
      $region136: #{tpu_custom_call.1} parent=11 // pred_fallthru
        _
    $region12: #{tpu_custom_call.1} parent=5 // pred_fallthru
      _
    %p882 = scmp.lt.s32.totalorder %s71, 2
    // Predicated region
    $region137: #{tpu_custom_call.1} parent=5 // pred_check
      %p883 = pneg %p882
    $region138: #{tpu_custom_call.1} parent=5 // pred_check_branch
      %885 = sbr.rel (%p883) target = $region140
    $region139: #{tpu_custom_call.1} parent=5 // pred_region
      // Predicated region
      $region141: #{tpu_custom_call.1} parent=139 // pred_check
        %p886 = pneg %p91
      $region142: #{tpu_custom_call.1} parent=139 // pred_check_branch
        %888 = sbr.rel (%p886) target = $region144
      $region143: #{tpu_custom_call.1} parent=139 // pred_region
        %p889 = scmp.lt.s32.totalorder %s71, 1
        %s890 = scalar_select %p889, %s71, 1
        %s891 = smul.addr %s890, 2
        %s892 = scalar_lea.vmem %s1, %s891
      $region144: #{tpu_custom_call.1} parent=139 // pred_fallthru
        _
    $region140: #{tpu_custom_call.1} parent=5 // pred_fallthru
      _
    %p893 = scmp.le.s32.totalorder 1, %s71
    %p894 = scmp.lt.s32.totalorder %s71, 3
    %p895 = pnand %p893, %p894
    %p896 = pneg %p895
    // Predicated region
    $region145: #{tpu_custom_call.1} parent=5 // pred_check
      _
    $region146: #{tpu_custom_call.1} parent=5 // pred_check_branch
      %898 = sbr.rel (%p895) target = $region148
    $region147: #{tpu_custom_call.1} parent=5 // pred_region
      %s899 = ssub.s32 %s71, 1
      %p900 = scmp.lt.s32.totalorder %s76, 1
      %s901 = scalar_select %p900, %s76, 1
      %s902 = smul.addr %s901, 2
      %s903 = scalar_lea.vmem %s1, %s902
      %p904 = pneg %p97
      %p905 = pneg %p94
      %p906 = pneg %p118
      %p907 = pneg %p115
      %p908 = pneg %p139
      %p909 = pneg %p136
      %p910 = pneg %p160
      %p911 = pneg %p157
      %p912 = pneg %p181
      %p913 = pneg %p178
      %p914 = pneg %p202
      %p915 = pneg %p199
      %p916 = pneg %p223
      %p917 = pneg %p220
      %p918 = pneg %p244
      %p919 = pneg %p241
      %p920 = pneg %p265
      %p921 = pneg %p262
      %p922 = pneg %p286
      %p923 = pneg %p283
      %p924 = pneg %p307
      %p925 = pneg %p304
      %p926 = pneg %p328
      %p927 = pneg %p325
      %p928 = pneg %p349
      %p929 = pneg %p346
      %p930 = pneg %p370
      %p931 = pneg %p367
      %p932 = pneg %p391
      %p933 = pneg %p388
      %p934 = pneg %p412
      %p935 = pneg %p409
      %p936 = pneg %p433
      %p937 = pneg %p430
      %p938 = pneg %p454
      %p939 = pneg %p451
      %p940 = pneg %p475
      %p941 = pneg %p472
      %p942 = pneg %p496
      %p943 = pneg %p493
      %p944 = pneg %p517
      %p945 = pneg %p514
      %p946 = pneg %p538
      %p947 = pneg %p535
      %p948 = pneg %p559
      %p949 = pneg %p556
      %p950 = pneg %p580
      %p951 = pneg %p577
      %p952 = pneg %p601
      %p953 = pneg %p598
      %p954 = pneg %p622
      %p955 = pneg %p619
      %p956 = pneg %p643
      %p957 = pneg %p640
      %p958 = pneg %p664
      %p959 = pneg %p661
      %p960 = pneg %p685
      %p961 = pneg %p682
      %p962 = pneg %p706
      %p963 = pneg %p703
      %p964 = pneg %p727
      %p965 = pneg %p724
      %p966 = pneg %p748
      %p967 = pneg %p745
      %p968 = pneg %p774
      %p969 = pneg %p771
      %p970 = scmp.lt.s32.totalorder %s76, 1
      %s971 = scalar_select %p970, %s76, 1
      %s972 = smul.addr %s971, 2
      %s973 = smul.addr %s972, 8
      %s974 = scalar_lea.vmem %s65, %s973
      %p975 = scmp.lt.s32.totalorder %s76, 1
      %s976 = scalar_select %p975, %s76, 1
      %s977 = smul.addr %s976, 2
      %s978 = scalar_lea.vmem %s1, %s977
      %p979 = scmp.lt.s32.totalorder %s76, 1
      %s980 = scalar_select %p979, %s76, 1
      %s981 = smul.addr %s980, 2
      %s982 = smul.addr %s981, 8
      %s983 = scalar_lea.vmem %s65, %s982
      %v984 = vld [vmem:[%s978] sm:$0x3]
      %v986 = vperm.slane %v984, 0
      %v987 = vperm.slane %v984, 1
      %v990 = vld [vmem:[%s9] ss:$8 sm:$0x3]
      %v992 = vperm.slane %v990, 0
      %v993 = vperm.slane %v990, 1
      %994 = vrot.lane.b32.xlu0 %v992, 111
      %v995 = vpop.permute.xlu0 %994
      %996 = vrot.lane.b32.xlu0 %v993, 111
      %v997 = vpop.permute.xlu0 %996
      %vm998 = vcmask 908288
      %v999 = vsel %vm998, %v995, %v997
      %v1003 = vmul.f32 %v987, %v995
      %v1004 = vmul.f32 %v986, %v999
      %v1005 = vmul.f32 %v987, %v997
      %s1006 = scalar_lea.vmem %s9, 1
      %v1007 = vld [vmem:[%s1006] ss:$8 sm:$0x3]
      %v1009 = vperm.slane %v1007, 0
      %v1010 = vperm.slane %v1007, 1
      %1011 = vrot.lane.b32.xlu0 %v1009, 112
      %v1012 = vpop.permute.xlu0 %1011
      %1013 = vrot.lane.b32.xlu0 %v1010, 112
      %v1014 = vpop.permute.xlu0 %1013
      %vm1015 = vcmask 916480
      %v1016 = vsel %vm1015, %v1012, %v1014
      %v1020 = vmul.f32 %v987, %v1012
      %v1021 = vmul.f32 %v986, %v1016
      %v1022 = vmul.f32 %v987, %v1014
      %s1023 = scalar_lea.vmem %s9, 2
      %v1024 = vld [vmem:[%s1023] ss:$8 sm:$0x3]
      %v1026 = vperm.slane %v1024, 0
      %v1027 = vperm.slane %v1024, 1
      %1028 = vrot.lane.b32.xlu0 %v1026, 113
      %v1029 = vpop.permute.xlu0 %1028
      %1030 = vrot.lane.b32.xlu0 %v1027, 113
      %v1031 = vpop.permute.xlu0 %1030
      %vm1032 = vcmask 924672
      %v1033 = vsel %vm1032, %v1029, %v1031
      %v1037 = vmul.f32 %v987, %v1029
      %v1038 = vmul.f32 %v986, %v1033
      %v1039 = vmul.f32 %v987, %v1031
      %s1040 = scalar_lea.vmem %s9, 3
      %v1041 = vld [vmem:[%s1040] ss:$8 sm:$0x3]
      %v1043 = vperm.slane %v1041, 0
      %v1044 = vperm.slane %v1041, 1
      %1045 = vrot.lane.b32.xlu0 %v1043, 127
      %v1046 = vpop.permute.xlu0 %1045
      %1047 = vrot.lane.b32.xlu0 %v1044, 127
      %v1048 = vpop.permute.xlu0 %1047
      %vm1049 = vcmask 1039360
      %v1050 = vsel %vm1049, %v1046, %v1048
      %v1054 = vmul.f32 %v987, %v1046
      %v1055 = vmul.f32 %v986, %v1050
      %v1056 = vmul.f32 %v987, %v1048
      %s1057 = scalar_lea.vmem %s9, 5
      %v1058 = vld [vmem:[%s1057] ss:$8 sm:$0x3]
      %v1060 = vperm.slane %v1058, 0
      %v1061 = vperm.slane %v1058, 1
      %1062 = vrot.lane.b32.xlu0 %v1060, 1
      %v1063 = vpop.permute.xlu0 %1062
      %1064 = vrot.lane.b32.xlu0 %v1061, 1
      %v1065 = vpop.permute.xlu0 %1064
      %vm1066 = vcmask 7168
      %v1067 = vsel %vm1066, %v1063, %v1065
      %v1071 = vmul.f32 %v986, %v1063
      %v1072 = vmul.f32 %v987, %v1067
      %v1073 = vmul.f32 %v986, %v1065
      %s1074 = scalar_lea.vmem %s9, 6
      %v1075 = vld [vmem:[%s1074] ss:$8 sm:$0x3]
      %v1077 = vperm.slane %v1075, 0
      %v1078 = vperm.slane %v1075, 1
      %1079 = vrot.lane.b32.xlu0 %v1077, 15
      %v1080 = vpop.permute.xlu0 %1079
      %1081 = vrot.lane.b32.xlu0 %v1078, 15
      %v1082 = vpop.permute.xlu0 %1081
      %vm1083 = vcmask 121856
      %v1084 = vsel %vm1083, %v1080, %v1082
      %v1088 = vmul.f32 %v986, %v1080
      %v1089 = vmul.f32 %v987, %v1084
      %v1090 = vmul.f32 %v986, %v1082
      %s1091 = scalar_lea.vmem %s9, 7
      %v1092 = vld [vmem:[%s1091] ss:$8 sm:$0x3]
      %v1094 = vperm.slane %v1092, 0
      %v1095 = vperm.slane %v1092, 1
      %1096 = vrot.lane.b32.xlu0 %v1094, 16
      %v1097 = vpop.permute.xlu0 %1096
      %1098 = vrot.lane.b32.xlu0 %v1095, 16
      %v1099 = vpop.permute.xlu0 %1098
      %vm1100 = vcmask 130048
      %v1101 = vsel %vm1100, %v1097, %v1099
      %v1105 = vmul.f32 %v986, %v1097
      %v1106 = vmul.f32 %v987, %v1101
      %v1107 = vmul.f32 %v986, %v1099
      %s1108 = scalar_lea.vmem %s9, 16
      %v1109 = vld [vmem:[%s1108] ss:$8 sm:$0x3]
      %v1111 = vperm.slane %v1109, 0
      %v1112 = vperm.slane %v1109, 1
      %1113 = vrot.lane.b32.xlu0 %v1111, 17
      %v1114 = vpop.permute.xlu0 %1113
      %1115 = vrot.lane.b32.xlu0 %v1112, 17
      %v1116 = vpop.permute.xlu0 %1115
      %vm1117 = vcmask 138240
      %v1118 = vsel %vm1117, %v1114, %v1116
      %v1122 = vmul.f32 %v986, %v1114
      %v1123 = vmul.f32 %v987, %v1118
      %v1124 = vmul.f32 %v986, %v1116
      %v1128 = vrot.slane %v1020, 7
      %v1129 = vrot.slane %v1021, 7
      %v1130 = vrot.slane %v1022, 7
      %1131 = vrot.lane.b32.xlu0 %v1128, 127
      %v1132 = vpop.permute.xlu0 %1131
      %1133 = vrot.lane.b32.xlu0 %v1129, 127
      %v1134 = vpop.permute.xlu0 %1133
      %1135 = vrot.lane.b32.xlu0 %v1130, 127
      %v1136 = vpop.permute.xlu0 %1135
      %v1137 = vsel %vm1049, %v1132, %v1134
      %v1138 = vsel %vm1049, %v1134, %v1136
      %v1145 = vrot.slane %v1037, 6
      %v1146 = vrot.slane %v1038, 6
      %v1147 = vrot.slane %v1039, 6
      %1148 = vrot.lane.b32.xlu0 %v1145, 126
      %v1149 = vpop.permute.xlu0 %1148
      %1150 = vrot.lane.b32.xlu0 %v1146, 126
      %v1151 = vpop.permute.xlu0 %1150
      %1152 = vrot.lane.b32.xlu0 %v1147, 126
      %v1153 = vpop.permute.xlu0 %1152
      %vm1154 = vcmask 1031168
      %v1155 = vsel %vm1154, %v1149, %v1151
      %v1156 = vsel %vm1154, %v1151, %v1153
      %v1163 = vrot.slane %v1054, 5
      %v1164 = vrot.slane %v1055, 5
      %v1165 = vrot.slane %v1056, 5
      %1166 = vrot.lane.b32.xlu0 %v1163, 112
      %v1167 = vpop.permute.xlu0 %1166
      %1168 = vrot.lane.b32.xlu0 %v1164, 112
      %v1169 = vpop.permute.xlu0 %1168
      %1170 = vrot.lane.b32.xlu0 %v1165, 112
      %v1171 = vpop.permute.xlu0 %1170
      %v1172 = vsel %vm1015, %v1167, %v1169
      %v1173 = vsel %vm1015, %v1169, %v1171
      %1177 = vrot.lane.b32.xlu0 %v986, 111
      %v1178 = vpop.permute.xlu0 %1177
      %1179 = vrot.lane.b32.xlu0 %v987, 111
      %v1180 = vpop.permute.xlu0 %1179
      %v1181 = vsel %vm998, %v1178, %v1180
      %v1188 = vrot.slane %v1071, 3
      %v1189 = vrot.slane %v1072, 3
      %v1190 = vrot.slane %v1073, 3
      %1191 = vrot.lane.b32.xlu0 %v1188, 110
      %v1192 = vpop.permute.xlu0 %1191
      %1193 = vrot.lane.b32.xlu0 %v1189, 110
      %v1194 = vpop.permute.xlu0 %1193
      %1195 = vrot.lane.b32.xlu0 %v1190, 110
      %v1196 = vpop.permute.xlu0 %1195
      %vm1197 = vcmask 900096
      %v1198 = vsel %vm1197, %v1192, %v1194
      %v1199 = vsel %vm1197, %v1194, %v1196
      %v1206 = vrot.slane %v1088, 2
      %v1207 = vrot.slane %v1089, 2
      %v1208 = vrot.slane %v1090, 2
      %1209 = vrot.lane.b32.xlu0 %v1206, 96
      %v1210 = vpop.permute.xlu0 %1209
      %1211 = vrot.lane.b32.xlu0 %v1207, 96
      %v1212 = vpop.permute.xlu0 %1211
      %1213 = vrot.lane.b32.xlu0 %v1208, 96
      %v1214 = vpop.permute.xlu0 %1213
      %vm1215 = vcmask 785408
      %v1216 = vsel %vm1215, %v1210, %v1212
      %v1217 = vsel %vm1215, %v1212, %v1214
      %v1224 = vrot.slane %v1105, 1
      %v1225 = vrot.slane %v1106, 1
      %v1226 = vrot.slane %v1107, 1
      %1227 = vrot.lane.b32.xlu0 %v1224, 95
      %v1228 = vpop.permute.xlu0 %1227
      %1229 = vrot.lane.b32.xlu0 %v1225, 95
      %v1230 = vpop.permute.xlu0 %1229
      %1231 = vrot.lane.b32.xlu0 %v1226, 95
      %v1232 = vpop.permute.xlu0 %1231
      %vm1233 = vcmask 777216
      %v1234 = vsel %vm1233, %v1228, %v1230
      %v1235 = vsel %vm1233, %v1230, %v1232
      %1242 = vrot.lane.b32.xlu0 %v1122, 94
      %v1243 = vpop.permute.xlu0 %1242
      %1244 = vrot.lane.b32.xlu0 %v1123, 94
      %v1245 = vpop.permute.xlu0 %1244
      %1246 = vrot.lane.b32.xlu0 %v1124, 94
      %v1247 = vpop.permute.xlu0 %1246
      %vm1248 = vcmask 769024
      %v1249 = vsel %vm1248, %v1243, %v1245
      %v1250 = vsel %vm1248, %v1245, %v1247
      %vm1251 = vcmask 1040384
      %v1252 = vsel %vm1251, %v1003, %v1137
      %v1253 = vsel %vm1251, %v1004, %v1138
      %v1254 = vsel %vm1251, %v1005, %v1136
      %vm1255 = vcmask 1041408
      %v1256 = vsel %vm1255, %v1252, %v1155
      %v1257 = vsel %vm1255, %v1253, %v1156
      %v1258 = vsel %vm1255, %v1254, %v1153
      %vm1259 = vcmask 1042432
      %v1260 = vsel %vm1259, %v1256, %v1172
      %v1261 = vsel %vm1259, %v1257, %v1173
      %v1262 = vsel %vm1259, %v1258, %v1171
      %vm1263 = vcmask 1043456
      %v1264 = vsel %vm1263, %v1260, %v1178
      %v1265 = vsel %vm1263, %v1261, %v1181
      %v1266 = vsel %vm1263, %v1262, %v1180
      %vm1267 = vcmask 1044480
      %v1268 = vsel %vm1267, %v1264, %v1192
      %v1269 = vsel %vm1267, %v1265, %v1198
      %v1270 = vsel %vm1267, %v1266, %v1199
      %vm1271 = vcmask 1045504
      %v1272 = vsel %vm1271, %v1268, %v1210
      %v1273 = vsel %vm1271, %v1269, %v1216
      %v1274 = vsel %vm1271, %v1270, %v1217
      %vm1275 = vcmask 1046528
      %v1276 = vsel %vm1275, %v1272, %v1228
      %v1277 = vsel %vm1275, %v1273, %v1234
      %v1278 = vsel %vm1275, %v1274, %v1235
      %v1279 = vld [vmem:[%s3] sm:$0xff]
      %1283 = vrot.lane.b32.xlu0 %v1276, 17
      %v1284 = vpop.permute.xlu0 %1283
      %1285 = vrot.lane.b32.xlu0 %v1277, 17
      %v1286 = vpop.permute.xlu0 %1285
      %1287 = vrot.lane.b32.xlu0 %v1278, 17
      %v1288 = vpop.permute.xlu0 %1287
      %1289 = vrot.lane.b32.xlu0 %v1243, 17
      %v1290 = vpop.permute.xlu0 %1289
      %1291 = vrot.lane.b32.xlu0 %v1249, 17
      %v1292 = vpop.permute.xlu0 %1291
      %1293 = vrot.lane.b32.xlu0 %v1250, 17
      %v1294 = vpop.permute.xlu0 %1293
      %v1295 = vsel %vm1117, %v1284, %v1286
      %v1296 = vsel %vm1117, %v1286, %v1288
      %v1297 = vsel %vm1117, %v1290, %v1292
      %v1298 = vsel %vm1117, %v1292, %v1294
      %vm1301 = vcmask 72704
      %v1303 = vsel %vm1301, %v1279, 0
      %v1305 = vsel %vm1251, %v1297, 0
      %v1307 = vsel %vm1251, %v1298, 0
      %1309 = vmatpush.msra.mxu0 0.0
      %1310 = vmatpush.msra.mxu0 0.0
      %1311 = vmatpush.msra.mxu0 0.0
      %1312 = vmatpush.msra.mxu0 0.0
      %1313 = vmatpush.msra.mxu0 0.0
      %1314 = vmatpush.msra.mxu0 0.0
      %1315 = vmatpush.msra.mxu0 0.0
      %1316 = vmatpush.msra.mxu0 0.0
      %1317 = vmatpush.msra.mxu0 0.0
      %1318 = vmatpush.msra.mxu0 0.0
      %1319 = vmatpush.msra.mxu0 0.0
      %1320 = vmatpush.msra.mxu0 0.0
      %1321 = vmatpush.msra.mxu0 0.0
      %1322 = vmatpush.msra.mxu0 0.0
      %1323 = vmatpush.msra.mxu0 %v1305
      %1324 = vmatpush.msra.mxu0 %v1295
      %1325 = vmatmul.f32.gmra.mxu0 %v1303
      %v1326 = vpop.f32.mrf.mxu0
      %v1327 = vadd.f32 0.0, %v1326
      %1328 = vdwg.mxu0
      %1329 = vmatpush.msra.mxu0 0.0
      %1330 = vmatpush.msra.mxu0 0.0
      %1331 = vmatpush.msra.mxu0 0.0
      %1332 = vmatpush.msra.mxu0 0.0
      %1333 = vmatpush.msra.mxu0 0.0
      %1334 = vmatpush.msra.mxu0 0.0
      %1335 = vmatpush.msra.mxu0 0.0
      %1336 = vmatpush.msra.mxu0 0.0
      %1337 = vmatpush.msra.mxu0 0.0
      %1338 = vmatpush.msra.mxu0 0.0
      %1339 = vmatpush.msra.mxu0 0.0
      %1340 = vmatpush.msra.mxu0 0.0
      %1341 = vmatpush.msra.mxu0 0.0
      %1342 = vmatpush.msra.mxu0 0.0
      %1343 = vmatpush.msra.mxu0 %v1307
      %1344 = vmatpush.msra.mxu0 %v1296
      %1345 = vmatmul.f32.gmra.mxu0 %v1303
      %v1346 = vpop.f32.mrf.mxu0
      %v1347 = vadd.f32 0.0, %v1346
      %1348 = vdwg.mxu0
      %v1349 = vld [vmem:[%s5] sm:$0xff]
      %1351 = vset.pattern.permute.xlu0 0
      %1352 = vperm.xlu0 %1351, %v1349
      %v1353 = vpop.permute.xlu0 %1352
      %v1355 = vmul.f32 %v1327, %v1353
      %v1356 = vmul.f32 %v1347, %v1353
      %v1357 = vld [vmem:[%s7] sm:$0xff]
      %1359 = vset.pattern.permute.xlu0 0
      %1360 = vperm.xlu0 %1359, %v1357
      %v1361 = vpop.permute.xlu0 %1360
      %v1363 = vadd.f32 %v1355, %v1361
      %v1364 = vadd.f32 %v1356, %v1361
      %v1365 = vmax.f32 %v1363, 0.0
      %v1366 = vmax.f32 %v1364, 0.0
      %1367 = vst [vmem:[#allocation2] sm:$0xff] %v1365
      %1368 = vst [vmem:[#allocation2 + $0x8] sm:$0xff] %v1366
      %v1369 = vld [vmem:[#allocation2] sm:$0xff]
      %v1370 = vld [vmem:[#allocation2 + $0x8] sm:$0xff]
      %v1371 = vld [vmem:[%s11] sm:$0xff]
      %1373 = vset.pattern.permute.xlu0 0
      %1374 = vperm.xlu0 %1373, %v1371
      %v1375 = vpop.permute.xlu0 %1374
      %v1377 = vmul.f32 %v1369, %v1375
      %v1378 = vmul.f32 %v1370, %v1375
      %v1379 = vld [vmem:[%s13] sm:$0xff]
      %1381 = vset.pattern.permute.xlu0 0
      %1382 = vperm.xlu0 %1381, %v1379
      %v1383 = vpop.permute.xlu0 %1382
      %v1385 = vadd.f32 %v1377, %v1383
      %v1386 = vadd.f32 %v1378, %v1383
      %v1387 = vmax.f32 %v1385, 0.0
      %v1388 = vmax.f32 %v1386, 0.0
      %v1389 = vld [vmem:[%s15] sm:$0xff]
      %vm1390 = vcmask 64512
      %v1392 = vsel %vm1390, %v1389, 0
      %1394 = vmatpush.msra.mxu0 0.0
      %1395 = vmatpush.msra.mxu0 0.0
      %1396 = vmatpush.msra.mxu0 0.0
      %1397 = vmatpush.msra.mxu0 0.0
      %1398 = vmatpush.msra.mxu0 0.0
      %1399 = vmatpush.msra.mxu0 0.0
      %1400 = vmatpush.msra.mxu0 0.0
      %1401 = vmatpush.msra.mxu0 0.0
      %1402 = vmatpush.msra.mxu0 0.0
      %1403 = vmatpush.msra.mxu0 0.0
      %1404 = vmatpush.msra.mxu0 0.0
      %1405 = vmatpush.msra.mxu0 0.0
      %1406 = vmatpush.msra.mxu0 0.0
      %1407 = vmatpush.msra.mxu0 0.0
      %1408 = vmatpush.msra.mxu0 0.0
      %1409 = vmatpush.msra.mxu0 %v1387
      %1410 = vmatmul.f32.gmra.mxu0 %v1392
      %v1411 = vpop.f32.mrf.mxu0
      %v1412 = vadd.f32 0.0, %v1411
      %1413 = vdwg.mxu0
      %1414 = vmatpush.msra.mxu0 0.0
      %1415 = vmatpush.msra.mxu0 0.0
      %1416 = vmatpush.msra.mxu0 0.0
      %1417 = vmatpush.msra.mxu0 0.0
      %1418 = vmatpush.msra.mxu0 0.0
      %1419 = vmatpush.msra.mxu0 0.0
      %1420 = vmatpush.msra.mxu0 0.0
      %1421 = vmatpush.msra.mxu0 0.0
      %1422 = vmatpush.msra.mxu0 0.0
      %1423 = vmatpush.msra.mxu0 0.0
      %1424 = vmatpush.msra.mxu0 0.0
      %1425 = vmatpush.msra.mxu0 0.0
      %1426 = vmatpush.msra.mxu0 0.0
      %1427 = vmatpush.msra.mxu0 0.0
      %1428 = vmatpush.msra.mxu0 0.0
      %1429 = vmatpush.msra.mxu0 %v1388
      %1430 = vmatmul.f32.gmra.mxu0 %v1392
      %v1431 = vpop.f32.mrf.mxu0
      %v1432 = vadd.f32 0.0, %v1431
      %1433 = vdwg.mxu0
      %v1434 = vld [vmem:[%s17] sm:$0xff]
      %1436 = vset.pattern.permute.xlu0 0
      %1437 = vperm.xlu0 %1436, %v1434
      %v1438 = vpop.permute.xlu0 %1437
      %v1440 = vmul.f32 %v1412, %v1438
      %v1441 = vmul.f32 %v1432, %v1438
      %v1442 = vld [vmem:[%s19] sm:$0xff]
      %1444 = vset.pattern.permute.xlu0 0
      %1445 = vperm.xlu0 %1444, %v1442
      %v1446 = vpop.permute.xlu0 %1445
      %v1448 = vadd.f32 %v1440, %v1446
      %v1449 = vadd.f32 %v1441, %v1446
      %v1450 = vmax.f32 %v1448, 0.0
      %v1451 = vmax.f32 %v1449, 0.0
      %v1452 = vld [vmem:[%s9] ss:$8 sm:$0x3]
      %v1454 = vperm.slane %v1452, 0
      %v1455 = vperm.slane %v1452, 1
      %1456 = vrot.lane.b32.xlu0 %v1454, 111
      %v1457 = vpop.permute.xlu0 %1456
      %1458 = vrot.lane.b32.xlu0 %v1455, 111
      %v1459 = vpop.permute.xlu0 %1458
      %v1460 = vsel %vm998, %v1457, %v1459
      %v1464 = vmul.f32 %v1451, %v1457
      %v1465 = vmul.f32 %v1450, %v1460
      %v1466 = vmul.f32 %v1451, %v1459
      %v1467 = vld [vmem:[%s1006] ss:$8 sm:$0x3]
      %v1469 = vperm.slane %v1467, 0
      %v1470 = vperm.slane %v1467, 1
      %1471 = vrot.lane.b32.xlu0 %v1469, 112
      %v1472 = vpop.permute.xlu0 %1471
      %1473 = vrot.lane.b32.xlu0 %v1470, 112
      %v1474 = vpop.permute.xlu0 %1473
      %v1475 = vsel %vm1015, %v1472, %v1474
      %v1479 = vmul.f32 %v1451, %v1472
      %v1480 = vmul.f32 %v1450, %v1475
      %v1481 = vmul.f32 %v1451, %v1474
      %v1482 = vld [vmem:[%s1023] ss:$8 sm:$0x3]
      %v1484 = vperm.slane %v1482, 0
      %v1485 = vperm.slane %v1482, 1
      %1486 = vrot.lane.b32.xlu0 %v1484, 113
      %v1487 = vpop.permute.xlu0 %1486
      %1488 = vrot.lane.b32.xlu0 %v1485, 113
      %v1489 = vpop.permute.xlu0 %1488
      %v1490 = vsel %vm1032, %v1487, %v1489
      %v1494 = vmul.f32 %v1451, %v1487
      %v1495 = vmul.f32 %v1450, %v1490
      %v1496 = vmul.f32 %v1451, %v1489
      %v1497 = vld [vmem:[%s1040] ss:$8 sm:$0x3]
      %v1499 = vperm.slane %v1497, 0
      %v1500 = vperm.slane %v1497, 1
      %1501 = vrot.lane.b32.xlu0 %v1499, 127
      %v1502 = vpop.permute.xlu0 %1501
      %1503 = vrot.lane.b32.xlu0 %v1500, 127
      %v1504 = vpop.permute.xlu0 %1503
      %v1505 = vsel %vm1049, %v1502, %v1504
      %v1509 = vmul.f32 %v1451, %v1502
      %v1510 = vmul.f32 %v1450, %v1505
      %v1511 = vmul.f32 %v1451, %v1504
      %v1512 = vld [vmem:[%s1057] ss:$8 sm:$0x3]
      %v1514 = vperm.slane %v1512, 0
      %v1515 = vperm.slane %v1512, 1
      %1516 = vrot.lane.b32.xlu0 %v1514, 1
      %v1517 = vpop.permute.xlu0 %1516
      %1518 = vrot.lane.b32.xlu0 %v1515, 1
      %v1519 = vpop.permute.xlu0 %1518
      %v1520 = vsel %vm1066, %v1517, %v1519
      %v1524 = vmul.f32 %v1450, %v1517
      %v1525 = vmul.f32 %v1451, %v1520
      %v1526 = vmul.f32 %v1450, %v1519
      %v1527 = vld [vmem:[%s1074] ss:$8 sm:$0x3]
      %v1529 = vperm.slane %v1527, 0
      %v1530 = vperm.slane %v1527, 1
      %1531 = vrot.lane.b32.xlu0 %v1529, 15
      %v1532 = vpop.permute.xlu0 %1531
      %1533 = vrot.lane.b32.xlu0 %v1530, 15
      %v1534 = vpop.permute.xlu0 %1533
      %v1535 = vsel %vm1083, %v1532, %v1534
      %v1539 = vmul.f32 %v1450, %v1532
      %v1540 = vmul.f32 %v1451, %v1535
      %v1541 = vmul.f32 %v1450, %v1534
      %v1542 = vld [vmem:[%s1091] ss:$8 sm:$0x3]
      %v1544 = vperm.slane %v1542, 0
      %v1545 = vperm.slane %v1542, 1
      %1546 = vrot.lane.b32.xlu0 %v1544, 16
      %v1547 = vpop.permute.xlu0 %1546
      %1548 = vrot.lane.b32.xlu0 %v1545, 16
      %v1549 = vpop.permute.xlu0 %1548
      %v1550 = vsel %vm1100, %v1547, %v1549
      %v1554 = vmul.f32 %v1450, %v1547
      %v1555 = vmul.f32 %v1451, %v1550
      %v1556 = vmul.f32 %v1450, %v1549
      %v1557 = vld [vmem:[%s1108] ss:$8 sm:$0x3]
      %v1559 = vperm.slane %v1557, 0
      %v1560 = vperm.slane %v1557, 1
      %1561 = vrot.lane.b32.xlu0 %v1559, 17
      %v1562 = vpop.permute.xlu0 %1561
      %1563 = vrot.lane.b32.xlu0 %v1560, 17
      %v1564 = vpop.permute.xlu0 %1563
      %v1565 = vsel %vm1117, %v1562, %v1564
      %v1569 = vmul.f32 %v1450, %v1562
      %v1570 = vmul.f32 %v1451, %v1565
      %v1571 = vmul.f32 %v1450, %v1564
      %1575 = vrot.lane.b32.xlu0 %v1479, 127
      %v1576 = vpop.permute.xlu0 %1575
      %1577 = vrot.lane.b32.xlu0 %v1480, 127
      %v1578 = vpop.permute.xlu0 %1577
      %1579 = vrot.lane.b32.xlu0 %v1481, 127
      %v1580 = vpop.permute.xlu0 %1579
      %v1581 = vsel %vm1049, %v1576, %v1578
      %v1582 = vsel %vm1049, %v1578, %v1580
      %1586 = vrot.lane.b32.xlu0 %v1494, 126
      %v1587 = vpop.permute.xlu0 %1586
      %1588 = vrot.lane.b32.xlu0 %v1495, 126
      %v1589 = vpop.permute.xlu0 %1588
      %1590 = vrot.lane.b32.xlu0 %v1496, 126
      %v1591 = vpop.permute.xlu0 %1590
      %v1592 = vsel %vm1154, %v1587, %v1589
      %v1593 = vsel %vm1154, %v1589, %v1591
      %1597 = vrot.lane.b32.xlu0 %v1509, 112
      %v1598 = vpop.permute.xlu0 %1597
      %1599 = vrot.lane.b32.xlu0 %v1510, 112
      %v1600 = vpop.permute.xlu0 %1599
      %1601 = vrot.lane.b32.xlu0 %v1511, 112
      %v1602 = vpop.permute.xlu0 %1601
      %v1603 = vsel %vm1015, %v1598, %v1600
      %v1604 = vsel %vm1015, %v1600, %v1602
      %1607 = vrot.lane.b32.xlu0 %v1450, 111
      %v1608 = vpop.permute.xlu0 %1607
      %1609 = vrot.lane.b32.xlu0 %v1451, 111
      %v1610 = vpop.permute.xlu0 %1609
      %v1611 = vsel %vm998, %v1608, %v1610
      %1615 = vrot.lane.b32.xlu0 %v1524, 110
      %v1616 = vpop.permute.xlu0 %1615
      %1617 = vrot.lane.b32.xlu0 %v1525, 110
      %v1618 = vpop.permute.xlu0 %1617
      %1619 = vrot.lane.b32.xlu0 %v1526, 110
      %v1620 = vpop.permute.xlu0 %1619
      %v1621 = vsel %vm1197, %v1616, %v1618
      %v1622 = vsel %vm1197, %v1618, %v1620
      %1626 = vrot.lane.b32.xlu0 %v1539, 96
      %v1627 = vpop.permute.xlu0 %1626
      %1628 = vrot.lane.b32.xlu0 %v1540, 96
      %v1629 = vpop.permute.xlu0 %1628
      %1630 = vrot.lane.b32.xlu0 %v1541, 96
      %v1631 = vpop.permute.xlu0 %1630
      %v1632 = vsel %vm1215, %v1627, %v1629
      %v1633 = vsel %vm1215, %v1629, %v1631
      %1637 = vrot.lane.b32.xlu0 %v1554, 95
      %v1638 = vpop.permute.xlu0 %1637
      %1639 = vrot.lane.b32.xlu0 %v1555, 95
      %v1640 = vpop.permute.xlu0 %1639
      %1641 = vrot.lane.b32.xlu0 %v1556, 95
      %v1642 = vpop.permute.xlu0 %1641
      %v1643 = vsel %vm1233, %v1638, %v1640
      %v1644 = vsel %vm1233, %v1640, %v1642
      %1648 = vrot.lane.b32.xlu0 %v1569, 94
      %v1649 = vpop.permute.xlu0 %1648
      %1650 = vrot.lane.b32.xlu0 %v1570, 94
      %v1651 = vpop.permute.xlu0 %1650
      %1652 = vrot.lane.b32.xlu0 %v1571, 94
      %v1653 = vpop.permute.xlu0 %1652
      %v1654 = vsel %vm1248, %v1649, %v1651
      %v1655 = vsel %vm1248, %v1651, %v1653
      %v1656 = vld [vmem:[%s21] sm:$0xf]
      %1660 = vrot.lane.b32.xlu0 %v1464, 17
      %v1661 = vpop.permute.xlu0 %1660
      %1662 = vrot.lane.b32.xlu0 %v1465, 17
      %v1663 = vpop.permute.xlu0 %1662
      %1664 = vrot.lane.b32.xlu0 %v1466, 17
      %v1665 = vpop.permute.xlu0 %1664
      %1666 = vrot.lane.b32.xlu0 %v1581, 17
      %v1667 = vpop.permute.xlu0 %1666
      %1668 = vrot.lane.b32.xlu0 %v1582, 17
      %v1669 = vpop.permute.xlu0 %1668
      %1670 = vrot.lane.b32.xlu0 %v1580, 17
      %v1671 = vpop.permute.xlu0 %1670
      %1672 = vrot.lane.b32.xlu0 %v1592, 17
      %v1673 = vpop.permute.xlu0 %1672
      %1674 = vrot.lane.b32.xlu0 %v1593, 17
      %v1675 = vpop.permute.xlu0 %1674
      %1676 = vrot.lane.b32.xlu0 %v1591, 17
      %v1677 = vpop.permute.xlu0 %1676
      %1678 = vrot.lane.b32.xlu0 %v1603, 17
      %v1679 = vpop.permute.xlu0 %1678
      %1680 = vrot.lane.b32.xlu0 %v1604, 17
      %v1681 = vpop.permute.xlu0 %1680
      %1682 = vrot.lane.b32.xlu0 %v1602, 17
      %v1683 = vpop.permute.xlu0 %1682
      %1684 = vrot.lane.b32.xlu0 %v1608, 17
      %v1685 = vpop.permute.xlu0 %1684
      %1686 = vrot.lane.b32.xlu0 %v1611, 17
      %v1687 = vpop.permute.xlu0 %1686
      %1688 = vrot.lane.b32.xlu0 %v1610, 17
      %v1689 = vpop.permute.xlu0 %1688
      %1690 = vrot.lane.b32.xlu0 %v1616, 17
      %v1691 = vpop.permute.xlu0 %1690
      %1692 = vrot.lane.b32.xlu0 %v1621, 17
      %v1693 = vpop.permute.xlu0 %1692
      %1694 = vrot.lane.b32.xlu0 %v1622, 17
      %v1695 = vpop.permute.xlu0 %1694
      %1696 = vrot.lane.b32.xlu0 %v1627, 17
      %v1697 = vpop.permute.xlu0 %1696
      %1698 = vrot.lane.b32.xlu0 %v1632, 17
      %v1699 = vpop.permute.xlu0 %1698
      %1700 = vrot.lane.b32.xlu0 %v1633, 17
      %v1701 = vpop.permute.xlu0 %1700
      %1702 = vrot.lane.b32.xlu0 %v1638, 17
      %v1703 = vpop.permute.xlu0 %1702
      %1704 = vrot.lane.b32.xlu0 %v1643, 17
      %v1705 = vpop.permute.xlu0 %1704
      %1706 = vrot.lane.b32.xlu0 %v1644, 17
      %v1707 = vpop.permute.xlu0 %1706
      %1708 = vrot.lane.b32.xlu0 %v1649, 17
      %v1709 = vpop.permute.xlu0 %1708
      %1710 = vrot.lane.b32.xlu0 %v1654, 17
      %v1711 = vpop.permute.xlu0 %1710
      %1712 = vrot.lane.b32.xlu0 %v1655, 17
      %v1713 = vpop.permute.xlu0 %1712
      %v1714 = vsel %vm1117, %v1661, %v1663
      %v1715 = vsel %vm1117, %v1663, %v1665
      %v1716 = vsel %vm1117, %v1667, %v1669
      %v1717 = vsel %vm1117, %v1669, %v1671
      %v1718 = vsel %vm1117, %v1673, %v1675
      %v1719 = vsel %vm1117, %v1675, %v1677
      %v1720 = vsel %vm1117, %v1679, %v1681
      %v1721 = vsel %vm1117, %v1681, %v1683
      %v1722 = vsel %vm1117, %v1685, %v1687
      %v1723 = vsel %vm1117, %v1687, %v1689
      %v1724 = vsel %vm1117, %v1691, %v1693
      %v1725 = vsel %vm1117, %v1693, %v1695
      %v1726 = vsel %vm1117, %v1697, %v1699
      %v1727 = vsel %vm1117, %v1699, %v1701
      %v1728 = vsel %vm1117, %v1703, %v1705
      %v1729 = vsel %vm1117, %v1705, %v1707
      %v1730 = vsel %vm1117, %v1709, %v1711
      %v1731 = vsel %vm1117, %v1711, %v1713
      %vm1750 = vcmask 588800
      %v1752 = vsel %vm1750, %v1656, 0
      %1754 = vmatpush.msra.mxu0 0.0
      %1755 = vmatpush.msra.mxu0 0.0
      %1756 = vmatpush.msra.mxu0 0.0
      %1757 = vmatpush.msra.mxu0 0.0
      %1758 = vmatpush.msra.mxu0 0.0
      %1759 = vmatpush.msra.mxu0 0.0
      %1760 = vmatpush.msra.mxu0 0.0
      %1761 = vmatpush.msra.mxu0 %v1730
      %1762 = vmatpush.msra.mxu0 %v1728
      %1763 = vmatpush.msra.mxu0 %v1726
      %1764 = vmatpush.msra.mxu0 %v1724
      %1765 = vmatpush.msra.mxu0 %v1722
      %1766 = vmatpush.msra.mxu0 %v1720
      %1767 = vmatpush.msra.mxu0 %v1718
      %1768 = vmatpush.msra.mxu0 %v1716
      %1769 = vmatpush.msra.mxu0 %v1714
      %1770 = vmatmul.f32.gmra.mxu0 %v1752
      %v1771 = vpop.f32.mrf.mxu0
      %v1772 = vadd.f32 0.0, %v1771
      %1773 = vdwg.mxu0
      %1774 = vmatpush.msra.mxu0 0.0
      %1775 = vmatpush.msra.mxu0 0.0
      %1776 = vmatpush.msra.mxu0 0.0
      %1777 = vmatpush.msra.mxu0 0.0
      %1778 = vmatpush.msra.mxu0 0.0
      %1779 = vmatpush.msra.mxu0 0.0
      %1780 = vmatpush.msra.mxu0 0.0
      %1781 = vmatpush.msra.mxu0 %v1731
      %1782 = vmatpush.msra.mxu0 %v1729
      %1783 = vmatpush.msra.mxu0 %v1727
      %1784 = vmatpush.msra.mxu0 %v1725
      %1785 = vmatpush.msra.mxu0 %v1723
      %1786 = vmatpush.msra.mxu0 %v1721
      %1787 = vmatpush.msra.mxu0 %v1719
      %1788 = vmatpush.msra.mxu0 %v1717
      %1789 = vmatpush.msra.mxu0 %v1715
      %1790 = vmatmul.f32.gmra.mxu0 %v1752
      %v1791 = vpop.f32.mrf.mxu0
      %v1792 = vadd.f32 0.0, %v1791
      %1793 = vdwg.mxu0
      %1794 = vst [vmem:[#allocation2 + $0x10] sm:$0xf] %v1772
      %1795 = vst [vmem:[#allocation2 + $0x18] sm:$0xf] %v1792
      %v1796 = vld [vmem:[#allocation2] sm:$0xff]
      %v1797 = vld [vmem:[#allocation2 + $0x8] sm:$0xff]
      %v1798 = vld [vmem:[#allocation2 + $0x10] sm:$0xf]
      %v1799 = vld [vmem:[#allocation2 + $0x18] sm:$0xf]
      %v1800 = vld [vmem:[%s23] sm:$0xff]
      %v1801 = vld [vmem:[%s23 + $0x8] sm:$0xf]
      %1803 = vset.pattern.permute.xlu0 0
      %1804 = vperm.xlu0 %1803, %v1800
      %v1805 = vpop.permute.xlu0 %1804
      %1808 = vset.pattern.permute.xlu0 0
      %1809 = vperm.xlu0 %1808, %v1801
      %v1810 = vpop.permute.xlu0 %1809
      %v1812 = vmul.f32 %v1796, %v1805
      %v1813 = vmul.f32 %v1797, %v1805
      %v1814 = vmul.f32 %v1798, %v1810
      %v1815 = vmul.f32 %v1799, %v1810
      %v1816 = vld [vmem:[%s25] sm:$0xff]
      %v1817 = vld [vmem:[%s25 + $0x8] sm:$0xf]
      %1819 = vset.pattern.permute.xlu0 0
      %1820 = vperm.xlu0 %1819, %v1816
      %v1821 = vpop.permute.xlu0 %1820
      %1824 = vset.pattern.permute.xlu0 0
      %1825 = vperm.xlu0 %1824, %v1817
      %v1826 = vpop.permute.xlu0 %1825
      %v1828 = vadd.f32 %v1812, %v1821
      %v1829 = vadd.f32 %v1813, %v1821
      %v1830 = vadd.f32 %v1814, %v1826
      %v1831 = vadd.f32 %v1815, %v1826
      %v1832 = vmax.f32 %v1828, 0.0
      %v1833 = vmax.f32 %v1829, 0.0
      %v1834 = vmax.f32 %v1830, 0.0
      %v1835 = vmax.f32 %v1831, 0.0
      %v1836 = vld [vmem:[%s27] sm:$0xff]
      %vm1837 = vcmask 97280
      %v1839 = vsel %vm1837, %v1836, 0
      %v1842 = vsel %vm1263, %v1834, 0
      %v1845 = vsel %vm1263, %v1835, 0
      %1847 = vmatpush.msra.mxu0 0.0
      %1848 = vmatpush.msra.mxu0 0.0
      %1849 = vmatpush.msra.mxu0 0.0
      %1850 = vmatpush.msra.mxu0 0.0
      %1851 = vmatpush.msra.mxu0 0.0
      %1852 = vmatpush.msra.mxu0 0.0
      %1853 = vmatpush.msra.mxu0 0.0
      %1854 = vmatpush.msra.mxu0 0.0
      %1855 = vmatpush.msra.mxu0 0.0
      %1856 = vmatpush.msra.mxu0 0.0
      %1857 = vmatpush.msra.mxu0 0.0
      %1858 = vmatpush.msra.mxu0 0.0
      %1859 = vmatpush.msra.mxu0 0.0
      %1860 = vmatpush.msra.mxu0 0.0
      %1861 = vmatpush.msra.mxu0 %v1842
      %1862 = vmatpush.msra.mxu0 %v1832
      %1863 = vmatmul.f32.gmra.mxu0 %v1839
      %v1864 = vpop.f32.mrf.mxu0
      %v1865 = vadd.f32 0.0, %v1864
      %1866 = vdwg.mxu0
      %1867 = vmatpush.msra.mxu0 0.0
      %1868 = vmatpush.msra.mxu0 0.0
      %1869 = vmatpush.msra.mxu0 0.0
      %1870 = vmatpush.msra.mxu0 0.0
      %1871 = vmatpush.msra.mxu0 0.0
      %1872 = vmatpush.msra.mxu0 0.0
      %1873 = vmatpush.msra.mxu0 0.0
      %1874 = vmatpush.msra.mxu0 0.0
      %1875 = vmatpush.msra.mxu0 0.0
      %1876 = vmatpush.msra.mxu0 0.0
      %1877 = vmatpush.msra.mxu0 0.0
      %1878 = vmatpush.msra.mxu0 0.0
      %1879 = vmatpush.msra.mxu0 0.0
      %1880 = vmatpush.msra.mxu0 0.0
      %1881 = vmatpush.msra.mxu0 %v1845
      %1882 = vmatpush.msra.mxu0 %v1833
      %1883 = vmatmul.f32.gmra.mxu0 %v1839
      %v1884 = vpop.f32.mrf.mxu0
      %v1885 = vadd.f32 0.0, %v1884
      %1886 = vdwg.mxu0
      %v1887 = vld [vmem:[%s29] sm:$0xff]
      %1889 = vset.pattern.permute.xlu0 0
      %1890 = vperm.xlu0 %1889, %v1887
      %v1891 = vpop.permute.xlu0 %1890
      %v1893 = vmul.f32 %v1865, %v1891
      %v1894 = vmul.f32 %v1885, %v1891
      %v1895 = vld [vmem:[%s31] sm:$0xff]
      %1897 = vset.pattern.permute.xlu0 0
      %1898 = vperm.xlu0 %1897, %v1895
      %v1899 = vpop.permute.xlu0 %1898
      %v1901 = vadd.f32 %v1893, %v1899
      %v1902 = vadd.f32 %v1894, %v1899
      %v1903 = vmax.f32 %v1901, 0.0
      %v1904 = vmax.f32 %v1902, 0.0
      %v1905 = vld [vmem:[%s9] ss:$8 sm:$0x3]
      %v1907 = vperm.slane %v1905, 0
      %v1908 = vperm.slane %v1905, 1
      %1909 = vrot.lane.b32.xlu0 %v1907, 111
      %v1910 = vpop.permute.xlu0 %1909
      %1911 = vrot.lane.b32.xlu0 %v1908, 111
      %v1912 = vpop.permute.xlu0 %1911
      %v1913 = vsel %vm998, %v1910, %v1912
      %v1917 = vmul.f32 %v1904, %v1910
      %v1918 = vmul.f32 %v1903, %v1913
      %v1919 = vmul.f32 %v1904, %v1912
      %v1920 = vld [vmem:[%s1006] ss:$8 sm:$0x3]
      %v1922 = vperm.slane %v1920, 0
      %v1923 = vperm.slane %v1920, 1
      %1924 = vrot.lane.b32.xlu0 %v1922, 112
      %v1925 = vpop.permute.xlu0 %1924
      %1926 = vrot.lane.b32.xlu0 %v1923, 112
      %v1927 = vpop.permute.xlu0 %1926
      %v1928 = vsel %vm1015, %v1925, %v1927
      %v1932 = vmul.f32 %v1904, %v1925
      %v1933 = vmul.f32 %v1903, %v1928
      %v1934 = vmul.f32 %v1904, %v1927
      %v1935 = vld [vmem:[%s1023] ss:$8 sm:$0x3]
      %v1937 = vperm.slane %v1935, 0
      %v1938 = vperm.slane %v1935, 1
      %1939 = vrot.lane.b32.xlu0 %v1937, 113
      %v1940 = vpop.permute.xlu0 %1939
      %1941 = vrot.lane.b32.xlu0 %v1938, 113
      %v1942 = vpop.permute.xlu0 %1941
      %v1943 = vsel %vm1032, %v1940, %v1942
      %v1947 = vmul.f32 %v1904, %v1940
      %v1948 = vmul.f32 %v1903, %v1943
      %v1949 = vmul.f32 %v1904, %v1942
      %v1950 = vld [vmem:[%s1040] ss:$8 sm:$0x3]
      %v1952 = vperm.slane %v1950, 0
      %v1953 = vperm.slane %v1950, 1
      %1954 = vrot.lane.b32.xlu0 %v1952, 127
      %v1955 = vpop.permute.xlu0 %1954
      %1956 = vrot.lane.b32.xlu0 %v1953, 127
      %v1957 = vpop.permute.xlu0 %1956
      %v1958 = vsel %vm1049, %v1955, %v1957
      %v1962 = vmul.f32 %v1904, %v1955
      %v1963 = vmul.f32 %v1903, %v1958
      %v1964 = vmul.f32 %v1904, %v1957
      %v1965 = vld [vmem:[%s1057] ss:$8 sm:$0x3]
      %v1967 = vperm.slane %v1965, 0
      %v1968 = vperm.slane %v1965, 1
      %1969 = vrot.lane.b32.xlu0 %v1967, 1
      %v1970 = vpop.permute.xlu0 %1969
      %1971 = vrot.lane.b32.xlu0 %v1968, 1
      %v1972 = vpop.permute.xlu0 %1971
      %v1973 = vsel %vm1066, %v1970, %v1972
      %v1977 = vmul.f32 %v1903, %v1970
      %v1978 = vmul.f32 %v1904, %v1973
      %v1979 = vmul.f32 %v1903, %v1972
      %v1980 = vld [vmem:[%s1074] ss:$8 sm:$0x3]
      %v1982 = vperm.slane %v1980, 0
      %v1983 = vperm.slane %v1980, 1
      %1984 = vrot.lane.b32.xlu0 %v1982, 15
      %v1985 = vpop.permute.xlu0 %1984
      %1986 = vrot.lane.b32.xlu0 %v1983, 15
      %v1987 = vpop.permute.xlu0 %1986
      %v1988 = vsel %vm1083, %v1985, %v1987
      %v1992 = vmul.f32 %v1903, %v1985
      %v1993 = vmul.f32 %v1904, %v1988
      %v1994 = vmul.f32 %v1903, %v1987
      %v1995 = vld [vmem:[%s1091] ss:$8 sm:$0x3]
      %v1997 = vperm.slane %v1995, 0
      %v1998 = vperm.slane %v1995, 1
      %1999 = vrot.lane.b32.xlu0 %v1997, 16
      %v2000 = vpop.permute.xlu0 %1999
      %2001 = vrot.lane.b32.xlu0 %v1998, 16
      %v2002 = vpop.permute.xlu0 %2001
      %v2003 = vsel %vm1100, %v2000, %v2002
      %v2007 = vmul.f32 %v1903, %v2000
      %v2008 = vmul.f32 %v1904, %v2003
      %v2009 = vmul.f32 %v1903, %v2002
      %v2010 = vld [vmem:[%s1108] ss:$8 sm:$0x3]
      %v2012 = vperm.slane %v2010, 0
      %v2013 = vperm.slane %v2010, 1
      %2014 = vrot.lane.b32.xlu0 %v2012, 17
      %v2015 = vpop.permute.xlu0 %2014
      %2016 = vrot.lane.b32.xlu0 %v2013, 17
      %v2017 = vpop.permute.xlu0 %2016
      %v2018 = vsel %vm1117, %v2015, %v2017
      %v2022 = vmul.f32 %v1903, %v2015
      %v2023 = vmul.f32 %v1904, %v2018
      %v2024 = vmul.f32 %v1903, %v2017
      %2028 = vrot.lane.b32.xlu0 %v1932, 127
      %v2029 = vpop.permute.xlu0 %2028
      %2030 = vrot.lane.b32.xlu0 %v1933, 127
      %v2031 = vpop.permute.xlu0 %2030
      %2032 = vrot.lane.b32.xlu0 %v1934, 127
      %v2033 = vpop.permute.xlu0 %2032
      %v2034 = vsel %vm1049, %v2029, %v2031
      %v2035 = vsel %vm1049, %v2031, %v2033
      %2039 = vrot.lane.b32.xlu0 %v1947, 126
      %v2040 = vpop.permute.xlu0 %2039
      %2041 = vrot.lane.b32.xlu0 %v1948, 126
      %v2042 = vpop.permute.xlu0 %2041
      %2043 = vrot.lane.b32.xlu0 %v1949, 126
      %v2044 = vpop.permute.xlu0 %2043
      %v2045 = vsel %vm1154, %v2040, %v2042
      %v2046 = vsel %vm1154, %v2042, %v2044
      %2050 = vrot.lane.b32.xlu0 %v1962, 112
      %v2051 = vpop.permute.xlu0 %2050
      %2052 = vrot.lane.b32.xlu0 %v1963, 112
      %v2053 = vpop.permute.xlu0 %2052
      %2054 = vrot.lane.b32.xlu0 %v1964, 112
      %v2055 = vpop.permute.xlu0 %2054
      %v2056 = vsel %vm1015, %v2051, %v2053
      %v2057 = vsel %vm1015, %v2053, %v2055
      %2060 = vrot.lane.b32.xlu0 %v1903, 111
      %v2061 = vpop.permute.xlu0 %2060
      %2062 = vrot.lane.b32.xlu0 %v1904, 111
      %v2063 = vpop.permute.xlu0 %2062
      %v2064 = vsel %vm998, %v2061, %v2063
      %2068 = vrot.lane.b32.xlu0 %v1977, 110
      %v2069 = vpop.permute.xlu0 %2068
      %2070 = vrot.lane.b32.xlu0 %v1978, 110
      %v2071 = vpop.permute.xlu0 %2070
      %2072 = vrot.lane.b32.xlu0 %v1979, 110
      %v2073 = vpop.permute.xlu0 %2072
      %v2074 = vsel %vm1197, %v2069, %v2071
      %v2075 = vsel %vm1197, %v2071, %v2073
      %2079 = vrot.lane.b32.xlu0 %v1992, 96
      %v2080 = vpop.permute.xlu0 %2079
      %2081 = vrot.lane.b32.xlu0 %v1993, 96
      %v2082 = vpop.permute.xlu0 %2081
      %2083 = vrot.lane.b32.xlu0 %v1994, 96
      %v2084 = vpop.permute.xlu0 %2083
      %v2085 = vsel %vm1215, %v2080, %v2082
      %v2086 = vsel %vm1215, %v2082, %v2084
      %2090 = vrot.lane.b32.xlu0 %v2007, 95
      %v2091 = vpop.permute.xlu0 %2090
      %2092 = vrot.lane.b32.xlu0 %v2008, 95
      %v2093 = vpop.permute.xlu0 %2092
      %2094 = vrot.lane.b32.xlu0 %v2009, 95
      %v2095 = vpop.permute.xlu0 %2094
      %v2096 = vsel %vm1233, %v2091, %v2093
      %v2097 = vsel %vm1233, %v2093, %v2095
      %2101 = vrot.lane.b32.xlu0 %v2022, 94
      %v2102 = vpop.permute.xlu0 %2101
      %2103 = vrot.lane.b32.xlu0 %v2023, 94
      %v2104 = vpop.permute.xlu0 %2103
      %2105 = vrot.lane.b32.xlu0 %v2024, 94
      %v2106 = vpop.permute.xlu0 %2105
      %v2107 = vsel %vm1248, %v2102, %v2104
      %v2108 = vsel %vm1248, %v2104, %v2106
      %v2109 = vld [vmem:[%s33] sm:$0xf]
      %2113 = vrot.lane.b32.xlu0 %v1917, 17
      %v2114 = vpop.permute.xlu0 %2113
      %2115 = vrot.lane.b32.xlu0 %v1918, 17
      %v2116 = vpop.permute.xlu0 %2115
      %2117 = vrot.lane.b32.xlu0 %v1919, 17
      %v2118 = vpop.permute.xlu0 %2117
      %2119 = vrot.lane.b32.xlu0 %v2034, 17
      %v2120 = vpop.permute.xlu0 %2119
      %2121 = vrot.lane.b32.xlu0 %v2035, 17
      %v2122 = vpop.permute.xlu0 %2121
      %2123 = vrot.lane.b32.xlu0 %v2033, 17
      %v2124 = vpop.permute.xlu0 %2123
      %2125 = vrot.lane.b32.xlu0 %v2045, 17
      %v2126 = vpop.permute.xlu0 %2125
      %2127 = vrot.lane.b32.xlu0 %v2046, 17
      %v2128 = vpop.permute.xlu0 %2127
      %2129 = vrot.lane.b32.xlu0 %v2044, 17
      %v2130 = vpop.permute.xlu0 %2129
      %2131 = vrot.lane.b32.xlu0 %v2056, 17
      %v2132 = vpop.permute.xlu0 %2131
      %2133 = vrot.lane.b32.xlu0 %v2057, 17
      %v2134 = vpop.permute.xlu0 %2133
      %2135 = vrot.lane.b32.xlu0 %v2055, 17
      %v2136 = vpop.permute.xlu0 %2135
      %2137 = vrot.lane.b32.xlu0 %v2061, 17
      %v2138 = vpop.permute.xlu0 %2137
      %2139 = vrot.lane.b32.xlu0 %v2064, 17
      %v2140 = vpop.permute.xlu0 %2139
      %2141 = vrot.lane.b32.xlu0 %v2063, 17
      %v2142 = vpop.permute.xlu0 %2141
      %2143 = vrot.lane.b32.xlu0 %v2069, 17
      %v2144 = vpop.permute.xlu0 %2143
      %2145 = vrot.lane.b32.xlu0 %v2074, 17
      %v2146 = vpop.permute.xlu0 %2145
      %2147 = vrot.lane.b32.xlu0 %v2075, 17
      %v2148 = vpop.permute.xlu0 %2147
      %2149 = vrot.lane.b32.xlu0 %v2080, 17
      %v2150 = vpop.permute.xlu0 %2149
      %2151 = vrot.lane.b32.xlu0 %v2085, 17
      %v2152 = vpop.permute.xlu0 %2151
      %2153 = vrot.lane.b32.xlu0 %v2086, 17
      %v2154 = vpop.permute.xlu0 %2153
      %2155 = vrot.lane.b32.xlu0 %v2091, 17
      %v2156 = vpop.permute.xlu0 %2155
      %2157 = vrot.lane.b32.xlu0 %v2096, 17
      %v2158 = vpop.permute.xlu0 %2157
      %2159 = vrot.lane.b32.xlu0 %v2097, 17
      %v2160 = vpop.permute.xlu0 %2159
      %2161 = vrot.lane.b32.xlu0 %v2102, 17
      %v2162 = vpop.permute.xlu0 %2161
      %2163 = vrot.lane.b32.xlu0 %v2107, 17
      %v2164 = vpop.permute.xlu0 %2163
      %2165 = vrot.lane.b32.xlu0 %v2108, 17
      %v2166 = vpop.permute.xlu0 %2165
      %v2167 = vsel %vm1117, %v2114, %v2116
      %v2168 = vsel %vm1117, %v2116, %v2118
      %v2169 = vsel %vm1117, %v2120, %v2122
      %v2170 = vsel %vm1117, %v2122, %v2124
      %v2171 = vsel %vm1117, %v2126, %v2128
      %v2172 = vsel %vm1117, %v2128, %v2130
      %v2173 = vsel %vm1117, %v2132, %v2134
      %v2174 = vsel %vm1117, %v2134, %v2136
      %v2175 = vsel %vm1117, %v2138, %v2140
      %v2176 = vsel %vm1117, %v2140, %v2142
      %v2177 = vsel %vm1117, %v2144, %v2146
      %v2178 = vsel %vm1117, %v2146, %v2148
      %v2179 = vsel %vm1117, %v2150, %v2152
      %v2180 = vsel %vm1117, %v2152, %v2154
      %v2181 = vsel %vm1117, %v2156, %v2158
      %v2182 = vsel %vm1117, %v2158, %v2160
      %v2183 = vsel %vm1117, %v2162, %v2164
      %v2184 = vsel %vm1117, %v2164, %v2166
      %v2204 = vsel %vm1750, %v2109, 0
      %2206 = vmatpush.msra.mxu0 0.0
      %2207 = vmatpush.msra.mxu0 0.0
      %2208 = vmatpush.msra.mxu0 0.0
      %2209 = vmatpush.msra.mxu0 0.0
      %2210 = vmatpush.msra.mxu0 0.0
      %2211 = vmatpush.msra.mxu0 0.0
      %2212 = vmatpush.msra.mxu0 0.0
      %2213 = vmatpush.msra.mxu0 %v2183
      %2214 = vmatpush.msra.mxu0 %v2181
      %2215 = vmatpush.msra.mxu0 %v2179
      %2216 = vmatpush.msra.mxu0 %v2177
      %2217 = vmatpush.msra.mxu0 %v2175
      %2218 = vmatpush.msra.mxu0 %v2173
      %2219 = vmatpush.msra.mxu0 %v2171
      %2220 = vmatpush.msra.mxu0 %v2169
      %2221 = vmatpush.msra.mxu0 %v2167
      %2222 = vmatmul.f32.gmra.mxu0 %v2204
      %v2223 = vpop.f32.mrf.mxu0
      %v2224 = vadd.f32 0.0, %v2223
      %2225 = vdwg.mxu0
      %2226 = vmatpush.msra.mxu0 0.0
      %2227 = vmatpush.msra.mxu0 0.0
      %2228 = vmatpush.msra.mxu0 0.0
      %2229 = vmatpush.msra.mxu0 0.0
      %2230 = vmatpush.msra.mxu0 0.0
      %2231 = vmatpush.msra.mxu0 0.0
      %2232 = vmatpush.msra.mxu0 0.0
      %2233 = vmatpush.msra.mxu0 %v2184
      %2234 = vmatpush.msra.mxu0 %v2182
      %2235 = vmatpush.msra.mxu0 %v2180
      %2236 = vmatpush.msra.mxu0 %v2178
      %2237 = vmatpush.msra.mxu0 %v2176
      %2238 = vmatpush.msra.mxu0 %v2174
      %2239 = vmatpush.msra.mxu0 %v2172
      %2240 = vmatpush.msra.mxu0 %v2170
      %2241 = vmatpush.msra.mxu0 %v2168
      %2242 = vmatmul.f32.gmra.mxu0 %v2204
      %v2243 = vpop.f32.mrf.mxu0
      %v2244 = vadd.f32 0.0, %v2243
      %2245 = vdwg.mxu0
      %v2248 = vrot.slane %v2224, 4
      %v2249 = vrot.slane %v2244, 4
      %2252 = vst [vmem:[#allocation2 + $0x10] sm:$0xf0] %v2248
      %2253 = vst [vmem:[#allocation2 + $0x18] sm:$0xf0] %v2249
      %v2254 = vld [vmem:[#allocation2] sm:$0xff]
      %v2255 = vld [vmem:[#allocation2 + $0x8] sm:$0xff]
      %v2256 = vld [vmem:[#allocation2 + $0x10] sm:$0xff]
      %v2257 = vld [vmem:[#allocation2 + $0x18] sm:$0xff]
      %v2258 = vld [vmem:[%s35] sm:$0xff]
      %v2259 = vld [vmem:[%s35 + $0x8] sm:$0xff]
      %2261 = vset.pattern.permute.xlu0 0
      %2262 = vperm.xlu0 %2261, %v2258
      %v2263 = vpop.permute.xlu0 %2262
      %2266 = vset.pattern.permute.xlu0 0
      %2267 = vperm.xlu0 %2266, %v2259
      %v2268 = vpop.permute.xlu0 %2267
      %v2270 = vmul.f32 %v2254, %v2263
      %v2271 = vmul.f32 %v2255, %v2263
      %v2272 = vmul.f32 %v2256, %v2268
      %v2273 = vmul.f32 %v2257, %v2268
      %v2274 = vld [vmem:[%s37] sm:$0xff]
      %v2275 = vld [vmem:[%s37 + $0x8] sm:$0xff]
      %2277 = vset.pattern.permute.xlu0 0
      %2278 = vperm.xlu0 %2277, %v2274
      %v2279 = vpop.permute.xlu0 %2278
      %2282 = vset.pattern.permute.xlu0 0
      %2283 = vperm.xlu0 %2282, %v2275
      %v2284 = vpop.permute.xlu0 %2283
      %v2286 = vadd.f32 %v2270, %v2279
      %v2287 = vadd.f32 %v2271, %v2279
      %v2288 = vadd.f32 %v2272, %v2284
      %v2289 = vadd.f32 %v2273, %v2284
      %v2290 = vmax.f32 %v2286, 0.0
      %v2291 = vmax.f32 %v2287, 0.0
      %v2292 = vmax.f32 %v2288, 0.0
      %v2293 = vmax.f32 %v2289, 0.0
      %v2294 = vld [vmem:[%s39] sm:$0xff]
      %v2296 = vsel %vm1100, %v2294, 0
      %2298 = vmatpush.msra.mxu0 0.0
      %2299 = vmatpush.msra.mxu0 0.0
      %2300 = vmatpush.msra.mxu0 0.0
      %2301 = vmatpush.msra.mxu0 0.0
      %2302 = vmatpush.msra.mxu0 0.0
      %2303 = vmatpush.msra.mxu0 0.0
      %2304 = vmatpush.msra.mxu0 0.0
      %2305 = vmatpush.msra.mxu0 0.0
      %2306 = vmatpush.msra.mxu0 0.0
      %2307 = vmatpush.msra.mxu0 0.0
      %2308 = vmatpush.msra.mxu0 0.0
      %2309 = vmatpush.msra.mxu0 0.0
      %2310 = vmatpush.msra.mxu0 0.0
      %2311 = vmatpush.msra.mxu0 0.0
      %2312 = vmatpush.msra.mxu0 %v2292
      %2313 = vmatpush.msra.mxu0 %v2290
      %2314 = vmatmul.f32.gmra.mxu0 %v2296
      %v2315 = vpop.f32.mrf.mxu0
      %v2316 = vadd.f32 0.0, %v2315
      %2317 = vdwg.mxu0
      %2318 = vmatpush.msra.mxu0 0.0
      %2319 = vmatpush.msra.mxu0 0.0
      %2320 = vmatpush.msra.mxu0 0.0
      %2321 = vmatpush.msra.mxu0 0.0
      %2322 = vmatpush.msra.mxu0 0.0
      %2323 = vmatpush.msra.mxu0 0.0
      %2324 = vmatpush.msra.mxu0 0.0
      %2325 = vmatpush.msra.mxu0 0.0
      %2326 = vmatpush.msra.mxu0 0.0
      %2327 = vmatpush.msra.mxu0 0.0
      %2328 = vmatpush.msra.mxu0 0.0
      %2329 = vmatpush.msra.mxu0 0.0
      %2330 = vmatpush.msra.mxu0 0.0
      %2331 = vmatpush.msra.mxu0 0.0
      %2332 = vmatpush.msra.mxu0 %v2293
      %2333 = vmatpush.msra.mxu0 %v2291
      %2334 = vmatmul.f32.gmra.mxu0 %v2296
      %v2335 = vpop.f32.mrf.mxu0
      %v2336 = vadd.f32 0.0, %v2335
      %2337 = vdwg.mxu0
      %v2338 = vld [vmem:[%s41] sm:$0xff]
      %v2339 = vld [vmem:[%s41 + $0x8] sm:$0xff]
      %v2340 = vld [vmem:[%s41 + $0x10] sm:$0xff]
      %v2341 = vld [vmem:[%s41 + $0x18] sm:$0xff]
      %v2342 = vld [vmem:[%s41 + $0x20] sm:$0xff]
      %v2343 = vld [vmem:[%s41 + $0x28] sm:$0xff]
      %v2344 = vld [vmem:[%s41 + $0x30] sm:$0xff]
      %v2345 = vld [vmem:[%s41 + $0x38] sm:$0xff]
      %v2346 = vld [vmem:[%s41 + $0x40] sm:$0xff]
      %v2347 = vld [vmem:[%s41 + $0x48] sm:$0xff]
      %v2348 = vld [vmem:[%s41 + $0x50] sm:$0xff]
      %v2349 = vld [vmem:[%s41 + $0x58] sm:$0xff]
      %v2350 = vld [vmem:[%s41 + $0x60] sm:$0xff]
      %v2351 = vld [vmem:[%s41 + $0x68] sm:$0xff]
      %v2352 = vld [vmem:[%s41 + $0x70] sm:$0xff]
      %v2353 = vld [vmem:[%s41 + $0x78] sm:$0xff]
      %v2354 = vld [vmem:[%s41 + $0x80] sm:$0xff]
      %v2355 = vld [vmem:[%s41 + $0x88] sm:$0xff]
      %v2356 = vld [vmem:[%s41 + $0x90] sm:$0xff]
      %v2357 = vld [vmem:[%s41 + $0x98] sm:$0xff]
      %v2358 = vld [vmem:[%s41 + $0xa0] sm:$0xff]
      %v2359 = vld [vmem:[%s41 + $0xa8] sm:$0xff]
      %v2360 = vld [vmem:[%s41 + $0xb0] sm:$0xff]
      %v2361 = vld [vmem:[%s41 + $0xb8] sm:$0xff]
      %v2362 = vld [vmem:[%s41 + $0xc0] sm:$0xff]
      %v2363 = vld [vmem:[%s41 + $0xc8] sm:$0xff]
      %v2364 = vld [vmem:[%s41 + $0xd0] sm:$0xff]
      %v2365 = vld [vmem:[%s41 + $0xd8] sm:$0xff]
      %v2366 = vld [vmem:[%s41 + $0xe0] sm:$0xff]
      %v2367 = vld [vmem:[%s41 + $0xe8] sm:$0xff]
      %v2368 = vld [vmem:[%s41 + $0xf0] sm:$0xff]
      %v2369 = vld [vmem:[%s41 + $0xf8] sm:$0xff]
      %2370 = vmatpush.msra.mxu0 %v2353
      %2371 = vmatpush.msra.mxu0 %v2352
      %2372 = vmatpush.msra.mxu0 %v2351
      %2373 = vmatpush.msra.mxu0 %v2350
      %2374 = vmatpush.msra.mxu0 %v2349
      %2375 = vmatpush.msra.mxu0 %v2348
      %2376 = vmatpush.msra.mxu0 %v2347
      %2377 = vmatpush.msra.mxu0 %v2346
      %2378 = vmatpush.msra.mxu0 %v2345
      %2379 = vmatpush.msra.mxu0 %v2344
      %2380 = vmatpush.msra.mxu0 %v2343
      %2381 = vmatpush.msra.mxu0 %v2342
      %2382 = vmatpush.msra.mxu0 %v2341
      %2383 = vmatpush.msra.mxu0 %v2340
      %2384 = vmatpush.msra.mxu0 %v2339
      %2385 = vmatpush.msra.mxu0 %v2338
      %2386 = vmatmul.f32.gmra.mxu0 %v2316
      %v2387 = vpop.f32.mrf.mxu0
      %v2388 = vadd.f32 0.0, %v2387
      %2389 = vdwg.mxu0
      %2390 = vmatpush.msra.mxu0 %v2369
      %2391 = vmatpush.msra.mxu0 %v2368
      %2392 = vmatpush.msra.mxu0 %v2367
      %2393 = vmatpush.msra.mxu0 %v2366
      %2394 = vmatpush.msra.mxu0 %v2365
      %2395 = vmatpush.msra.mxu0 %v2364
      %2396 = vmatpush.msra.mxu0 %v2363
      %2397 = vmatpush.msra.mxu0 %v2362
      %2398 = vmatpush.msra.mxu0 %v2361
      %2399 = vmatpush.msra.mxu0 %v2360
      %2400 = vmatpush.msra.mxu0 %v2359
      %2401 = vmatpush.msra.mxu0 %v2358
      %2402 = vmatpush.msra.mxu0 %v2357
      %2403 = vmatpush.msra.mxu0 %v2356
      %2404 = vmatpush.msra.mxu0 %v2355
      %2405 = vmatpush.msra.mxu0 %v2354
      %2406 = vmatmul.f32.gmra.mxu0 %v2336
      %v2407 = vpop.f32.mrf.mxu0
      %v2408 = vadd.f32 %v2388, %v2407
      %2409 = vdwg.mxu0
      %vm2410 = vcmask 523264
      %2411 = vst.msk [vmem:[#allocation3] sm:$0xff] %vm2410, %v2408
      %v2412 = vld [vmem:[#allocation3] sm:$0xff]
      %v2413 = vld [vmem:[%s45] sm:$0xff]
      %2415 = vset.pattern.permute.xlu0 0
      %2416 = vperm.xlu0 %2415, %v2413
      %v2417 = vpop.permute.xlu0 %2416
      %v2419 = vmul.f32 %v2412, %v2417
      %v2420 = vld [vmem:[%s47] sm:$0xff]
      %2422 = vset.pattern.permute.xlu0 0
      %2423 = vperm.xlu0 %2422, %v2420
      %v2424 = vpop.permute.xlu0 %2423
      %v2426 = vadd.f32 %v2419, %v2424
      %v2427 = vmax.f32 %v2426, 0.0
      %v2428 = vld [vmem:[%s49] sm:$0xff]
      %v2430 = vsel %vm1390, %v2428, 0
      %2432 = vmatpush.msra.mxu0 0.0
      %2433 = vmatpush.msra.mxu0 0.0
      %2434 = vmatpush.msra.mxu0 0.0
      %2435 = vmatpush.msra.mxu0 0.0
      %2436 = vmatpush.msra.mxu0 0.0
      %2437 = vmatpush.msra.mxu0 0.0
      %2438 = vmatpush.msra.mxu0 0.0
      %2439 = vmatpush.msra.mxu0 0.0
      %2440 = vmatpush.msra.mxu0 0.0
      %2441 = vmatpush.msra.mxu0 0.0
      %2442 = vmatpush.msra.mxu0 0.0
      %2443 = vmatpush.msra.mxu0 0.0
      %2444 = vmatpush.msra.mxu0 0.0
      %2445 = vmatpush.msra.mxu0 0.0
      %2446 = vmatpush.msra.mxu0 0.0
      %2447 = vmatpush.msra.mxu0 %v2427
      %2448 = vmatmul.f32.gmra.mxu0 %v2430
      %v2449 = vpop.f32.mrf.mxu0
      %v2450 = vadd.f32 0.0, %v2449
      %2451 = vdwg.mxu0
      %v2452 = vld [vmem:[%s51] sm:$0xff]
      %2454 = vset.pattern.permute.xlu0 0
      %2455 = vperm.xlu0 %2454, %v2452
      %v2456 = vpop.permute.xlu0 %2455
      %v2458 = vmul.f32 %v2450, %v2456
      %v2459 = vld [vmem:[%s53] sm:$0xff]
      %2461 = vset.pattern.permute.xlu0 0
      %2462 = vperm.xlu0 %2461, %v2459
      %v2463 = vpop.permute.xlu0 %2462
      %v2465 = vadd.f32 %v2458, %v2463
      %v2466 = vmax.f32 %v2465, 0.0
      %2468 = vrot.lane.b32.xlu0 %v2466, 64
      %v2469 = vpop.permute.xlu0 %2468
      %v2471 = vsel %vm2410, %v2466, %v2469
      %v2472 = vld [vmem:[%s43] sm:$0x1]
      %v2473 = vperm.slane %v2472, 0
      %2475 = vrot.lane.b32.xlu0 %v2473, 55
      %v2476 = vpop.permute.xlu0 %2475
      %v2478 = vmul.f32 %v2471, %v2476
      %v2479 = vld [vmem:[%s43 + $0x1] sm:$0x1]
      %v2480 = vperm.slane %v2479, 0
      %2482 = vrot.lane.b32.xlu0 %v2480, 56
      %v2483 = vpop.permute.xlu0 %2482
      %v2485 = vmul.f32 %v2471, %v2483
      %v2486 = vld [vmem:[%s43 + $0x2] sm:$0x1]
      %v2487 = vperm.slane %v2486, 0
      %2489 = vrot.lane.b32.xlu0 %v2487, 57
      %v2490 = vpop.permute.xlu0 %2489
      %v2492 = vmul.f32 %v2471, %v2490
      %v2493 = vld [vmem:[%s43 + $0x3] sm:$0x1]
      %v2494 = vperm.slane %v2493, 0
      %2496 = vrot.lane.b32.xlu0 %v2494, 63
      %v2497 = vpop.permute.xlu0 %2496
      %v2499 = vmul.f32 %v2471, %v2497
      %v2500 = vld [vmem:[%s43 + $0x5] sm:$0x1]
      %v2501 = vperm.slane %v2500, 0
      %2503 = vrot.lane.b32.xlu0 %v2501, 1
      %v2504 = vpop.permute.xlu0 %2503
      %v2506 = vmul.f32 %v2471, %v2504
      %v2507 = vld [vmem:[%s43 + $0x6] sm:$0x1]
      %v2508 = vperm.slane %v2507, 0
      %2510 = vrot.lane.b32.xlu0 %v2508, 7
      %v2511 = vpop.permute.xlu0 %2510
      %v2513 = vmul.f32 %v2471, %v2511
      %v2514 = vld [vmem:[%s43 + $0x7] sm:$0x1]
      %v2515 = vperm.slane %v2514, 0
      %2517 = vrot.lane.b32.xlu0 %v2515, 8
      %v2518 = vpop.permute.xlu0 %2517
      %v2520 = vmul.f32 %v2471, %v2518
      %v2521 = vld [vmem:[%s43 + $0x8] sm:$0x1]
      %v2522 = vperm.slane %v2521, 0
      %2524 = vrot.lane.b32.xlu0 %v2522, 9
      %v2525 = vpop.permute.xlu0 %2524
      %v2527 = vmul.f32 %v2471, %v2525
      %2529 = vrot.lane.b32.xlu0 %v2485, 127
      %v2530 = vpop.permute.xlu0 %2529
      %2532 = vrot.lane.b32.xlu0 %v2492, 126
      %v2533 = vpop.permute.xlu0 %2532
      %2535 = vrot.lane.b32.xlu0 %v2499, 120
      %v2536 = vpop.permute.xlu0 %2535
      %2537 = vrot.lane.b32.xlu0 %v2466, 55
      %v2538 = vpop.permute.xlu0 %2537
      %2540 = vrot.lane.b32.xlu0 %v2506, 54
      %v2541 = vpop.permute.xlu0 %2540
      %2543 = vrot.lane.b32.xlu0 %v2513, 48
      %v2544 = vpop.permute.xlu0 %2543
      %2546 = vrot.lane.b32.xlu0 %v2520, 47
      %v2547 = vpop.permute.xlu0 %2546
      %2549 = vrot.lane.b32.xlu0 %v2527, 46
      %v2550 = vpop.permute.xlu0 %2549
      %v2551 = vld [vmem:[%s55] sm:$0xf]
      %2553 = vrot.lane.b32.xlu0 %v2478, 73
      %v2554 = vpop.permute.xlu0 %2553
      %2555 = vrot.lane.b32.xlu0 %v2530, 73
      %v2556 = vpop.permute.xlu0 %2555
      %2557 = vrot.lane.b32.xlu0 %v2533, 73
      %v2558 = vpop.permute.xlu0 %2557
      %2559 = vrot.lane.b32.xlu0 %v2536, 73
      %v2560 = vpop.permute.xlu0 %2559
      %2561 = vrot.lane.b32.xlu0 %v2538, 73
      %v2562 = vpop.permute.xlu0 %2561
      %2563 = vrot.lane.b32.xlu0 %v2541, 73
      %v2564 = vpop.permute.xlu0 %2563
      %2565 = vrot.lane.b32.xlu0 %v2544, 73
      %v2566 = vpop.permute.xlu0 %2565
      %2567 = vrot.lane.b32.xlu0 %v2547, 73
      %v2568 = vpop.permute.xlu0 %2567
      %2569 = vrot.lane.b32.xlu0 %v2550, 73
      %v2570 = vpop.permute.xlu0 %2569
      %v2581 = vsel %vm1750, %v2551, 0
      %2583 = vmatpush.msra.mxu0 0.0
      %2584 = vmatpush.msra.mxu0 0.0
      %2585 = vmatpush.msra.mxu0 0.0
      %2586 = vmatpush.msra.mxu0 0.0
      %2587 = vmatpush.msra.mxu0 0.0
      %2588 = vmatpush.msra.mxu0 0.0
      %2589 = vmatpush.msra.mxu0 0.0
      %2590 = vmatpush.msra.mxu0 %v2570
      %2591 = vmatpush.msra.mxu0 %v2568
      %2592 = vmatpush.msra.mxu0 %v2566
      %2593 = vmatpush.msra.mxu0 %v2564
      %2594 = vmatpush.msra.mxu0 %v2562
      %2595 = vmatpush.msra.mxu0 %v2560
      %2596 = vmatpush.msra.mxu0 %v2558
      %2597 = vmatpush.msra.mxu0 %v2556
      %2598 = vmatpush.msra.mxu0 %v2554
      %2599 = vmatmul.f32.gmra.mxu0 %v2581
      %v2600 = vpop.f32.mrf.mxu0
      %v2601 = vadd.f32 0.0, %v2600
      %2602 = vdwg.mxu0
      %vm2603 = vcmask 519168
      %2604 = vst.msk [vmem:[#allocation3 + $0x8] sm:$0xf] %vm2603, %v2601
      %v2605 = vld [vmem:[#allocation3] sm:$0xff]
      %v2606 = vld [vmem:[#allocation3 + $0x8] sm:$0xf]
      %v2607 = vld [vmem:[%s57] sm:$0xff]
      %v2608 = vld [vmem:[%s57 + $0x8] sm:$0xf]
      %2610 = vset.pattern.permute.xlu0 0
      %2611 = vperm.xlu0 %2610, %v2607
      %v2612 = vpop.permute.xlu0 %2611
      %2615 = vset.pattern.permute.xlu0 0
      %2616 = vperm.xlu0 %2615, %v2608
      %v2617 = vpop.permute.xlu0 %2616
      %v2619 = vmul.f32 %v2605, %v2612
      %v2620 = vmul.f32 %v2606, %v2617
      %v2621 = vld [vmem:[%s59] sm:$0xff]
      %v2622 = vld [vmem:[%s59 + $0x8] sm:$0xf]
      %2624 = vset.pattern.permute.xlu0 0
      %2625 = vperm.xlu0 %2624, %v2621
      %v2626 = vpop.permute.xlu0 %2625
      %2629 = vset.pattern.permute.xlu0 0
      %2630 = vperm.xlu0 %2629, %v2622
      %v2631 = vpop.permute.xlu0 %2630
      %v2633 = vadd.f32 %v2619, %v2626
      %v2634 = vadd.f32 %v2620, %v2631
      %v2635 = vmax.f32 %v2633, 0.0
      %v2636 = vmax.f32 %v2634, 0.0
      %v2637 = vld [vmem:[%s61] sm:$0xff]
      %v2638 = vld [vmem:[%s61 + $0x8] sm:$0x3]
      %v2640 = vsel %vm1837, %v2637, 0
      %v2643 = vsel %vm1837, %v2638, 0
      %v2646 = vsel %vm1263, %v2636, 0
      %2648 = vmatpush.msra.mxu0 0.0
      %2649 = vmatpush.msra.mxu0 0.0
      %2650 = vmatpush.msra.mxu0 0.0
      %2651 = vmatpush.msra.mxu0 0.0
      %2652 = vmatpush.msra.mxu0 0.0
      %2653 = vmatpush.msra.mxu0 0.0
      %2654 = vmatpush.msra.mxu0 0.0
      %2655 = vmatpush.msra.mxu0 0.0
      %2656 = vmatpush.msra.mxu0 0.0
      %2657 = vmatpush.msra.mxu0 0.0
      %2658 = vmatpush.msra.mxu0 0.0
      %2659 = vmatpush.msra.mxu0 0.0
      %2660 = vmatpush.msra.mxu0 0.0
      %2661 = vmatpush.msra.mxu0 0.0
      %2662 = vmatpush.msra.mxu0 %v2646
      %2663 = vmatpush.msra.mxu0 %v2635
      %2664 = vmatmul.f32.gmra.mxu0 %v2640
      %v2665 = vpop.f32.mrf.mxu0
      %v2666 = vadd.f32 0.0, %v2665
      %2667 = vmatmul.f32.gmra.mxu0 %v2643
      %v2668 = vpop.f32.mrf.mxu0
      %v2669 = vadd.f32 0.0, %v2668
      %2670 = vdwg.mxu0
      %v2671 = vsel %vm2410, %v2666, 0.0
      %2672 = vadd.xlane.f32.xlu0 %v2671
      %v2673 = vpop.xlane.xlu0 %2672
      %vm2674 = vcmask 517120
      %v2675 = vsel %vm2674, %v2669, 0.0
      %2676 = vadd.xlane.f32.xlu0 %v2675
      %v2677 = vpop.xlane.xlu0 %2676
      %v2678 = vrcp.pop 64.0
      %v2679 = vmul.f32 64.0, %v2678
      %v2680 = vsub.f32 1.0, %v2679
      %v2681 = vmul.f32 %v2678, %v2680
      %v2682 = vadd.f32 %v2678, %v2681
      %vm2683 = vweird.f32 %v2678
      %v2684 = vsel %vm2683, %v2678, %v2682
      %v2685 = vmul.f32 %v2673, %v2684
      %v2686 = vmul.f32 %v2677, %v2684
      %v2687 = vld [vmem:[%s63] sm:$0xff]
      %v2688 = vld [vmem:[%s63 + $0x8] sm:$0x3]
      %v2689 = vadd.f32 %v2685, %v2687
      %v2690 = vadd.f32 %v2686, %v2688
      %2691 = vst.msk [vmem:[%s983] sm:$0xff] %vm1066, %v2689
      %vm2692 = vcmask 1024
      %2693 = vst.msk [vmem:[%s983 + $0x8] sm:$0x3] %vm2692, %v2690
      %p2694 = scmp.lt.s32.totalorder %s76, 1
      %s2695 = scalar_select %p2694, %s76, 1
      %s2696 = smul.addr %s2695, 2
      %s2697 = smul.addr %s2696, 8
      %s2698 = scalar_lea.vmem %s65, %s2697
      // Predicated region
      $region149: #{tpu_custom_call.1} parent=147 // pred_check
        %p2699 = pneg %p771
      $region150: #{tpu_custom_call.1} parent=147 // pred_check_branch
        %2701 = sbr.rel (%p2699) target = $region152
      $region151: #{tpu_custom_call.1} parent=147 // pred_region
        _
      $region152: #{tpu_custom_call.1} parent=147 // pred_fallthru
        _
    $region148: #{tpu_custom_call.1} parent=5 // pred_fallthru
      _
    %p2702 = scmp.le.s32.totalorder 2, %s71
    // Predicated region
    $region153: #{tpu_custom_call.1} parent=5 // pred_check
      %p2703 = pneg %p2702
    $region154: #{tpu_custom_call.1} parent=5 // pred_check_branch
      %2705 = sbr.rel (%p2703) target = $region156
    $region155: #{tpu_custom_call.1} parent=5 // pred_region
      %s2706 = ssub.s32 %s71, 2
      // Predicated region
      $region157: #{tpu_custom_call.1} parent=155 // pred_check
        %p2707 = pneg %p777
      $region158: #{tpu_custom_call.1} parent=155 // pred_check_branch
        %2709 = sbr.rel (%p2707) target = $region160
      $region159: #{tpu_custom_call.1} parent=155 // pred_region
        %p2710 = scmp.lt.s32.totalorder %s77, 1
        %s2711 = scalar_select %p2710, %s77, 1
        %s2712 = smul.addr %s2711, 2
        %s2713 = smul.addr %s2712, 8
        %s2714 = scalar_lea.vmem %s65, %s2713
      $region160: #{tpu_custom_call.1} parent=155 // pred_fallthru
        _
    $region156: #{tpu_custom_call.1} parent=5 // pred_fallthru
      _
  $region6: #{tpu_custom_call.1} parent=0 // loop_footer
    %s75 = sadd.s32 1, %s71
  $region7: #{tpu_custom_call.1} parent=0 // loop_footer_branch
    %70 = sbr.rel target = $region3
  $region8: #{tpu_custom_call.1} parent=0 // loop_exit
    _

</llo_original>
